<compile_context>
chip_gen: v7x
topology: tpu7x:2x2x1
jax: 0.10.0
libtpu: 0.0.40
codegen_flags: <defaults>
</compile_context>

<pallas_src>
import jax
import jax.numpy as jnp
from jax.experimental import pallas as pl
from jax.experimental.pallas import tpu as pltpu

LRELU_SLOPE = 0.02
BN_EPS = 1e-5


def _nbytes(shape, dtype):
    n = 1
    for s in shape:
        n *= int(s)
    return n * jnp.dtype(dtype).itemsize


def _vmem_limit(total_bytes):
    # generous 2x + 1 MiB slack over the actual footprint, floor 8 MiB (well under the
    # 32 MiB default scoped limit on v7x).
    return int(max(8 * 1024 * 1024, 2 * int(total_bytes) + (1 << 20)))


def _vmem_specs(n):
    return [pl.BlockSpec(memory_space=pltpu.MemorySpace.VMEM) for _ in range(n)]


# ----------------------------- Pallas kernels -----------------------------

def _conv_lrelu_kernel(p_ref, w_ref, b_ref, o_ref):
    """LeakyReLU(patches @ W + b); single VMEM block."""
    y = jnp.dot(p_ref[...], w_ref[...], preferred_element_type=jnp.float32) + b_ref[...]
    o_ref[...] = jnp.where(y > 0, y, LRELU_SLOPE * y).astype(o_ref.dtype)


def _conv_bn_lrelu_kernel(p_ref, w_ref, b_ref, g_ref, be_ref, o_ref):
    """LeakyReLU(BatchNorm_batchstats(patches @ W + b)); single VMEM block, no masking
    needed because the block is exactly the unpadded [M, C] activation."""
    raw = jnp.dot(p_ref[...], w_ref[...], preferred_element_type=jnp.float32) + b_ref[...]
    mean = jnp.mean(raw, axis=0, keepdims=True)
    var = jnp.maximum(jnp.mean(raw * raw, axis=0, keepdims=True) - mean * mean, 0.0)
    scale = jax.lax.rsqrt(var + BN_EPS) * g_ref[...]
    shift = be_ref[...] - mean * scale
    y = raw * scale + shift
    o_ref[...] = jnp.where(y > 0, y, LRELU_SLOPE * y).astype(o_ref.dtype)


def _conv_bn_lrelu_linear_kernel(p_ref, w_ref, b_ref, g_ref, be_ref,
                                 wt_ref, sel_ref, bl_ref, o_ref):
    """conv4 + BN + LeakyReLU with the final Linear(.,1) fused in.

    wt_ref: (N*HW, C) linear weight already permuted from torch's (c,h,w) flatten order
            to our NHWC (h,w,c) row layout and tiled per sample.
    sel_ref: (N, N*HW) 0/1 per-sample row-selection matrix.
    """
    raw = jnp.dot(p_ref[...], w_ref[...], preferred_element_type=jnp.float32) + b_ref[...]
    mean = jnp.mean(raw, axis=0, keepdims=True)
    var = jnp.maximum(jnp.mean(raw * raw, axis=0, keepdims=True) - mean * mean, 0.0)
    scale = jax.lax.rsqrt(var + BN_EPS) * g_ref[...]
    shift = be_ref[...] - mean * scale
    y = raw * scale + shift
    y = jnp.where(y > 0, y, LRELU_SLOPE * y)                                   # (N*HW, C) f32
    z = y * wt_ref[...]                                                        # weighted features
    per_sample = jnp.dot(sel_ref[...], z, preferred_element_type=jnp.float32)  # (N, C)
    o_ref[...] = jnp.sum(per_sample, axis=1, keepdims=True) + bl_ref[...]      # (N, 1)


# ------------------------------- JAX glue ----------------------------------

def im2col_nhwc(x, k=3, stride=2):
    """x: (N, H, W, C) -> patches (N*Ho*Wo, k*k*C), K ordered (kh, kw, c)."""
    N, H, W, C = x.shape
    Ho = (H - k) // stride + 1
    Wo = (W - k) // stride + 1
    cols = []
    for di in range(k):
        for dj in range(k):
            cols.append(x[:, di:di + stride * (Ho - 1) + 1:stride,
                            dj:dj + stride * (Wo - 1) + 1:stride, :])
    p = jnp.stack(cols, axis=3)                         # (N, Ho, Wo, k*k, C)
    return p.reshape(N * Ho * Wo, k * k * C), Ho, Wo


def conv_lrelu(x_nhwc, layer):
    N = x_nhwc.shape[0]
    patches, Ho, Wo = im2col_nhwc(x_nhwc)
    M = patches.shape[0]
    C_out = layer["w"].shape[1]
    total = (_nbytes(patches.shape, patches.dtype) + _nbytes(layer["w"].shape, layer["w"].dtype)
             + _nbytes(layer["b"].shape, layer["b"].dtype) + _nbytes((M, C_out), jnp.bfloat16))
    out = pl.pallas_call(
        _conv_lrelu_kernel,
        out_shape=jax.ShapeDtypeStruct((M, C_out), jnp.bfloat16),
        in_specs=_vmem_specs(3),
        out_specs=pl.BlockSpec(memory_space=pltpu.MemorySpace.VMEM),
        compiler_params=pltpu.CompilerParams(vmem_limit_bytes=_vmem_limit(total)),
    )(patches, layer["w"], layer["b"])
    return out.reshape(N, Ho, Wo, C_out)


def conv_bn_lrelu(x_nhwc, layer):
    N = x_nhwc.shape[0]
    patches, Ho, Wo = im2col_nhwc(x_nhwc)
    M = patches.shape[0]
    C_out = layer["w"].shape[1]
    total = (_nbytes(patches.shape, patches.dtype) + _nbytes(layer["w"].shape, layer["w"].dtype)
             + 3 * _nbytes((1, C_out), jnp.float32) + _nbytes((M, C_out), jnp.bfloat16))
    out = pl.pallas_call(
        _conv_bn_lrelu_kernel,
        out_shape=jax.ShapeDtypeStruct((M, C_out), jnp.bfloat16),
        in_specs=_vmem_specs(5),
        out_specs=pl.BlockSpec(memory_space=pltpu.MemorySpace.VMEM),
        compiler_params=pltpu.CompilerParams(vmem_limit_bytes=_vmem_limit(total)),
    )(patches, layer["w"], layer["b"], layer["g"], layer["be"])
    return out.reshape(N, Ho, Wo, C_out)


def conv_bn_lrelu_linear(x_nhwc, layer, lin):
    N = x_nhwc.shape[0]
    patches, _, _ = im2col_nhwc(x_nhwc)
    M = patches.shape[0]
    C_out = layer["w"].shape[1]
    total = (_nbytes(patches.shape, patches.dtype) + _nbytes(layer["w"].shape, layer["w"].dtype)
             + 3 * _nbytes((1, C_out), jnp.float32)
             + _nbytes(lin["wt"].shape, lin["wt"].dtype) + _nbytes(lin["sel"].shape, lin["sel"].dtype)
             + _nbytes((M, C_out), jnp.float32))
    return pl.pallas_call(
        _conv_bn_lrelu_linear_kernel,
        out_shape=jax.ShapeDtypeStruct((N, 1), jnp.float32),
        in_specs=_vmem_specs(8),
        out_specs=pl.BlockSpec(memory_space=pltpu.MemorySpace.VMEM),
        compiler_params=pltpu.CompilerParams(vmem_limit_bytes=_vmem_limit(total)),
    )(patches, layer["w"], layer["b"], layer["g"], layer["be"],
      lin["wt"], lin["sel"], lin["b"])


def discriminator_forward(x_nchw, params):
    x = jnp.transpose(x_nchw, (0, 2, 3, 1)).astype(jnp.bfloat16)  # NCHW -> NHWC + bf16, once
    x = conv_lrelu(x, params["c1"])
    x = conv_bn_lrelu(x, params["c2"])
    x = conv_bn_lrelu(x, params["c3"])
    return conv_bn_lrelu_linear(x, params["c4"], params["lin"])


# ------------------------- parameter construction --------------------------

def init_params(key, batch, in_h, in_w):
    """All layout prep (K ordering, bf16 cast, torch NCHW-flatten permutation of the
    linear weight, per-sample tiling / selection matrix) happens here, ONCE."""
    ks = jax.random.split(key, 10)

    def conv_params(kw, kb, cin, cout):
        w = jax.random.normal(kw, (cout, cin, 3, 3), jnp.float32) / jnp.sqrt(cin * 9.0)
        b = 0.1 * jax.random.normal(kb, (cout,), jnp.float32)
        # torch (C_out, C_in, kh, kw) -> matmul layout rows ordered (kh, kw, c_in).
        w_mat = jnp.transpose(w, (2, 3, 1, 0)).reshape(9 * cin, cout).astype(jnp.bfloat16)
        return {"w": w_mat, "b": b.reshape(1, cout).astype(jnp.float32)}

    def bn_params(c):
        return {"g": jnp.ones((1, c), jnp.float32), "be": jnp.zeros((1, c), jnp.float32)}

    p = {
        "c1": conv_params(ks[0], ks[1], 1, 32),
        "c2": {**conv_params(ks[2], ks[3], 32, 64), **bn_params(64)},
        "c3": {**conv_params(ks[4], ks[5], 64, 128), **bn_params(128)},
        "c4": {**conv_params(ks[6], ks[7], 128, 256), **bn_params(256)},
    }

    # LazyLinear: infer flattened feature size from the conv-stack geometry.
    h, w = in_h, in_w
    for _ in range(4):
        h = (h - 3) // 2 + 1
        w = (w - 3) // 2 + 1
    c4 = 256
    feat = c4 * h * w
    wl = jax.random.normal(ks[8], (feat, 1), jnp.float32) / jnp.sqrt(feat)  # torch (c,h,w) row order
    bl = 0.1 * jax.random.normal(ks[9], (1,), jnp.float32)
    # Permute rows from torch's NCHW `x.view(N,-1)` (c,h,w) order to our NHWC row layout
    # (h,w,c); tile per sample so the kernel does a plain elementwise multiply.
    w_hw_c = jnp.transpose(wl.reshape(c4, h, w), (1, 2, 0)).reshape(h * w, c4)
    wt = jnp.tile(w_hw_c, (batch, 1)).astype(jnp.float32)                    # (batch*h*w, c4)
    sel = jnp.repeat(jnp.eye(batch, dtype=jnp.float32), h * w, axis=1)       # (batch, batch*h*w)
    p["lin"] = {"wt": wt, "sel": sel, "b": bl.reshape(1, 1).astype(jnp.float32)}
    return p


if __name__ == "__main__":
    key = jax.random.PRNGKey(0)
    k_x, k_p = jax.random.split(key)
    # small input consistent with the module: N=2, C=1, 48x48 (survives 4 stride-2 valid convs)
    N, H, W = 2, 48, 48
    x = jax.random.normal(k_x, (N, 1, H, W), jnp.float32)
    params = init_params(k_p, N, H, W)

    fwd = jax.jit(discriminator_forward)
    logits = fwd(x, params)
    jax.block_until_ready(logits)
    assert logits.shape == (N, 1), logits.shape
    assert bool(jnp.all(jnp.isfinite(logits)))
    print("KERNEL_OK")
</pallas_src>

<mosaic_0001>
module attributes {stable_mosaic.version = 11 : i64} {
  func.func @_conv_lrelu_kernel(%arg0: memref<1058x9xbf16, #tpu.memory_space<vmem>>, %arg1: memref<9x32xbf16, #tpu.memory_space<vmem>>, %arg2: memref<1x32xf32, #tpu.memory_space<vmem>>, %arg3: memref<1058x32xbf16, #tpu.memory_space<vmem>>) attributes {dimension_semantics = [], scalar_prefetch = 0 : i64, scratch_operands = 0 : i64, tpu.core_type = #tpu.core_type<tc>} {
    %c0 = arith.constant 0 : index
    %c0_0 = arith.constant 0 : index
    %0 = vector.load %arg0[%c0, %c0_0] : memref<1058x9xbf16, #tpu.memory_space<vmem>>, vector<1058x9xbf16>
    %c0_1 = arith.constant 0 : index
    %c0_2 = arith.constant 0 : index
    %1 = vector.load %arg1[%c0_1, %c0_2] : memref<9x32xbf16, #tpu.memory_space<vmem>>, vector<9x32xbf16>
    %cst = arith.constant dense<0.000000e+00> : vector<1058x32xf32>
    %2 = tpu.matmul %0, %1, %cst {dimension_numbers = #tpu.dot_dimension_numbers<[1], [0], [0], [1], [0, 0, 1, 1], [], []>} : vector<1058x9xbf16>, vector<9x32xbf16>, vector<1058x32xf32> -> vector<1058x32xf32>
    %c0_3 = arith.constant 0 : index
    %c0_4 = arith.constant 0 : index
    %3 = vector.load %arg2[%c0_3, %c0_4] : memref<1x32xf32, #tpu.memory_space<vmem>>, vector<1x32xf32>
    %4 = vector.broadcast %3 : vector<1x32xf32> to vector<1058x32xf32>
    %5 = arith.addf %2, %4 : vector<1058x32xf32>
    %cst_5 = arith.constant 0.000000e+00 : f32
    %6 = vector.broadcast %cst_5 : f32 to vector<1058x32xf32>
    %7 = arith.cmpf ogt, %5, %6 : vector<1058x32xf32>
    %cst_6 = arith.constant 2.000000e-02 : f32
    %8 = vector.broadcast %cst_6 : f32 to vector<1058x32xf32>
    %9 = arith.mulf %8, %5 : vector<1058x32xf32>
    %10 = arith.select %7, %5, %9 : vector<1058x32xi1>, vector<1058x32xf32>
    %11 = arith.truncf %10 : vector<1058x32xf32> to vector<1058x32xbf16>
    %c0_7 = arith.constant 0 : index
    %c0_8 = arith.constant 0 : index
    %12 = vector.load %arg3[%c0_7, %c0_8] : memref<1058x32xbf16, #tpu.memory_space<vmem>>, vector<1058x32xbf16>
    tpu.vector_store %arg3[%c0_7, %c0_8], %11 {strides = array<i32>} : memref<1058x32xbf16, #tpu.memory_space<vmem>>, vector<1058x32xbf16>,
    return
  }
}

module attributes {stable_mosaic.version = 11 : i64} {
  func.func @_conv_bn_lrelu_kernel(%arg0: memref<242x288xbf16, #tpu.memory_space<vmem>>, %arg1: memref<288x64xbf16, #tpu.memory_space<vmem>>, %arg2: memref<1x64xf32, #tpu.memory_space<vmem>>, %arg3: memref<1x64xf32, #tpu.memory_space<vmem>>, %arg4: memref<1x64xf32, #tpu.memory_space<vmem>>, %arg5: memref<242x64xbf16, #tpu.memory_space<vmem>>) attributes {dimension_semantics = [], scalar_prefetch = 0 : i64, scratch_operands = 0 : i64, tpu.core_type = #tpu.core_type<tc>} {
    %c0 = arith.constant 0 : index
    %c0_0 = arith.constant 0 : index
    %0 = vector.load %arg0[%c0, %c0_0] : memref<242x288xbf16, #tpu.memory_space<vmem>>, vector<242x288xbf16>
    %c0_1 = arith.constant 0 : index
    %c0_2 = arith.constant 0 : index
    %1 = vector.load %arg1[%c0_1, %c0_2] : memref<288x64xbf16, #tpu.memory_space<vmem>>, vector<288x64xbf16>
    %cst = arith.constant dense<0.000000e+00> : vector<242x64xf32>
    %2 = tpu.matmul %0, %1, %cst {dimension_numbers = #tpu.dot_dimension_numbers<[1], [0], [0], [1], [0, 0, 1, 1], [], []>} : vector<242x288xbf16>, vector<288x64xbf16>, vector<242x64xf32> -> vector<242x64xf32>
    %c0_3 = arith.constant 0 : index
    %c0_4 = arith.constant 0 : index
    %3 = vector.load %arg2[%c0_3, %c0_4] : memref<1x64xf32, #tpu.memory_space<vmem>>, vector<1x64xf32>
    %4 = vector.broadcast %3 : vector<1x64xf32> to vector<242x64xf32>
    %5 = arith.addf %2, %4 : vector<242x64xf32>
    %cst_5 = arith.constant dense<0.000000e+00> : vector<64xf32>
    %6 = vector.multi_reduction <add>, %5, %cst_5 [0] : vector<242x64xf32> to vector<64xf32>
    %7 = vector.shape_cast %6 : vector<64xf32> to vector<1x64xf32>
    %cst_6 = arith.constant 2.420000e+02 : f32
    %8 = vector.broadcast %cst_6 : f32 to vector<1x64xf32>
    %9 = arith.divf %7, %8 : vector<1x64xf32>
    %10 = arith.mulf %5, %5 : vector<242x64xf32>
    %cst_7 = arith.constant dense<0.000000e+00> : vector<64xf32>
    %11 = vector.multi_reduction <add>, %10, %cst_7 [0] : vector<242x64xf32> to vector<64xf32>
    %12 = vector.shape_cast %11 : vector<64xf32> to vector<1x64xf32>
    %cst_8 = arith.constant 2.420000e+02 : f32
    %13 = vector.broadcast %cst_8 : f32 to vector<1x64xf32>
    %14 = arith.divf %12, %13 : vector<1x64xf32>
    %15 = arith.mulf %9, %9 : vector<1x64xf32>
    %16 = arith.subf %14, %15 : vector<1x64xf32>
    %cst_9 = arith.constant 0.000000e+00 : f32
    %17 = vector.broadcast %cst_9 : f32 to vector<1x64xf32>
    %18 = arith.maximumf %16, %17 : vector<1x64xf32>
    %cst_10 = arith.constant 9.99999974E-6 : f32
    %19 = vector.broadcast %cst_10 : f32 to vector<1x64xf32>
    %20 = arith.addf %18, %19 : vector<1x64xf32>
    %21 = math.rsqrt %20 : vector<1x64xf32>
    %c0_11 = arith.constant 0 : index
    %c0_12 = arith.constant 0 : index
    %22 = vector.load %arg3[%c0_11, %c0_12] : memref<1x64xf32, #tpu.memory_space<vmem>>, vector<1x64xf32>
    %23 = arith.mulf %21, %22 : vector<1x64xf32>
    %c0_13 = arith.constant 0 : index
    %c0_14 = arith.constant 0 : index
    %24 = vector.load %arg4[%c0_13, %c0_14] : memref<1x64xf32, #tpu.memory_space<vmem>>, vector<1x64xf32>
    %25 = arith.mulf %9, %23 : vector<1x64xf32>
    %26 = arith.subf %24, %25 : vector<1x64xf32>
    %27 = vector.broadcast %23 : vector<1x64xf32> to vector<242x64xf32>
    %28 = arith.mulf %5, %27 : vector<242x64xf32>
    %29 = vector.broadcast %26 : vector<1x64xf32> to vector<242x64xf32>
    %30 = arith.addf %28, %29 : vector<242x64xf32>
    %cst_15 = arith.constant 0.000000e+00 : f32
    %31 = vector.broadcast %cst_15 : f32 to vector<242x64xf32>
    %32 = arith.cmpf ogt, %30, %31 : vector<242x64xf32>
    %cst_16 = arith.constant 2.000000e-02 : f32
    %33 = vector.broadcast %cst_16 : f32 to vector<242x64xf32>
    %34 = arith.mulf %33, %30 : vector<242x64xf32>
    %35 = arith.select %32, %30, %34 : vector<242x64xi1>, vector<242x64xf32>
    %36 = arith.truncf %35 : vector<242x64xf32> to vector<242x64xbf16>
    %c0_17 = arith.constant 0 : index
    %c0_18 = arith.constant 0 : index
    %37 = vector.load %arg5[%c0_17, %c0_18] : memref<242x64xbf16, #tpu.memory_space<vmem>>, vector<242x64xbf16>
    tpu.vector_store %arg5[%c0_17, %c0_18], %36 {strides = array<i32>} : memref<242x64xbf16, #tpu.memory_space<vmem>>, vector<242x64xbf16>,
    return
  }
}

module attributes {stable_mosaic.version = 11 : i64} {
  func.func @_conv_bn_lrelu_kernel(%arg0: memref<50x576xbf16, #tpu.memory_space<vmem>>, %arg1: memref<576x128xbf16, #tpu.memory_space<vmem>>, %arg2: memref<1x128xf32, #tpu.memory_space<vmem>>, %arg3: memref<1x128xf32, #tpu.memory_space<vmem>>, %arg4: memref<1x128xf32, #tpu.memory_space<vmem>>, %arg5: memref<50x128xbf16, #tpu.memory_space<vmem>>) attributes {dimension_semantics = [], scalar_prefetch = 0 : i64, scratch_operands = 0 : i64, tpu.core_type = #tpu.core_type<tc>} {
    %c0 = arith.constant 0 : index
    %c0_0 = arith.constant 0 : index
    %0 = vector.load %arg0[%c0, %c0_0] : memref<50x576xbf16, #tpu.memory_space<vmem>>, vector<50x576xbf16>
    %c0_1 = arith.constant 0 : index
    %c0_2 = arith.constant 0 : index
    %1 = vector.load %arg1[%c0_1, %c0_2] : memref<576x128xbf16, #tpu.memory_space<vmem>>, vector<576x128xbf16>
    %cst = arith.constant dense<0.000000e+00> : vector<50x128xf32>
    %2 = tpu.matmul %0, %1, %cst {dimension_numbers = #tpu.dot_dimension_numbers<[1], [0], [0], [1], [0, 0, 1, 1], [], []>} : vector<50x576xbf16>, vector<576x128xbf16>, vector<50x128xf32> -> vector<50x128xf32>
    %c0_3 = arith.constant 0 : index
    %c0_4 = arith.constant 0 : index
    %3 = vector.load %arg2[%c0_3, %c0_4] : memref<1x128xf32, #tpu.memory_space<vmem>>, vector<1x128xf32>
    %4 = vector.broadcast %3 : vector<1x128xf32> to vector<50x128xf32>
    %5 = arith.addf %2, %4 : vector<50x128xf32>
    %cst_5 = arith.constant dense<0.000000e+00> : vector<128xf32>
    %6 = vector.multi_reduction <add>, %5, %cst_5 [0] : vector<50x128xf32> to vector<128xf32>
    %7 = vector.shape_cast %6 : vector<128xf32> to vector<1x128xf32>
    %cst_6 = arith.constant 5.000000e+01 : f32
    %8 = vector.broadcast %cst_6 : f32 to vector<1x128xf32>
    %9 = arith.divf %7, %8 : vector<1x128xf32>
    %10 = arith.mulf %5, %5 : vector<50x128xf32>
    %cst_7 = arith.constant dense<0.000000e+00> : vector<128xf32>
    %11 = vector.multi_reduction <add>, %10, %cst_7 [0] : vector<50x128xf32> to vector<128xf32>
    %12 = vector.shape_cast %11 : vector<128xf32> to vector<1x128xf32>
    %cst_8 = arith.constant 5.000000e+01 : f32
    %13 = vector.broadcast %cst_8 : f32 to vector<1x128xf32>
    %14 = arith.divf %12, %13 : vector<1x128xf32>
    %15 = arith.mulf %9, %9 : vector<1x128xf32>
    %16 = arith.subf %14, %15 : vector<1x128xf32>
    %cst_9 = arith.constant 0.000000e+00 : f32
    %17 = vector.broadcast %cst_9 : f32 to vector<1x128xf32>
    %18 = arith.maximumf %16, %17 : vector<1x128xf32>
    %cst_10 = arith.constant 9.99999974E-6 : f32
    %19 = vector.broadcast %cst_10 : f32 to vector<1x128xf32>
    %20 = arith.addf %18, %19 : vector<1x128xf32>
    %21 = math.rsqrt %20 : vector<1x128xf32>
    %c0_11 = arith.constant 0 : index
    %c0_12 = arith.constant 0 : index
    %22 = vector.load %arg3[%c0_11, %c0_12] : memref<1x128xf32, #tpu.memory_space<vmem>>, vector<1x128xf32>
    %23 = arith.mulf %21, %22 : vector<1x128xf32>
    %c0_13 = arith.constant 0 : index
    %c0_14 = arith.constant 0 : index
    %24 = vector.load %arg4[%c0_13, %c0_14] : memref<1x128xf32, #tpu.memory_space<vmem>>, vector<1x128xf32>
    %25 = arith.mulf %9, %23 : vector<1x128xf32>
    %26 = arith.subf %24, %25 : vector<1x128xf32>
    %27 = vector.broadcast %23 : vector<1x128xf32> to vector<50x128xf32>
    %28 = arith.mulf %5, %27 : vector<50x128xf32>
    %29 = vector.broadcast %26 : vector<1x128xf32> to vector<50x128xf32>
    %30 = arith.addf %28, %29 : vector<50x128xf32>
    %cst_15 = arith.constant 0.000000e+00 : f32
    %31 = vector.broadcast %cst_15 : f32 to vector<50x128xf32>
    %32 = arith.cmpf ogt, %30, %31 : vector<50x128xf32>
    %cst_16 = arith.constant 2.000000e-02 : f32
    %33 = vector.broadcast %cst_16 : f32 to vector<50x128xf32>
    %34 = arith.mulf %33, %30 : vector<50x128xf32>
    %35 = arith.select %32, %30, %34 : vector<50x128xi1>, vector<50x128xf32>
    %36 = arith.truncf %35 : vector<50x128xf32> to vector<50x128xbf16>
    %c0_17 = arith.constant 0 : index
    %c0_18 = arith.constant 0 : index
    %37 = vector.load %arg5[%c0_17, %c0_18] : memref<50x128xbf16, #tpu.memory_space<vmem>>, vector<50x128xbf16>
    tpu.vector_store %arg5[%c0_17, %c0_18], %36 {strides = array<i32>} : memref<50x128xbf16, #tpu.memory_space<vmem>>, vector<50x128xbf16>,
    return
  }
}

module attributes {stable_mosaic.version = 11 : i64} {
  func.func @_conv_bn_lrelu_linear_kernel(%arg0: memref<8x1152xbf16, #tpu.memory_space<vmem>>, %arg1: memref<1152x256xbf16, #tpu.memory_space<vmem>>, %arg2: memref<1x256xf32, #tpu.memory_space<vmem>>, %arg3: memref<1x256xf32, #tpu.memory_space<vmem>>, %arg4: memref<1x256xf32, #tpu.memory_space<vmem>>, %arg5: memref<8x256xf32, #tpu.memory_space<vmem>>, %arg6: memref<2x8xf32, #tpu.memory_space<vmem>>, %arg7: memref<1x1xf32, #tpu.memory_space<vmem>>, %arg8: memref<2x1xf32, #tpu.memory_space<vmem>>) attributes {dimension_semantics = [], scalar_prefetch = 0 : i64, scratch_operands = 0 : i64, tpu.core_type = #tpu.core_type<tc>} {
    %c0 = arith.constant 0 : index
    %c0_0 = arith.constant 0 : index
    %0 = vector.load %arg0[%c0, %c0_0] : memref<8x1152xbf16, #tpu.memory_space<vmem>>, vector<8x1152xbf16>
    %c0_1 = arith.constant 0 : index
    %c0_2 = arith.constant 0 : index
    %1 = vector.load %arg1[%c0_1, %c0_2] : memref<1152x256xbf16, #tpu.memory_space<vmem>>, vector<1152x256xbf16>
    %cst = arith.constant dense<0.000000e+00> : vector<8x256xf32>
    %2 = tpu.matmul %0, %1, %cst {dimension_numbers = #tpu.dot_dimension_numbers<[1], [0], [0], [1], [0, 0, 1, 1], [], []>} : vector<8x1152xbf16>, vector<1152x256xbf16>, vector<8x256xf32> -> vector<8x256xf32>
    %c0_3 = arith.constant 0 : index
    %c0_4 = arith.constant 0 : index
    %3 = vector.load %arg2[%c0_3, %c0_4] : memref<1x256xf32, #tpu.memory_space<vmem>>, vector<1x256xf32>
    %4 = vector.broadcast %3 : vector<1x256xf32> to vector<8x256xf32>
    %5 = arith.addf %2, %4 : vector<8x256xf32>
    %cst_5 = arith.constant dense<0.000000e+00> : vector<256xf32>
    %6 = vector.multi_reduction <add>, %5, %cst_5 [0] : vector<8x256xf32> to vector<256xf32>
    %7 = vector.shape_cast %6 : vector<256xf32> to vector<1x256xf32>
    %cst_6 = arith.constant 8.000000e+00 : f32
    %8 = vector.broadcast %cst_6 : f32 to vector<1x256xf32>
    %9 = arith.divf %7, %8 : vector<1x256xf32>
    %10 = arith.mulf %5, %5 : vector<8x256xf32>
    %cst_7 = arith.constant dense<0.000000e+00> : vector<256xf32>
    %11 = vector.multi_reduction <add>, %10, %cst_7 [0] : vector<8x256xf32> to vector<256xf32>
    %12 = vector.shape_cast %11 : vector<256xf32> to vector<1x256xf32>
    %cst_8 = arith.constant 8.000000e+00 : f32
    %13 = vector.broadcast %cst_8 : f32 to vector<1x256xf32>
    %14 = arith.divf %12, %13 : vector<1x256xf32>
    %15 = arith.mulf %9, %9 : vector<1x256xf32>
    %16 = arith.subf %14, %15 : vector<1x256xf32>
    %cst_9 = arith.constant 0.000000e+00 : f32
    %17 = vector.broadcast %cst_9 : f32 to vector<1x256xf32>
    %18 = arith.maximumf %16, %17 : vector<1x256xf32>
    %cst_10 = arith.constant 9.99999974E-6 : f32
    %19 = vector.broadcast %cst_10 : f32 to vector<1x256xf32>
    %20 = arith.addf %18, %19 : vector<1x256xf32>
    %21 = math.rsqrt %20 : vector<1x256xf32>
    %c0_11 = arith.constant 0 : index
    %c0_12 = arith.constant 0 : index
    %22 = vector.load %arg3[%c0_11, %c0_12] : memref<1x256xf32, #tpu.memory_space<vmem>>, vector<1x256xf32>
    %23 = arith.mulf %21, %22 : vector<1x256xf32>
    %c0_13 = arith.constant 0 : index
    %c0_14 = arith.constant 0 : index
    %24 = vector.load %arg4[%c0_13, %c0_14] : memref<1x256xf32, #tpu.memory_space<vmem>>, vector<1x256xf32>
    %25 = arith.mulf %9, %23 : vector<1x256xf32>
    %26 = arith.subf %24, %25 : vector<1x256xf32>
    %27 = vector.broadcast %23 : vector<1x256xf32> to vector<8x256xf32>
    %28 = arith.mulf %5, %27 : vector<8x256xf32>
    %29 = vector.broadcast %26 : vector<1x256xf32> to vector<8x256xf32>
    %30 = arith.addf %28, %29 : vector<8x256xf32>
    %cst_15 = arith.constant 0.000000e+00 : f32
    %31 = vector.broadcast %cst_15 : f32 to vector<8x256xf32>
    %32 = arith.cmpf ogt, %30, %31 : vector<8x256xf32>
    %cst_16 = arith.constant 2.000000e-02 : f32
    %33 = vector.broadcast %cst_16 : f32 to vector<8x256xf32>
    %34 = arith.mulf %33, %30 : vector<8x256xf32>
    %35 = arith.select %32, %30, %34 : vector<8x256xi1>, vector<8x256xf32>
    %c0_17 = arith.constant 0 : index
    %c0_18 = arith.constant 0 : index
    %36 = vector.load %arg5[%c0_17, %c0_18] : memref<8x256xf32, #tpu.memory_space<vmem>>, vector<8x256xf32>
    %37 = arith.mulf %35, %36 : vector<8x256xf32>
    %c0_19 = arith.constant 0 : index
    %c0_20 = arith.constant 0 : index
    %38 = vector.load %arg6[%c0_19, %c0_20] : memref<2x8xf32, #tpu.memory_space<vmem>>, vector<2x8xf32>
    %cst_21 = arith.constant dense<0.000000e+00> : vector<2x256xf32>
    %39 = tpu.matmul %38, %37, %cst_21 {dimension_numbers = #tpu.dot_dimension_numbers<[1], [0], [0], [1], [0, 0, 1, 1], [], []>} : vector<2x8xf32>, vector<8x256xf32>, vector<2x256xf32> -> vector<2x256xf32>
    %cst_22 = arith.constant dense<0.000000e+00> : vector<2xf32>
    %40 = vector.multi_reduction <add>, %39, %cst_22 [1] : vector<2x256xf32> to vector<2xf32>
    %41 = vector.shape_cast %40 : vector<2xf32> to vector<2x1xf32>
    %c0_23 = arith.constant 0 : index
    %c0_24 = arith.constant 0 : index
    %42 = vector.load %arg7[%c0_23, %c0_24] : memref<1x1xf32, #tpu.memory_space<vmem>>, vector<1x1xf32>
    %43 = vector.broadcast %42 : vector<1x1xf32> to vector<2x1xf32>
    %44 = arith.addf %41, %43 : vector<2x1xf32>
    %c0_25 = arith.constant 0 : index
    %c0_26 = arith.constant 0 : index
    %45 = vector.load %arg8[%c0_25, %c0_26] : memref<2x1xf32, #tpu.memory_space<vmem>>, vector<2x1xf32>
    tpu.vector_store %arg8[%c0_25, %c0_26], %44 {strides = array<i32>} : memref<2x1xf32, #tpu.memory_space<vmem>>, vector<2x1xf32>,
    return
  }
}

</mosaic_0001>

<llo_original>
// kernel: discriminator_forward.4
$region0: #{discriminator_forward.4}
  #allocation0 [shape = 'u32[]', space=smem, size = 0x4, offset = 0x4, fixed_abs, tag = 'smem constant byte address 0x4 - core index']
  #allocation1 [shape = 'u32[144,128]{1,0:T(1,128)}', space=vmem, size = 0x12000, scoped, tag = 'internal scratch']
  %s0 = inlined_call_operand.vmem [shape: bf16[1058,9], index: 0, kind: input, shape index: {}]
  %s1 = inlined_call_operand.hbm [shape: bf16[9,32], index: 1, kind: input, shape index: {}]
  %s2 = inlined_call_operand.hbm [shape: f32[1,32], index: 2, kind: input, shape index: {}]
  %s3 = inlined_call_operand.vmem [shape: bf16[1058,32], index: 3, kind: output, shape index: {}]
  %s4 = sld [smem:[#allocation0]]
  $region30: #{discriminator_forward.4} parent=0
    _
  %s6 = ssub.s32 1, %s4
  %s7 = scalar_select 0, %s6, %s4
  $region1: #{discriminator_forward.4} parent=0
    #allocation2 [shape = 'u8[4096]{0}', space=vmem, size = 0x1000, scoped, tag = 'input window, operand 1, single buffered']
    #allocation3 [shape = 's32[1]{0}', space=sflag, size = 0x4, scoped, tag = 'scoped memory for discriminator_forward.4']
    #allocation4 [shape = 'u8[512]{0}', space=vmem, size = 0x400, scoped, tag = 'input window, operand 2, single buffered']
    #allocation5 [shape = 's32[1]{0}', space=sflag, size = 0x4, scoped, tag = 'scoped memory for discriminator_forward.4']
    %8 = vsyncpa [#allocation3], 0
    %9 = vsyncpa [#allocation5], 0
    // Predicated region
    $region2: #{discriminator_forward.4} parent=1 // pred_check
      _
    $region3: #{discriminator_forward.4} parent=1 // pred_check_branch
      %11 = sbr.rel (0) target = $region5
    $region4: #{discriminator_forward.4} parent=1 // pred_region
      _
    $region5: #{discriminator_forward.4} parent=1 // pred_fallthru
      _
    // Predicated region
    $region6: #{discriminator_forward.4} parent=1 // pred_check
      _
    $region7: #{discriminator_forward.4} parent=1 // pred_check_branch
      %13 = sbr.rel (0) target = $region9
    $region8: #{discriminator_forward.4} parent=1 // pred_region
      %s15 = ssub.s32 128, 128
      %16 = vsyncadd [#allocation3], %s15
      %s17 = sshll.u32 [#allocation2], 4
      %s18 = int_to_ptr.vmem [resolvable:$true] %s17
      %23 = dma.hbm_to_vmem [thread:$0]  %s1, 128, %s18, [#allocation3], 64, 64, 4
    $region9: #{discriminator_forward.4} parent=1 // pred_fallthru
      _
    // Predicated region
    $region10: #{discriminator_forward.4} parent=1 // pred_check
      _
    $region11: #{discriminator_forward.4} parent=1 // pred_check_branch
      %25 = sbr.rel (0) target = $region13
    $region12: #{discriminator_forward.4} parent=1 // pred_region
      %s27 = ssub.s32 16, 16
      %28 = vsyncadd [#allocation5], %s27
      %s30 = sshll.u32 [#allocation4], 4
      %s31 = int_to_ptr.vmem [resolvable:$true] %s30
      %33 = dma.hbm_to_vmem [thread:$0]  %s2, 16, %s31, [#allocation5]
    $region13: #{discriminator_forward.4} parent=1 // pred_fallthru
      _
    // Predicated region
    $region14: #{discriminator_forward.4} parent=1 // pred_check
      _
    $region15: #{discriminator_forward.4} parent=1 // pred_check_branch
      %35 = sbr.rel (0) target = $region17
    $region16: #{discriminator_forward.4} parent=1 // pred_region
      %36 = dma.done [#allocation3], 128
    $region17: #{discriminator_forward.4} parent=1 // pred_fallthru
      _
    // Predicated region
    $region18: #{discriminator_forward.4} parent=1 // pred_check
      _
    $region19: #{discriminator_forward.4} parent=1 // pred_check_branch
      %38 = sbr.rel (0) target = $region21
    $region20: #{discriminator_forward.4} parent=1 // pred_region
      %39 = dma.done [#allocation5], 16
    $region21: #{discriminator_forward.4} parent=1 // pred_fallthru
      _
    %v41 = vld [vmem:[%s0] sm:$0xf]
    %v42 = vld [vmem:[%s0 + $0x4] sm:$0xf]
    %v43 = vld [vmem:[%s0 + $0x8] sm:$0xf]
    %v44 = vld [vmem:[%s0 + $0xc] sm:$0xf]
    %v45 = vld [vmem:[%s0 + $0x10] sm:$0xf]
    %v46 = vld [vmem:[%s0 + $0x14] sm:$0xf]
    %v47 = vld [vmem:[%s0 + $0x18] sm:$0xf]
    %v48 = vld [vmem:[%s0 + $0x1c] sm:$0xf]
    %v49 = vld [vmem:[%s0 + $0x20] sm:$0xf]
    %v50 = vld [vmem:[%s0 + $0x24] sm:$0xf]
    %v51 = vld [vmem:[%s0 + $0x28] sm:$0xf]
    %v52 = vld [vmem:[%s0 + $0x2c] sm:$0xf]
    %v53 = vld [vmem:[%s0 + $0x30] sm:$0xf]
    %v54 = vld [vmem:[%s0 + $0x34] sm:$0xf]
    %v55 = vld [vmem:[%s0 + $0x38] sm:$0xf]
    %v56 = vld [vmem:[%s0 + $0x3c] sm:$0xf]
    %v57 = vld [vmem:[%s0 + $0x40] sm:$0xf]
    %v58 = vld [vmem:[%s0 + $0x44] sm:$0xf]
    %v59 = vld [vmem:[%s0 + $0x48] sm:$0xf]
    %v60 = vld [vmem:[%s0 + $0x4c] sm:$0xf]
    %v61 = vld [vmem:[%s0 + $0x50] sm:$0xf]
    %v62 = vld [vmem:[%s0 + $0x54] sm:$0xf]
    %v63 = vld [vmem:[%s0 + $0x58] sm:$0xf]
    %v64 = vld [vmem:[%s0 + $0x5c] sm:$0xf]
    %v65 = vld [vmem:[%s0 + $0x60] sm:$0xf]
    %v66 = vld [vmem:[%s0 + $0x64] sm:$0xf]
    %v67 = vld [vmem:[%s0 + $0x68] sm:$0xf]
    %v68 = vld [vmem:[%s0 + $0x6c] sm:$0xf]
    %v69 = vld [vmem:[%s0 + $0x70] sm:$0xf]
    %v70 = vld [vmem:[%s0 + $0x74] sm:$0xf]
    %v71 = vld [vmem:[%s0 + $0x78] sm:$0xf]
    %v72 = vld [vmem:[%s0 + $0x7c] sm:$0xf]
    %v73 = vld [vmem:[%s0 + $0x80] sm:$0xf]
    %v74 = vld [vmem:[%s0 + $0x84] sm:$0xf]
    %v75 = vld [vmem:[%s0 + $0x88] sm:$0xf]
    %v76 = vld [vmem:[%s0 + $0x8c] sm:$0xf]
    %v77 = vld [vmem:[%s0 + $0x90] sm:$0xf]
    %v78 = vld [vmem:[%s0 + $0x94] sm:$0xf]
    %v79 = vld [vmem:[%s0 + $0x98] sm:$0xf]
    %v80 = vld [vmem:[%s0 + $0x9c] sm:$0xf]
    %v81 = vld [vmem:[%s0 + $0xa0] sm:$0xf]
    %v82 = vld [vmem:[%s0 + $0xa4] sm:$0xf]
    %v83 = vld [vmem:[%s0 + $0xa8] sm:$0xf]
    %v84 = vld [vmem:[%s0 + $0xac] sm:$0xf]
    %v85 = vld [vmem:[%s0 + $0xb0] sm:$0xf]
    %v86 = vld [vmem:[%s0 + $0xb4] sm:$0xf]
    %v87 = vld [vmem:[%s0 + $0xb8] sm:$0xf]
    %v88 = vld [vmem:[%s0 + $0xbc] sm:$0xf]
    %v89 = vld [vmem:[%s0 + $0xc0] sm:$0xf]
    %v90 = vld [vmem:[%s0 + $0xc4] sm:$0xf]
    %v91 = vld [vmem:[%s0 + $0xc8] sm:$0xf]
    %v92 = vld [vmem:[%s0 + $0xcc] sm:$0xf]
    %v93 = vld [vmem:[%s0 + $0xd0] sm:$0xf]
    %v94 = vld [vmem:[%s0 + $0xd4] sm:$0xf]
    %v95 = vld [vmem:[%s0 + $0xd8] sm:$0xf]
    %v96 = vld [vmem:[%s0 + $0xdc] sm:$0xf]
    %v97 = vld [vmem:[%s0 + $0xe0] sm:$0xf]
    %v98 = vld [vmem:[%s0 + $0xe4] sm:$0xf]
    %v99 = vld [vmem:[%s0 + $0xe8] sm:$0xf]
    %v100 = vld [vmem:[%s0 + $0xec] sm:$0xf]
    %v101 = vld [vmem:[%s0 + $0xf0] sm:$0xf]
    %v102 = vld [vmem:[%s0 + $0xf4] sm:$0xf]
    %v103 = vld [vmem:[%s0 + $0xf8] sm:$0xf]
    %v104 = vld [vmem:[%s0 + $0xfc] sm:$0xf]
    %v105 = vld [vmem:[%s0 + $0x100] sm:$0xf]
    %v106 = vld [vmem:[%s0 + $0x104] sm:$0xf]
    %v107 = vld [vmem:[%s0 + $0x108] sm:$0xf]
    %v108 = vld [vmem:[%s0 + $0x10c] sm:$0xf]
    %v109 = vld [vmem:[%s0 + $0x110] sm:$0xf]
    %v110 = vld [vmem:[%s0 + $0x114] sm:$0xf]
    %v111 = vld [vmem:[%s0 + $0x118] sm:$0xf]
    %v112 = vld [vmem:[%s0 + $0x11c] sm:$0xf]
    %v113 = vld [vmem:[%s0 + $0x120] sm:$0xf]
    %v114 = vld [vmem:[%s0 + $0x124] sm:$0xf]
    %v115 = vld [vmem:[%s0 + $0x128] sm:$0xf]
    %v116 = vld [vmem:[%s0 + $0x12c] sm:$0xf]
    %v117 = vld [vmem:[%s0 + $0x130] sm:$0xf]
    %v118 = vld [vmem:[%s0 + $0x134] sm:$0xf]
    %v119 = vld [vmem:[%s0 + $0x138] sm:$0xf]
    %v120 = vld [vmem:[%s0 + $0x13c] sm:$0xf]
    %v121 = vld [vmem:[%s0 + $0x140] sm:$0xf]
    %v122 = vld [vmem:[%s0 + $0x144] sm:$0xf]
    %v123 = vld [vmem:[%s0 + $0x148] sm:$0xf]
    %v124 = vld [vmem:[%s0 + $0x14c] sm:$0xf]
    %v125 = vld [vmem:[%s0 + $0x150] sm:$0xf]
    %v126 = vld [vmem:[%s0 + $0x154] sm:$0xf]
    %v127 = vld [vmem:[%s0 + $0x158] sm:$0xf]
    %v128 = vld [vmem:[%s0 + $0x15c] sm:$0xf]
    %v129 = vld [vmem:[%s0 + $0x160] sm:$0xf]
    %v130 = vld [vmem:[%s0 + $0x164] sm:$0xf]
    %v131 = vld [vmem:[%s0 + $0x168] sm:$0xf]
    %v132 = vld [vmem:[%s0 + $0x16c] sm:$0xf]
    %v133 = vld [vmem:[%s0 + $0x170] sm:$0xf]
    %v134 = vld [vmem:[%s0 + $0x174] sm:$0xf]
    %v135 = vld [vmem:[%s0 + $0x178] sm:$0xf]
    %v136 = vld [vmem:[%s0 + $0x17c] sm:$0xf]
    %v137 = vld [vmem:[%s0 + $0x180] sm:$0xf]
    %v138 = vld [vmem:[%s0 + $0x184] sm:$0xf]
    %v139 = vld [vmem:[%s0 + $0x188] sm:$0xf]
    %v140 = vld [vmem:[%s0 + $0x18c] sm:$0xf]
    %v141 = vld [vmem:[%s0 + $0x190] sm:$0xf]
    %v142 = vld [vmem:[%s0 + $0x194] sm:$0xf]
    %v143 = vld [vmem:[%s0 + $0x198] sm:$0xf]
    %v144 = vld [vmem:[%s0 + $0x19c] sm:$0xf]
    %v145 = vld [vmem:[%s0 + $0x1a0] sm:$0xf]
    %v146 = vld [vmem:[%s0 + $0x1a4] sm:$0xf]
    %v147 = vld [vmem:[%s0 + $0x1a8] sm:$0xf]
    %v148 = vld [vmem:[%s0 + $0x1ac] sm:$0xf]
    %v149 = vld [vmem:[%s0 + $0x1b0] sm:$0xf]
    %v150 = vld [vmem:[%s0 + $0x1b4] sm:$0xf]
    %v151 = vld [vmem:[%s0 + $0x1b8] sm:$0xf]
    %v152 = vld [vmem:[%s0 + $0x1bc] sm:$0xf]
    %v153 = vld [vmem:[%s0 + $0x1c0] sm:$0xf]
    %v154 = vld [vmem:[%s0 + $0x1c4] sm:$0xf]
    %v155 = vld [vmem:[%s0 + $0x1c8] sm:$0xf]
    %v156 = vld [vmem:[%s0 + $0x1cc] sm:$0xf]
    %v157 = vld [vmem:[%s0 + $0x1d0] sm:$0xf]
    %v158 = vld [vmem:[%s0 + $0x1d4] sm:$0xf]
    %v159 = vld [vmem:[%s0 + $0x1d8] sm:$0xf]
    %v160 = vld [vmem:[%s0 + $0x1dc] sm:$0xf]
    %v161 = vld [vmem:[%s0 + $0x1e0] sm:$0xf]
    %v162 = vld [vmem:[%s0 + $0x1e4] sm:$0xf]
    %v163 = vld [vmem:[%s0 + $0x1e8] sm:$0xf]
    %v164 = vld [vmem:[%s0 + $0x1ec] sm:$0xf]
    %v165 = vld [vmem:[%s0 + $0x1f0] sm:$0xf]
    %v166 = vld [vmem:[%s0 + $0x1f4] sm:$0xf]
    %v167 = vld [vmem:[%s0 + $0x1f8] sm:$0xf]
    %v168 = vld [vmem:[%s0 + $0x1fc] sm:$0xf]
    %v169 = vld [vmem:[%s0 + $0x200] sm:$0xf]
    %v170 = vld [vmem:[%s0 + $0x204] sm:$0xf]
    %v171 = vld [vmem:[%s0 + $0x208] sm:$0xf]
    %v172 = vld [vmem:[%s0 + $0x20c] sm:$0xf]
    %v173 = vld [vmem:[%s0 + $0x210] sm:$0x1]
    %v174 = vld [vmem:[#allocation2] sm:$0xf]
    %v175 = vld [vmem:[#allocation2 + $0x4] sm:$0x1]
    %v176 = vld [vmem:[#allocation4] sm:$0x1]
    %v178 = vlaneseq
    %v179 = vshrl.u32 %v178, 7
    %v180 = vsub.s32 0, %v179
    %v181 = vrot.slane %v176, %v180
    %v316 = vunpack.c.l.b16 %v41
    %v317 = vunpack.c.l.b16 %v42
    %v318 = vunpack.c.l.b16 %v43
    %v319 = vunpack.c.l.b16 %v44
    %v320 = vunpack.c.l.b16 %v45
    %v321 = vunpack.c.l.b16 %v46
    %v322 = vunpack.c.l.b16 %v47
    %v323 = vunpack.c.l.b16 %v48
    %v324 = vunpack.c.l.b16 %v49
    %v325 = vunpack.c.l.b16 %v50
    %v326 = vunpack.c.l.b16 %v51
    %v327 = vunpack.c.l.b16 %v52
    %v328 = vunpack.c.l.b16 %v53
    %v329 = vunpack.c.l.b16 %v54
    %v330 = vunpack.c.l.b16 %v55
    %v331 = vunpack.c.l.b16 %v56
    %v332 = vunpack.c.l.b16 %v57
    %v333 = vunpack.c.l.b16 %v58
    %v334 = vunpack.c.l.b16 %v59
    %v335 = vunpack.c.l.b16 %v60
    %v336 = vunpack.c.l.b16 %v61
    %v337 = vunpack.c.l.b16 %v62
    %v338 = vunpack.c.l.b16 %v63
    %v339 = vunpack.c.l.b16 %v64
    %v340 = vunpack.c.l.b16 %v65
    %v341 = vunpack.c.l.b16 %v66
    %v342 = vunpack.c.l.b16 %v67
    %v343 = vunpack.c.l.b16 %v68
    %v344 = vunpack.c.l.b16 %v69
    %v345 = vunpack.c.l.b16 %v70
    %v346 = vunpack.c.l.b16 %v71
    %v347 = vunpack.c.l.b16 %v72
    %v348 = vunpack.c.l.b16 %v73
    %v349 = vunpack.c.l.b16 %v74
    %v350 = vunpack.c.l.b16 %v75
    %v351 = vunpack.c.l.b16 %v76
    %v352 = vunpack.c.l.b16 %v77
    %v353 = vunpack.c.l.b16 %v78
    %v354 = vunpack.c.l.b16 %v79
    %v355 = vunpack.c.l.b16 %v80
    %v356 = vunpack.c.l.b16 %v81
    %v357 = vunpack.c.l.b16 %v82
    %v358 = vunpack.c.l.b16 %v83
    %v359 = vunpack.c.l.b16 %v84
    %v360 = vunpack.c.l.b16 %v85
    %v361 = vunpack.c.l.b16 %v86
    %v362 = vunpack.c.l.b16 %v87
    %v363 = vunpack.c.l.b16 %v88
    %v364 = vunpack.c.l.b16 %v89
    %v365 = vunpack.c.l.b16 %v90
    %v366 = vunpack.c.l.b16 %v91
    %v367 = vunpack.c.l.b16 %v92
    %v368 = vunpack.c.l.b16 %v93
    %v369 = vunpack.c.l.b16 %v94
    %v370 = vunpack.c.l.b16 %v95
    %v371 = vunpack.c.l.b16 %v96
    %v372 = vunpack.c.l.b16 %v97
    %v373 = vunpack.c.l.b16 %v98
    %v374 = vunpack.c.l.b16 %v99
    %v375 = vunpack.c.l.b16 %v100
    %v376 = vunpack.c.l.b16 %v101
    %v377 = vunpack.c.l.b16 %v102
    %v378 = vunpack.c.l.b16 %v103
    %v379 = vunpack.c.l.b16 %v104
    %v380 = vunpack.c.l.b16 %v105
    %v381 = vunpack.c.l.b16 %v106
    %v382 = vunpack.c.l.b16 %v107
    %v383 = vunpack.c.l.b16 %v108
    %v384 = vunpack.c.l.b16 %v109
    %v385 = vunpack.c.l.b16 %v110
    %v386 = vunpack.c.l.b16 %v111
    %v387 = vunpack.c.l.b16 %v112
    %v388 = vunpack.c.l.b16 %v113
    %v389 = vunpack.c.l.b16 %v114
    %v390 = vunpack.c.l.b16 %v115
    %v391 = vunpack.c.l.b16 %v116
    %v392 = vunpack.c.l.b16 %v117
    %v393 = vunpack.c.l.b16 %v118
    %v394 = vunpack.c.l.b16 %v119
    %v395 = vunpack.c.l.b16 %v120
    %v396 = vunpack.c.l.b16 %v121
    %v397 = vunpack.c.l.b16 %v122
    %v398 = vunpack.c.l.b16 %v123
    %v399 = vunpack.c.l.b16 %v124
    %v400 = vunpack.c.l.b16 %v125
    %v401 = vunpack.c.l.b16 %v126
    %v402 = vunpack.c.l.b16 %v127
    %v403 = vunpack.c.l.b16 %v128
    %v404 = vunpack.c.l.b16 %v129
    %v405 = vunpack.c.l.b16 %v130
    %v406 = vunpack.c.l.b16 %v131
    %v407 = vunpack.c.l.b16 %v132
    %v408 = vunpack.c.l.b16 %v133
    %v409 = vunpack.c.l.b16 %v134
    %v410 = vunpack.c.l.b16 %v135
    %v411 = vunpack.c.l.b16 %v136
    %v412 = vunpack.c.l.b16 %v137
    %v413 = vunpack.c.l.b16 %v138
    %v414 = vunpack.c.l.b16 %v139
    %v415 = vunpack.c.l.b16 %v140
    %v416 = vunpack.c.l.b16 %v141
    %v417 = vunpack.c.l.b16 %v142
    %v418 = vunpack.c.l.b16 %v143
    %v419 = vunpack.c.l.b16 %v144
    %v420 = vunpack.c.l.b16 %v145
    %v421 = vunpack.c.l.b16 %v146
    %v422 = vunpack.c.l.b16 %v147
    %v423 = vunpack.c.l.b16 %v148
    %v424 = vunpack.c.l.b16 %v149
    %v425 = vunpack.c.l.b16 %v150
    %v426 = vunpack.c.l.b16 %v151
    %v427 = vunpack.c.l.b16 %v152
    %v428 = vunpack.c.l.b16 %v153
    %v429 = vunpack.c.l.b16 %v154
    %v430 = vunpack.c.l.b16 %v155
    %v431 = vunpack.c.l.b16 %v156
    %v432 = vunpack.c.l.b16 %v157
    %v433 = vunpack.c.l.b16 %v158
    %v434 = vunpack.c.l.b16 %v159
    %v435 = vunpack.c.l.b16 %v160
    %v436 = vunpack.c.l.b16 %v161
    %v437 = vunpack.c.l.b16 %v162
    %v438 = vunpack.c.l.b16 %v163
    %v439 = vunpack.c.l.b16 %v164
    %v440 = vunpack.c.l.b16 %v165
    %v441 = vunpack.c.l.b16 %v166
    %v442 = vunpack.c.l.b16 %v167
    %v443 = vunpack.c.l.b16 %v168
    %v444 = vunpack.c.l.b16 %v169
    %v445 = vunpack.c.l.b16 %v170
    %v446 = vunpack.c.l.b16 %v171
    %v447 = vunpack.c.l.b16 %v172
    %v448 = vunpack.c.l.b16 %v173
    %v449 = vpack.c.b16 %v317, %v316
    %v450 = vpack.c.b16 %v319, %v318
    %v451 = vpack.c.b16 %v321, %v320
    %v452 = vpack.c.b16 %v323, %v322
    %v453 = vpack.c.b16 %v325, %v324
    %v454 = vpack.c.b16 %v327, %v326
    %v455 = vpack.c.b16 %v329, %v328
    %v456 = vpack.c.b16 %v331, %v330
    %v457 = vpack.c.b16 %v333, %v332
    %v458 = vpack.c.b16 %v335, %v334
    %v459 = vpack.c.b16 %v337, %v336
    %v460 = vpack.c.b16 %v339, %v338
    %v461 = vpack.c.b16 %v341, %v340
    %v462 = vpack.c.b16 %v343, %v342
    %v463 = vpack.c.b16 %v345, %v344
    %v464 = vpack.c.b16 %v347, %v346
    %v465 = vpack.c.b16 %v349, %v348
    %v466 = vpack.c.b16 %v351, %v350
    %v467 = vpack.c.b16 %v353, %v352
    %v468 = vpack.c.b16 %v355, %v354
    %v469 = vpack.c.b16 %v357, %v356
    %v470 = vpack.c.b16 %v359, %v358
    %v471 = vpack.c.b16 %v361, %v360
    %v472 = vpack.c.b16 %v363, %v362
    %v473 = vpack.c.b16 %v365, %v364
    %v474 = vpack.c.b16 %v367, %v366
    %v475 = vpack.c.b16 %v369, %v368
    %v476 = vpack.c.b16 %v371, %v370
    %v477 = vpack.c.b16 %v373, %v372
    %v478 = vpack.c.b16 %v375, %v374
    %v479 = vpack.c.b16 %v377, %v376
    %v480 = vpack.c.b16 %v379, %v378
    %v481 = vpack.c.b16 %v381, %v380
    %v482 = vpack.c.b16 %v383, %v382
    %v483 = vpack.c.b16 %v385, %v384
    %v484 = vpack.c.b16 %v387, %v386
    %v485 = vpack.c.b16 %v389, %v388
    %v486 = vpack.c.b16 %v391, %v390
    %v487 = vpack.c.b16 %v393, %v392
    %v488 = vpack.c.b16 %v395, %v394
    %v489 = vpack.c.b16 %v397, %v396
    %v490 = vpack.c.b16 %v399, %v398
    %v491 = vpack.c.b16 %v401, %v400
    %v492 = vpack.c.b16 %v403, %v402
    %v493 = vpack.c.b16 %v405, %v404
    %v494 = vpack.c.b16 %v407, %v406
    %v495 = vpack.c.b16 %v409, %v408
    %v496 = vpack.c.b16 %v411, %v410
    %v497 = vpack.c.b16 %v413, %v412
    %v498 = vpack.c.b16 %v415, %v414
    %v499 = vpack.c.b16 %v417, %v416
    %v500 = vpack.c.b16 %v419, %v418
    %v501 = vpack.c.b16 %v421, %v420
    %v502 = vpack.c.b16 %v423, %v422
    %v503 = vpack.c.b16 %v425, %v424
    %v504 = vpack.c.b16 %v427, %v426
    %v505 = vpack.c.b16 %v429, %v428
    %v506 = vpack.c.b16 %v431, %v430
    %v507 = vpack.c.b16 %v433, %v432
    %v508 = vpack.c.b16 %v435, %v434
    %v509 = vpack.c.b16 %v437, %v436
    %v510 = vpack.c.b16 %v439, %v438
    %v511 = vpack.c.b16 %v441, %v440
    %v512 = vpack.c.b16 %v443, %v442
    %v513 = vpack.c.b16 %v445, %v444
    %v514 = vpack.c.b16 %v447, %v446
    %v515 = vpack.c.b16 %v448, %v448
    %v518 = vunpack.c.l.b16 %v174
    %v519 = vunpack.c.l.b16 %v175
    %v520 = vpack.c.b16 %v519, %v518
    %vm521 = vcmask 72704
    %v523 = vsel %vm521, %v449, 0
    %v526 = vsel %vm521, %v450, 0
    %v529 = vsel %vm521, %v451, 0
    %v532 = vsel %vm521, %v452, 0
    %v535 = vsel %vm521, %v453, 0
    %v538 = vsel %vm521, %v454, 0
    %v541 = vsel %vm521, %v455, 0
    %v544 = vsel %vm521, %v456, 0
    %v547 = vsel %vm521, %v457, 0
    %v550 = vsel %vm521, %v458, 0
    %v553 = vsel %vm521, %v459, 0
    %v556 = vsel %vm521, %v460, 0
    %v559 = vsel %vm521, %v461, 0
    %v562 = vsel %vm521, %v462, 0
    %v565 = vsel %vm521, %v463, 0
    %v568 = vsel %vm521, %v464, 0
    %v571 = vsel %vm521, %v465, 0
    %v574 = vsel %vm521, %v466, 0
    %v577 = vsel %vm521, %v467, 0
    %v580 = vsel %vm521, %v468, 0
    %v583 = vsel %vm521, %v469, 0
    %v586 = vsel %vm521, %v470, 0
    %v589 = vsel %vm521, %v471, 0
    %v592 = vsel %vm521, %v472, 0
    %v595 = vsel %vm521, %v473, 0
    %v598 = vsel %vm521, %v474, 0
    %v601 = vsel %vm521, %v475, 0
    %v604 = vsel %vm521, %v476, 0
    %v607 = vsel %vm521, %v477, 0
    %v610 = vsel %vm521, %v478, 0
    %v613 = vsel %vm521, %v479, 0
    %v616 = vsel %vm521, %v480, 0
    %v619 = vsel %vm521, %v481, 0
    %v622 = vsel %vm521, %v482, 0
    %v625 = vsel %vm521, %v483, 0
    %v628 = vsel %vm521, %v484, 0
    %v631 = vsel %vm521, %v485, 0
    %v634 = vsel %vm521, %v486, 0
    %v637 = vsel %vm521, %v487, 0
    %v640 = vsel %vm521, %v488, 0
    %v643 = vsel %vm521, %v489, 0
    %v646 = vsel %vm521, %v490, 0
    %v649 = vsel %vm521, %v491, 0
    %v652 = vsel %vm521, %v492, 0
    %v655 = vsel %vm521, %v493, 0
    %v658 = vsel %vm521, %v494, 0
    %v661 = vsel %vm521, %v495, 0
    %v664 = vsel %vm521, %v496, 0
    %v667 = vsel %vm521, %v497, 0
    %v670 = vsel %vm521, %v498, 0
    %v673 = vsel %vm521, %v499, 0
    %v676 = vsel %vm521, %v500, 0
    %v679 = vsel %vm521, %v501, 0
    %v682 = vsel %vm521, %v502, 0
    %v685 = vsel %vm521, %v503, 0
    %v688 = vsel %vm521, %v504, 0
    %v691 = vsel %vm521, %v505, 0
    %v694 = vsel %vm521, %v506, 0
    %v697 = vsel %vm521, %v507, 0
    %v700 = vsel %vm521, %v508, 0
    %v703 = vsel %vm521, %v509, 0
    %v706 = vsel %vm521, %v510, 0
    %v709 = vsel %vm521, %v511, 0
    %v712 = vsel %vm521, %v512, 0
    %v715 = vsel %vm521, %v513, 0
    %v718 = vsel %vm521, %v514, 0
    %v721 = vsel %vm521, %v515, 0
    %vm723 = vcmask 1043456
    %vm724 = vcmask 1044480
    %v725 = vsel %vm723, 4294967295, 65535
    %v726 = vsel %vm724, %v725, 0
    %v728 = vand.u32 %v520, %v726
    %730 = vmatprep.subr.bf16.mxu0 0
    %731 = vmatpush1.bf16.msra.mxu0 %v728
    %732 = vmatprep.subr.bf16.mxu0 0
    %733 = vmatpush1.bf16.msra.mxu0 0
    %734 = vmatprep.subr.bf16.mxu0 0
    %735 = vmatpush1.bf16.msra.mxu0 0
    %736 = vmatprep.subr.bf16.mxu0 0
    %737 = vmatpush1.bf16.msra.mxu0 0
    %738 = vmatprep.subr.bf16.mxu0 0
    %739 = vmatpush1.bf16.msra.mxu0 0
    %740 = vmatprep.subr.bf16.mxu0 0
    %741 = vmatpush1.bf16.msra.mxu0 0
    %742 = vmatprep.subr.bf16.mxu0 0
    %743 = vmatpush1.bf16.msra.mxu0 0
    %744 = vmatprep.subr.bf16.mxu0 0
    %745 = vmatpush1.bf16.msra.mxu0 0
    %746 = vmatprep.subr.bf16.mxu0 0
    %747 = vmatpush1.bf16.msra.mxu0 0
    %748 = vmatprep.subr.bf16.mxu0 0
    %749 = vmatpush1.bf16.msra.mxu0 0
    %750 = vmatprep.subr.bf16.mxu0 0
    %751 = vmatpush1.bf16.msra.mxu0 0
    %752 = vmatprep.subr.bf16.mxu0 0
    %753 = vmatpush1.bf16.msra.mxu0 0
    %754 = vmatprep.subr.bf16.mxu0 0
    %755 = vmatpush1.bf16.msra.mxu0 0
    %756 = vmatprep.subr.bf16.mxu0 0
    %757 = vmatpush1.bf16.msra.mxu0 0
    %758 = vmatprep.subr.bf16.mxu0 0
    %759 = vmatpush1.bf16.msra.mxu0 0
    %760 = vmatprep.subr.bf16.mxu0 0
    %761 = vmatpush1.bf16.msra.mxu0 0
    %762 = vmatprep.mubr.bf16.mxu0 0
    %763 = vmatmul.mubr.bf16.gmra.mrb[0].mxu0 %v523
    %v764 = vpop.f32.mrb[0].mxu0
    %v765 = vadd.f32 %v181, %v764
    %v766 = vpop.f32.mrb[0].mxu0
    %v767 = vpop.f32.mrb[0].mxu0
    %v768 = vadd.f32 %v181, %v767
    %v769 = vpop.f32.mrb[0].mxu0
    %770 = vmatprep.mubr.bf16.mxu0 0
    %771 = vmatmul.mubr.bf16.gmra.mrb[0].mxu0 %v526
    %v772 = vpop.f32.mrb[0].mxu0
    %v773 = vadd.f32 %v181, %v772
    %v774 = vpop.f32.mrb[0].mxu0
    %v775 = vpop.f32.mrb[0].mxu0
    %v776 = vadd.f32 %v181, %v775
    %v777 = vpop.f32.mrb[0].mxu0
    %778 = vmatprep.mubr.bf16.mxu0 0
    %779 = vmatmul.mubr.bf16.gmra.mrb[0].mxu0 %v529
    %v780 = vpop.f32.mrb[0].mxu0
    %v781 = vadd.f32 %v181, %v780
    %v782 = vpop.f32.mrb[0].mxu0
    %v783 = vpop.f32.mrb[0].mxu0
    %v784 = vadd.f32 %v181, %v783
    %v785 = vpop.f32.mrb[0].mxu0
    %786 = vmatprep.mubr.bf16.mxu0 0
    %787 = vmatmul.mubr.bf16.gmra.mrb[0].mxu0 %v532
    %v788 = vpop.f32.mrb[0].mxu0
    %v789 = vadd.f32 %v181, %v788
    %v790 = vpop.f32.mrb[0].mxu0
    %v791 = vpop.f32.mrb[0].mxu0
    %v792 = vadd.f32 %v181, %v791
    %v793 = vpop.f32.mrb[0].mxu0
    %794 = vmatprep.mubr.bf16.mxu0 0
    %795 = vmatmul.mubr.bf16.gmra.mrb[0].mxu0 %v535
    %v796 = vpop.f32.mrb[0].mxu0
    %v797 = vadd.f32 %v181, %v796
    %v798 = vpop.f32.mrb[0].mxu0
    %v799 = vpop.f32.mrb[0].mxu0
    %v800 = vadd.f32 %v181, %v799
    %v801 = vpop.f32.mrb[0].mxu0
    %802 = vmatprep.mubr.bf16.mxu0 0
    %803 = vmatmul.mubr.bf16.gmra.mrb[0].mxu0 %v538
    %v804 = vpop.f32.mrb[0].mxu0
    %v805 = vadd.f32 %v181, %v804
    %v806 = vpop.f32.mrb[0].mxu0
    %v807 = vpop.f32.mrb[0].mxu0
    %v808 = vadd.f32 %v181, %v807
    %v809 = vpop.f32.mrb[0].mxu0
    %810 = vmatprep.mubr.bf16.mxu0 0
    %811 = vmatmul.mubr.bf16.gmra.mrb[0].mxu0 %v541
    %v812 = vpop.f32.mrb[0].mxu0
    %v813 = vadd.f32 %v181, %v812
    %v814 = vpop.f32.mrb[0].mxu0
    %v815 = vpop.f32.mrb[0].mxu0
    %v816 = vadd.f32 %v181, %v815
    %v817 = vpop.f32.mrb[0].mxu0
    %818 = vmatprep.mubr.bf16.mxu0 0
    %819 = vmatmul.mubr.bf16.gmra.mrb[0].mxu0 %v544
    %v820 = vpop.f32.mrb[0].mxu0
    %v821 = vadd.f32 %v181, %v820
    %v822 = vpop.f32.mrb[0].mxu0
    %v823 = vpop.f32.mrb[0].mxu0
    %v824 = vadd.f32 %v181, %v823
    %v825 = vpop.f32.mrb[0].mxu0
    %826 = vmatprep.mubr.bf16.mxu0 0
    %827 = vmatmul.mubr.bf16.gmra.mrb[0].mxu0 %v547
    %v828 = vpop.f32.mrb[0].mxu0
    %v829 = vadd.f32 %v181, %v828
    %v830 = vpop.f32.mrb[0].mxu0
    %v831 = vpop.f32.mrb[0].mxu0
    %v832 = vadd.f32 %v181, %v831
    %v833 = vpop.f32.mrb[0].mxu0
    %834 = vmatprep.mubr.bf16.mxu0 0
    %835 = vmatmul.mubr.bf16.gmra.mrb[0].mxu0 %v550
    %v836 = vpop.f32.mrb[0].mxu0
    %v837 = vadd.f32 %v181, %v836
    %v838 = vpop.f32.mrb[0].mxu0
    %v839 = vpop.f32.mrb[0].mxu0
    %v840 = vadd.f32 %v181, %v839
    %v841 = vpop.f32.mrb[0].mxu0
    %842 = vmatprep.mubr.bf16.mxu0 0
    %843 = vmatmul.mubr.bf16.gmra.mrb[0].mxu0 %v553
    %v844 = vpop.f32.mrb[0].mxu0
    %v845 = vadd.f32 %v181, %v844
    %v846 = vpop.f32.mrb[0].mxu0
    %v847 = vpop.f32.mrb[0].mxu0
    %v848 = vadd.f32 %v181, %v847
    %v849 = vpop.f32.mrb[0].mxu0
    %850 = vmatprep.mubr.bf16.mxu0 0
    %851 = vmatmul.mubr.bf16.gmra.mrb[0].mxu0 %v556
    %v852 = vpop.f32.mrb[0].mxu0
    %v853 = vadd.f32 %v181, %v852
    %v854 = vpop.f32.mrb[0].mxu0
    %v855 = vpop.f32.mrb[0].mxu0
    %v856 = vadd.f32 %v181, %v855
    %v857 = vpop.f32.mrb[0].mxu0
    %858 = vmatprep.mubr.bf16.mxu0 0
    %859 = vmatmul.mubr.bf16.gmra.mrb[0].mxu0 %v559
    %v860 = vpop.f32.mrb[0].mxu0
    %v861 = vadd.f32 %v181, %v860
    %v862 = vpop.f32.mrb[0].mxu0
    %v863 = vpop.f32.mrb[0].mxu0
    %v864 = vadd.f32 %v181, %v863
    %v865 = vpop.f32.mrb[0].mxu0
    %866 = vmatprep.mubr.bf16.mxu0 0
    %867 = vmatmul.mubr.bf16.gmra.mrb[0].mxu0 %v562
    %v868 = vpop.f32.mrb[0].mxu0
    %v869 = vadd.f32 %v181, %v868
    %v870 = vpop.f32.mrb[0].mxu0
    %v871 = vpop.f32.mrb[0].mxu0
    %v872 = vadd.f32 %v181, %v871
    %v873 = vpop.f32.mrb[0].mxu0
    %874 = vmatprep.mubr.bf16.mxu0 0
    %875 = vmatmul.mubr.bf16.gmra.mrb[0].mxu0 %v565
    %v876 = vpop.f32.mrb[0].mxu0
    %v877 = vadd.f32 %v181, %v876
    %v878 = vpop.f32.mrb[0].mxu0
    %v879 = vpop.f32.mrb[0].mxu0
    %v880 = vadd.f32 %v181, %v879
    %v881 = vpop.f32.mrb[0].mxu0
    %882 = vmatprep.mubr.bf16.mxu0 0
    %883 = vmatmul.mubr.bf16.gmra.mrb[0].mxu0 %v568
    %v884 = vpop.f32.mrb[0].mxu0
    %v885 = vadd.f32 %v181, %v884
    %v886 = vpop.f32.mrb[0].mxu0
    %v887 = vpop.f32.mrb[0].mxu0
    %v888 = vadd.f32 %v181, %v887
    %v889 = vpop.f32.mrb[0].mxu0
    %890 = vmatprep.mubr.bf16.mxu0 0
    %891 = vmatmul.mubr.bf16.gmra.mrb[0].mxu0 %v571
    %v892 = vpop.f32.mrb[0].mxu0
    %v893 = vadd.f32 %v181, %v892
    %v894 = vpop.f32.mrb[0].mxu0
    %v895 = vpop.f32.mrb[0].mxu0
    %v896 = vadd.f32 %v181, %v895
    %v897 = vpop.f32.mrb[0].mxu0
    %898 = vmatprep.mubr.bf16.mxu0 0
    %899 = vmatmul.mubr.bf16.gmra.mrb[0].mxu0 %v574
    %v900 = vpop.f32.mrb[0].mxu0
    %v901 = vadd.f32 %v181, %v900
    %v902 = vpop.f32.mrb[0].mxu0
    %v903 = vpop.f32.mrb[0].mxu0
    %v904 = vadd.f32 %v181, %v903
    %v905 = vpop.f32.mrb[0].mxu0
    %906 = vmatprep.mubr.bf16.mxu0 0
    %907 = vmatmul.mubr.bf16.gmra.mrb[0].mxu0 %v577
    %v908 = vpop.f32.mrb[0].mxu0
    %v909 = vadd.f32 %v181, %v908
    %v910 = vpop.f32.mrb[0].mxu0
    %v911 = vpop.f32.mrb[0].mxu0
    %v912 = vadd.f32 %v181, %v911
    %v913 = vpop.f32.mrb[0].mxu0
    %914 = vmatprep.mubr.bf16.mxu0 0
    %915 = vmatmul.mubr.bf16.gmra.mrb[0].mxu0 %v580
    %v916 = vpop.f32.mrb[0].mxu0
    %v917 = vadd.f32 %v181, %v916
    %v918 = vpop.f32.mrb[0].mxu0
    %v919 = vpop.f32.mrb[0].mxu0
    %v920 = vadd.f32 %v181, %v919
    %v921 = vpop.f32.mrb[0].mxu0
    %922 = vmatprep.mubr.bf16.mxu0 0
    %923 = vmatmul.mubr.bf16.gmra.mrb[0].mxu0 %v583
    %v924 = vpop.f32.mrb[0].mxu0
    %v925 = vadd.f32 %v181, %v924
    %v926 = vpop.f32.mrb[0].mxu0
    %v927 = vpop.f32.mrb[0].mxu0
    %v928 = vadd.f32 %v181, %v927
    %v929 = vpop.f32.mrb[0].mxu0
    %930 = vmatprep.mubr.bf16.mxu0 0
    %931 = vmatmul.mubr.bf16.gmra.mrb[0].mxu0 %v586
    %v932 = vpop.f32.mrb[0].mxu0
    %v933 = vadd.f32 %v181, %v932
    %v934 = vpop.f32.mrb[0].mxu0
    %v935 = vpop.f32.mrb[0].mxu0
    %v936 = vadd.f32 %v181, %v935
    %v937 = vpop.f32.mrb[0].mxu0
    %938 = vmatprep.mubr.bf16.mxu0 0
    %939 = vmatmul.mubr.bf16.gmra.mrb[0].mxu0 %v589
    %v940 = vpop.f32.mrb[0].mxu0
    %v941 = vadd.f32 %v181, %v940
    %v942 = vpop.f32.mrb[0].mxu0
    %v943 = vpop.f32.mrb[0].mxu0
    %v944 = vadd.f32 %v181, %v943
    %v945 = vpop.f32.mrb[0].mxu0
    %946 = vmatprep.mubr.bf16.mxu0 0
    %947 = vmatmul.mubr.bf16.gmra.mrb[0].mxu0 %v592
    %v948 = vpop.f32.mrb[0].mxu0
    %v949 = vadd.f32 %v181, %v948
    %v950 = vpop.f32.mrb[0].mxu0
    %v951 = vpop.f32.mrb[0].mxu0
    %v952 = vadd.f32 %v181, %v951
    %v953 = vpop.f32.mrb[0].mxu0
    %954 = vmatprep.mubr.bf16.mxu0 0
    %955 = vmatmul.mubr.bf16.gmra.mrb[0].mxu0 %v595
    %v956 = vpop.f32.mrb[0].mxu0
    %v957 = vadd.f32 %v181, %v956
    %v958 = vpop.f32.mrb[0].mxu0
    %v959 = vpop.f32.mrb[0].mxu0
    %v960 = vadd.f32 %v181, %v959
    %v961 = vpop.f32.mrb[0].mxu0
    %962 = vmatprep.mubr.bf16.mxu0 0
    %963 = vmatmul.mubr.bf16.gmra.mrb[0].mxu0 %v598
    %v964 = vpop.f32.mrb[0].mxu0
    %v965 = vadd.f32 %v181, %v964
    %v966 = vpop.f32.mrb[0].mxu0
    %v967 = vpop.f32.mrb[0].mxu0
    %v968 = vadd.f32 %v181, %v967
    %v969 = vpop.f32.mrb[0].mxu0
    %970 = vmatprep.mubr.bf16.mxu0 0
    %971 = vmatmul.mubr.bf16.gmra.mrb[0].mxu0 %v601
    %v972 = vpop.f32.mrb[0].mxu0
    %v973 = vadd.f32 %v181, %v972
    %v974 = vpop.f32.mrb[0].mxu0
    %v975 = vpop.f32.mrb[0].mxu0
    %v976 = vadd.f32 %v181, %v975
    %v977 = vpop.f32.mrb[0].mxu0
    %978 = vmatprep.mubr.bf16.mxu0 0
    %979 = vmatmul.mubr.bf16.gmra.mrb[0].mxu0 %v604
    %v980 = vpop.f32.mrb[0].mxu0
    %v981 = vadd.f32 %v181, %v980
    %v982 = vpop.f32.mrb[0].mxu0
    %v983 = vpop.f32.mrb[0].mxu0
    %v984 = vadd.f32 %v181, %v983
    %v985 = vpop.f32.mrb[0].mxu0
    %986 = vmatprep.mubr.bf16.mxu0 0
    %987 = vmatmul.mubr.bf16.gmra.mrb[0].mxu0 %v607
    %v988 = vpop.f32.mrb[0].mxu0
    %v989 = vadd.f32 %v181, %v988
    %v990 = vpop.f32.mrb[0].mxu0
    %v991 = vpop.f32.mrb[0].mxu0
    %v992 = vadd.f32 %v181, %v991
    %v993 = vpop.f32.mrb[0].mxu0
    %994 = vmatprep.mubr.bf16.mxu0 0
    %995 = vmatmul.mubr.bf16.gmra.mrb[0].mxu0 %v610
    %v996 = vpop.f32.mrb[0].mxu0
    %v997 = vadd.f32 %v181, %v996
    %v998 = vpop.f32.mrb[0].mxu0
    %v999 = vpop.f32.mrb[0].mxu0
    %v1000 = vadd.f32 %v181, %v999
    %v1001 = vpop.f32.mrb[0].mxu0
    %1002 = vmatprep.mubr.bf16.mxu0 0
    %1003 = vmatmul.mubr.bf16.gmra.mrb[0].mxu0 %v613
    %v1004 = vpop.f32.mrb[0].mxu0
    %v1005 = vadd.f32 %v181, %v1004
    %v1006 = vpop.f32.mrb[0].mxu0
    %v1007 = vpop.f32.mrb[0].mxu0
    %v1008 = vadd.f32 %v181, %v1007
    %v1009 = vpop.f32.mrb[0].mxu0
    %1010 = vmatprep.mubr.bf16.mxu0 0
    %1011 = vmatmul.mubr.bf16.gmra.mrb[0].mxu0 %v616
    %v1012 = vpop.f32.mrb[0].mxu0
    %v1013 = vadd.f32 %v181, %v1012
    %v1014 = vpop.f32.mrb[0].mxu0
    %v1015 = vpop.f32.mrb[0].mxu0
    %v1016 = vadd.f32 %v181, %v1015
    %v1017 = vpop.f32.mrb[0].mxu0
    %1018 = vmatprep.mubr.bf16.mxu0 0
    %1019 = vmatmul.mubr.bf16.gmra.mrb[0].mxu0 %v619
    %v1020 = vpop.f32.mrb[0].mxu0
    %v1021 = vadd.f32 %v181, %v1020
    %v1022 = vpop.f32.mrb[0].mxu0
    %v1023 = vpop.f32.mrb[0].mxu0
    %v1024 = vadd.f32 %v181, %v1023
    %v1025 = vpop.f32.mrb[0].mxu0
    %1026 = vmatprep.mubr.bf16.mxu0 0
    %1027 = vmatmul.mubr.bf16.gmra.mrb[0].mxu0 %v622
    %v1028 = vpop.f32.mrb[0].mxu0
    %v1029 = vadd.f32 %v181, %v1028
    %v1030 = vpop.f32.mrb[0].mxu0
    %v1031 = vpop.f32.mrb[0].mxu0
    %v1032 = vadd.f32 %v181, %v1031
    %v1033 = vpop.f32.mrb[0].mxu0
    %1034 = vmatprep.mubr.bf16.mxu0 0
    %1035 = vmatmul.mubr.bf16.gmra.mrb[0].mxu0 %v625
    %v1036 = vpop.f32.mrb[0].mxu0
    %v1037 = vadd.f32 %v181, %v1036
    %v1038 = vpop.f32.mrb[0].mxu0
    %v1039 = vpop.f32.mrb[0].mxu0
    %v1040 = vadd.f32 %v181, %v1039
    %v1041 = vpop.f32.mrb[0].mxu0
    %1042 = vmatprep.mubr.bf16.mxu0 0
    %1043 = vmatmul.mubr.bf16.gmra.mrb[0].mxu0 %v628
    %v1044 = vpop.f32.mrb[0].mxu0
    %v1045 = vadd.f32 %v181, %v1044
    %v1046 = vpop.f32.mrb[0].mxu0
    %v1047 = vpop.f32.mrb[0].mxu0
    %v1048 = vadd.f32 %v181, %v1047
    %v1049 = vpop.f32.mrb[0].mxu0
    %1050 = vmatprep.mubr.bf16.mxu0 0
    %1051 = vmatmul.mubr.bf16.gmra.mrb[0].mxu0 %v631
    %v1052 = vpop.f32.mrb[0].mxu0
    %v1053 = vadd.f32 %v181, %v1052
    %v1054 = vpop.f32.mrb[0].mxu0
    %v1055 = vpop.f32.mrb[0].mxu0
    %v1056 = vadd.f32 %v181, %v1055
    %v1057 = vpop.f32.mrb[0].mxu0
    %1058 = vmatprep.mubr.bf16.mxu0 0
    %1059 = vmatmul.mubr.bf16.gmra.mrb[0].mxu0 %v634
    %v1060 = vpop.f32.mrb[0].mxu0
    %v1061 = vadd.f32 %v181, %v1060
    %v1062 = vpop.f32.mrb[0].mxu0
    %v1063 = vpop.f32.mrb[0].mxu0
    %v1064 = vadd.f32 %v181, %v1063
    %v1065 = vpop.f32.mrb[0].mxu0
    %1066 = vmatprep.mubr.bf16.mxu0 0
    %1067 = vmatmul.mubr.bf16.gmra.mrb[0].mxu0 %v637
    %v1068 = vpop.f32.mrb[0].mxu0
    %v1069 = vadd.f32 %v181, %v1068
    %v1070 = vpop.f32.mrb[0].mxu0
    %v1071 = vpop.f32.mrb[0].mxu0
    %v1072 = vadd.f32 %v181, %v1071
    %v1073 = vpop.f32.mrb[0].mxu0
    %1074 = vmatprep.mubr.bf16.mxu0 0
    %1075 = vmatmul.mubr.bf16.gmra.mrb[0].mxu0 %v640
    %v1076 = vpop.f32.mrb[0].mxu0
    %v1077 = vadd.f32 %v181, %v1076
    %v1078 = vpop.f32.mrb[0].mxu0
    %v1079 = vpop.f32.mrb[0].mxu0
    %v1080 = vadd.f32 %v181, %v1079
    %v1081 = vpop.f32.mrb[0].mxu0
    %1082 = vmatprep.mubr.bf16.mxu0 0
    %1083 = vmatmul.mubr.bf16.gmra.mrb[0].mxu0 %v643
    %v1084 = vpop.f32.mrb[0].mxu0
    %v1085 = vadd.f32 %v181, %v1084
    %v1086 = vpop.f32.mrb[0].mxu0
    %v1087 = vpop.f32.mrb[0].mxu0
    %v1088 = vadd.f32 %v181, %v1087
    %v1089 = vpop.f32.mrb[0].mxu0
    %1090 = vmatprep.mubr.bf16.mxu0 0
    %1091 = vmatmul.mubr.bf16.gmra.mrb[0].mxu0 %v646
    %v1092 = vpop.f32.mrb[0].mxu0
    %v1093 = vadd.f32 %v181, %v1092
    %v1094 = vpop.f32.mrb[0].mxu0
    %v1095 = vpop.f32.mrb[0].mxu0
    %v1096 = vadd.f32 %v181, %v1095
    %v1097 = vpop.f32.mrb[0].mxu0
    %1098 = vmatprep.mubr.bf16.mxu0 0
    %1099 = vmatmul.mubr.bf16.gmra.mrb[0].mxu0 %v649
    %v1100 = vpop.f32.mrb[0].mxu0
    %v1101 = vadd.f32 %v181, %v1100
    %v1102 = vpop.f32.mrb[0].mxu0
    %v1103 = vpop.f32.mrb[0].mxu0
    %v1104 = vadd.f32 %v181, %v1103
    %v1105 = vpop.f32.mrb[0].mxu0
    %1106 = vmatprep.mubr.bf16.mxu0 0
    %1107 = vmatmul.mubr.bf16.gmra.mrb[0].mxu0 %v652
    %v1108 = vpop.f32.mrb[0].mxu0
    %v1109 = vadd.f32 %v181, %v1108
    %v1110 = vpop.f32.mrb[0].mxu0
    %v1111 = vpop.f32.mrb[0].mxu0
    %v1112 = vadd.f32 %v181, %v1111
    %v1113 = vpop.f32.mrb[0].mxu0
    %1114 = vmatprep.mubr.bf16.mxu0 0
    %1115 = vmatmul.mubr.bf16.gmra.mrb[0].mxu0 %v655
    %v1116 = vpop.f32.mrb[0].mxu0
    %v1117 = vadd.f32 %v181, %v1116
    %v1118 = vpop.f32.mrb[0].mxu0
    %v1119 = vpop.f32.mrb[0].mxu0
    %v1120 = vadd.f32 %v181, %v1119
    %v1121 = vpop.f32.mrb[0].mxu0
    %1122 = vmatprep.mubr.bf16.mxu0 0
    %1123 = vmatmul.mubr.bf16.gmra.mrb[0].mxu0 %v658
    %v1124 = vpop.f32.mrb[0].mxu0
    %v1125 = vadd.f32 %v181, %v1124
    %v1126 = vpop.f32.mrb[0].mxu0
    %v1127 = vpop.f32.mrb[0].mxu0
    %v1128 = vadd.f32 %v181, %v1127
    %v1129 = vpop.f32.mrb[0].mxu0
    %1130 = vmatprep.mubr.bf16.mxu0 0
    %1131 = vmatmul.mubr.bf16.gmra.mrb[0].mxu0 %v661
    %v1132 = vpop.f32.mrb[0].mxu0
    %v1133 = vadd.f32 %v181, %v1132
    %v1134 = vpop.f32.mrb[0].mxu0
    %v1135 = vpop.f32.mrb[0].mxu0
    %v1136 = vadd.f32 %v181, %v1135
    %v1137 = vpop.f32.mrb[0].mxu0
    %1138 = vmatprep.mubr.bf16.mxu0 0
    %1139 = vmatmul.mubr.bf16.gmra.mrb[0].mxu0 %v664
    %v1140 = vpop.f32.mrb[0].mxu0
    %v1141 = vadd.f32 %v181, %v1140
    %v1142 = vpop.f32.mrb[0].mxu0
    %v1143 = vpop.f32.mrb[0].mxu0
    %v1144 = vadd.f32 %v181, %v1143
    %v1145 = vpop.f32.mrb[0].mxu0
    %1146 = vmatprep.mubr.bf16.mxu0 0
    %1147 = vmatmul.mubr.bf16.gmra.mrb[0].mxu0 %v667
    %v1148 = vpop.f32.mrb[0].mxu0
    %v1149 = vadd.f32 %v181, %v1148
    %v1150 = vpop.f32.mrb[0].mxu0
    %v1151 = vpop.f32.mrb[0].mxu0
    %v1152 = vadd.f32 %v181, %v1151
    %v1153 = vpop.f32.mrb[0].mxu0
    %1154 = vmatprep.mubr.bf16.mxu0 0
    %1155 = vmatmul.mubr.bf16.gmra.mrb[0].mxu0 %v670
    %v1156 = vpop.f32.mrb[0].mxu0
    %v1157 = vadd.f32 %v181, %v1156
    %v1158 = vpop.f32.mrb[0].mxu0
    %v1159 = vpop.f32.mrb[0].mxu0
    %v1160 = vadd.f32 %v181, %v1159
    %v1161 = vpop.f32.mrb[0].mxu0
    %1162 = vmatprep.mubr.bf16.mxu0 0
    %1163 = vmatmul.mubr.bf16.gmra.mrb[0].mxu0 %v673
    %v1164 = vpop.f32.mrb[0].mxu0
    %v1165 = vadd.f32 %v181, %v1164
    %v1166 = vpop.f32.mrb[0].mxu0
    %v1167 = vpop.f32.mrb[0].mxu0
    %v1168 = vadd.f32 %v181, %v1167
    %v1169 = vpop.f32.mrb[0].mxu0
    %1170 = vmatprep.mubr.bf16.mxu0 0
    %1171 = vmatmul.mubr.bf16.gmra.mrb[0].mxu0 %v676
    %v1172 = vpop.f32.mrb[0].mxu0
    %v1173 = vadd.f32 %v181, %v1172
    %v1174 = vpop.f32.mrb[0].mxu0
    %v1175 = vpop.f32.mrb[0].mxu0
    %v1176 = vadd.f32 %v181, %v1175
    %v1177 = vpop.f32.mrb[0].mxu0
    %1178 = vmatprep.mubr.bf16.mxu0 0
    %1179 = vmatmul.mubr.bf16.gmra.mrb[0].mxu0 %v679
    %v1180 = vpop.f32.mrb[0].mxu0
    %v1181 = vadd.f32 %v181, %v1180
    %v1182 = vpop.f32.mrb[0].mxu0
    %v1183 = vpop.f32.mrb[0].mxu0
    %v1184 = vadd.f32 %v181, %v1183
    %v1185 = vpop.f32.mrb[0].mxu0
    %1186 = vmatprep.mubr.bf16.mxu0 0
    %1187 = vmatmul.mubr.bf16.gmra.mrb[0].mxu0 %v682
    %v1188 = vpop.f32.mrb[0].mxu0
    %v1189 = vadd.f32 %v181, %v1188
    %v1190 = vpop.f32.mrb[0].mxu0
    %v1191 = vpop.f32.mrb[0].mxu0
    %v1192 = vadd.f32 %v181, %v1191
    %v1193 = vpop.f32.mrb[0].mxu0
    %1194 = vmatprep.mubr.bf16.mxu0 0
    %1195 = vmatmul.mubr.bf16.gmra.mrb[0].mxu0 %v685
    %v1196 = vpop.f32.mrb[0].mxu0
    %v1197 = vadd.f32 %v181, %v1196
    %v1198 = vpop.f32.mrb[0].mxu0
    %v1199 = vpop.f32.mrb[0].mxu0
    %v1200 = vadd.f32 %v181, %v1199
    %v1201 = vpop.f32.mrb[0].mxu0
    %1202 = vmatprep.mubr.bf16.mxu0 0
    %1203 = vmatmul.mubr.bf16.gmra.mrb[0].mxu0 %v688
    %v1204 = vpop.f32.mrb[0].mxu0
    %v1205 = vadd.f32 %v181, %v1204
    %v1206 = vpop.f32.mrb[0].mxu0
    %v1207 = vpop.f32.mrb[0].mxu0
    %v1208 = vadd.f32 %v181, %v1207
    %v1209 = vpop.f32.mrb[0].mxu0
    %1210 = vmatprep.mubr.bf16.mxu0 0
    %1211 = vmatmul.mubr.bf16.gmra.mrb[0].mxu0 %v691
    %v1212 = vpop.f32.mrb[0].mxu0
    %v1213 = vadd.f32 %v181, %v1212
    %v1214 = vpop.f32.mrb[0].mxu0
    %v1215 = vpop.f32.mrb[0].mxu0
    %v1216 = vadd.f32 %v181, %v1215
    %v1217 = vpop.f32.mrb[0].mxu0
    %1218 = vmatprep.mubr.bf16.mxu0 0
    %1219 = vmatmul.mubr.bf16.gmra.mrb[0].mxu0 %v694
    %v1220 = vpop.f32.mrb[0].mxu0
    %v1221 = vadd.f32 %v181, %v1220
    %v1222 = vpop.f32.mrb[0].mxu0
    %v1223 = vpop.f32.mrb[0].mxu0
    %v1224 = vadd.f32 %v181, %v1223
    %v1225 = vpop.f32.mrb[0].mxu0
    %1226 = vmatprep.mubr.bf16.mxu0 0
    %1227 = vmatmul.mubr.bf16.gmra.mrb[0].mxu0 %v697
    %v1228 = vpop.f32.mrb[0].mxu0
    %v1229 = vadd.f32 %v181, %v1228
    %v1230 = vpop.f32.mrb[0].mxu0
    %v1231 = vpop.f32.mrb[0].mxu0
    %v1232 = vadd.f32 %v181, %v1231
    %v1233 = vpop.f32.mrb[0].mxu0
    %1234 = vmatprep.mubr.bf16.mxu0 0
    %1235 = vmatmul.mubr.bf16.gmra.mrb[0].mxu0 %v700
    %v1236 = vpop.f32.mrb[0].mxu0
    %v1237 = vadd.f32 %v181, %v1236
    %v1238 = vpop.f32.mrb[0].mxu0
    %v1239 = vpop.f32.mrb[0].mxu0
    %v1240 = vadd.f32 %v181, %v1239
    %v1241 = vpop.f32.mrb[0].mxu0
    %1242 = vmatprep.mubr.bf16.mxu0 0
    %1243 = vmatmul.mubr.bf16.gmra.mrb[0].mxu0 %v703
    %v1244 = vpop.f32.mrb[0].mxu0
    %v1245 = vadd.f32 %v181, %v1244
    %v1246 = vpop.f32.mrb[0].mxu0
    %v1247 = vpop.f32.mrb[0].mxu0
    %v1248 = vadd.f32 %v181, %v1247
    %v1249 = vpop.f32.mrb[0].mxu0
    %1250 = vmatprep.mubr.bf16.mxu0 0
    %1251 = vmatmul.mubr.bf16.gmra.mrb[0].mxu0 %v706
    %v1252 = vpop.f32.mrb[0].mxu0
    %v1253 = vadd.f32 %v181, %v1252
    %v1254 = vpop.f32.mrb[0].mxu0
    %v1255 = vpop.f32.mrb[0].mxu0
    %v1256 = vadd.f32 %v181, %v1255
    %v1257 = vpop.f32.mrb[0].mxu0
    %1258 = vmatprep.mubr.bf16.mxu0 0
    %1259 = vmatmul.mubr.bf16.gmra.mrb[0].mxu0 %v709
    %v1260 = vpop.f32.mrb[0].mxu0
    %v1261 = vadd.f32 %v181, %v1260
    %v1262 = vpop.f32.mrb[0].mxu0
    %v1263 = vpop.f32.mrb[0].mxu0
    %v1264 = vadd.f32 %v181, %v1263
    %v1265 = vpop.f32.mrb[0].mxu0
    %1266 = vmatprep.mubr.bf16.mxu0 0
    %1267 = vmatmul.mubr.bf16.gmra.mrb[0].mxu0 %v712
    %v1268 = vpop.f32.mrb[0].mxu0
    %v1269 = vadd.f32 %v181, %v1268
    %v1270 = vpop.f32.mrb[0].mxu0
    %v1271 = vpop.f32.mrb[0].mxu0
    %v1272 = vadd.f32 %v181, %v1271
    %v1273 = vpop.f32.mrb[0].mxu0
    %1274 = vmatprep.mubr.bf16.mxu0 0
    %1275 = vmatmul.mubr.bf16.gmra.mrb[0].mxu0 %v715
    %v1276 = vpop.f32.mrb[0].mxu0
    %v1277 = vadd.f32 %v181, %v1276
    %v1278 = vpop.f32.mrb[0].mxu0
    %v1279 = vpop.f32.mrb[0].mxu0
    %v1280 = vadd.f32 %v181, %v1279
    %v1281 = vpop.f32.mrb[0].mxu0
    %1282 = vmatprep.mubr.bf16.mxu0 0
    %1283 = vmatmul.mubr.bf16.gmra.mrb[0].mxu0 %v718
    %v1284 = vpop.f32.mrb[0].mxu0
    %v1285 = vadd.f32 %v181, %v1284
    %v1286 = vpop.f32.mrb[0].mxu0
    %v1287 = vpop.f32.mrb[0].mxu0
    %v1288 = vadd.f32 %v181, %v1287
    %v1289 = vpop.f32.mrb[0].mxu0
    %1290 = vmatprep.mubr.bf16.mxu0 0
    %1291 = vmatmul.mubr.bf16.gmra.mrb[0].mxu0 %v721
    %v1292 = vpop.f32.mrb[0].mxu0
    %v1293 = vadd.f32 %v181, %v1292
    %v1294 = vpop.f32.mrb[0].mxu0
    %v1295 = vpop.f32.mrb[0].mxu0
    %v1296 = vpop.f32.mrb[0].mxu0
    %1297 = vdwg.mxu0
    %vm1298 = vcmp.gt.f32.partialorder %v765, 0.0
    %vm1299 = vcmp.gt.f32.partialorder %v768, 0.0
    %vm1300 = vcmp.gt.f32.partialorder %v773, 0.0
    %vm1301 = vcmp.gt.f32.partialorder %v776, 0.0
    %vm1302 = vcmp.gt.f32.partialorder %v781, 0.0
    %vm1303 = vcmp.gt.f32.partialorder %v784, 0.0
    %vm1304 = vcmp.gt.f32.partialorder %v789, 0.0
    %vm1305 = vcmp.gt.f32.partialorder %v792, 0.0
    %vm1306 = vcmp.gt.f32.partialorder %v797, 0.0
    %vm1307 = vcmp.gt.f32.partialorder %v800, 0.0
    %vm1308 = vcmp.gt.f32.partialorder %v805, 0.0
    %vm1309 = vcmp.gt.f32.partialorder %v808, 0.0
    %vm1310 = vcmp.gt.f32.partialorder %v813, 0.0
    %vm1311 = vcmp.gt.f32.partialorder %v816, 0.0
    %vm1312 = vcmp.gt.f32.partialorder %v821, 0.0
    %vm1313 = vcmp.gt.f32.partialorder %v824, 0.0
    %vm1314 = vcmp.gt.f32.partialorder %v829, 0.0
    %vm1315 = vcmp.gt.f32.partialorder %v832, 0.0
    %vm1316 = vcmp.gt.f32.partialorder %v837, 0.0
    %vm1317 = vcmp.gt.f32.partialorder %v840, 0.0
    %vm1318 = vcmp.gt.f32.partialorder %v845, 0.0
    %vm1319 = vcmp.gt.f32.partialorder %v848, 0.0
    %vm1320 = vcmp.gt.f32.partialorder %v853, 0.0
    %vm1321 = vcmp.gt.f32.partialorder %v856, 0.0
    %vm1322 = vcmp.gt.f32.partialorder %v861, 0.0
    %vm1323 = vcmp.gt.f32.partialorder %v864, 0.0
    %vm1324 = vcmp.gt.f32.partialorder %v869, 0.0
    %vm1325 = vcmp.gt.f32.partialorder %v872, 0.0
    %vm1326 = vcmp.gt.f32.partialorder %v877, 0.0
    %vm1327 = vcmp.gt.f32.partialorder %v880, 0.0
    %vm1328 = vcmp.gt.f32.partialorder %v885, 0.0
    %vm1329 = vcmp.gt.f32.partialorder %v888, 0.0
    %vm1330 = vcmp.gt.f32.partialorder %v893, 0.0
    %vm1331 = vcmp.gt.f32.partialorder %v896, 0.0
    %vm1332 = vcmp.gt.f32.partialorder %v901, 0.0
    %vm1333 = vcmp.gt.f32.partialorder %v904, 0.0
    %vm1334 = vcmp.gt.f32.partialorder %v909, 0.0
    %vm1335 = vcmp.gt.f32.partialorder %v912, 0.0
    %vm1336 = vcmp.gt.f32.partialorder %v917, 0.0
    %vm1337 = vcmp.gt.f32.partialorder %v920, 0.0
    %vm1338 = vcmp.gt.f32.partialorder %v925, 0.0
    %vm1339 = vcmp.gt.f32.partialorder %v928, 0.0
    %vm1340 = vcmp.gt.f32.partialorder %v933, 0.0
    %vm1341 = vcmp.gt.f32.partialorder %v936, 0.0
    %vm1342 = vcmp.gt.f32.partialorder %v941, 0.0
    %vm1343 = vcmp.gt.f32.partialorder %v944, 0.0
    %vm1344 = vcmp.gt.f32.partialorder %v949, 0.0
    %vm1345 = vcmp.gt.f32.partialorder %v952, 0.0
    %vm1346 = vcmp.gt.f32.partialorder %v957, 0.0
    %vm1347 = vcmp.gt.f32.partialorder %v960, 0.0
    %vm1348 = vcmp.gt.f32.partialorder %v965, 0.0
    %vm1349 = vcmp.gt.f32.partialorder %v968, 0.0
    %vm1350 = vcmp.gt.f32.partialorder %v973, 0.0
    %vm1351 = vcmp.gt.f32.partialorder %v976, 0.0
    %vm1352 = vcmp.gt.f32.partialorder %v981, 0.0
    %vm1353 = vcmp.gt.f32.partialorder %v984, 0.0
    %vm1354 = vcmp.gt.f32.partialorder %v989, 0.0
    %vm1355 = vcmp.gt.f32.partialorder %v992, 0.0
    %vm1356 = vcmp.gt.f32.partialorder %v997, 0.0
    %vm1357 = vcmp.gt.f32.partialorder %v1000, 0.0
    %vm1358 = vcmp.gt.f32.partialorder %v1005, 0.0
    %vm1359 = vcmp.gt.f32.partialorder %v1008, 0.0
    %vm1360 = vcmp.gt.f32.partialorder %v1013, 0.0
    %vm1361 = vcmp.gt.f32.partialorder %v1016, 0.0
    %vm1362 = vcmp.gt.f32.partialorder %v1021, 0.0
    %vm1363 = vcmp.gt.f32.partialorder %v1024, 0.0
    %vm1364 = vcmp.gt.f32.partialorder %v1029, 0.0
    %vm1365 = vcmp.gt.f32.partialorder %v1032, 0.0
    %vm1366 = vcmp.gt.f32.partialorder %v1037, 0.0
    %vm1367 = vcmp.gt.f32.partialorder %v1040, 0.0
    %vm1368 = vcmp.gt.f32.partialorder %v1045, 0.0
    %vm1369 = vcmp.gt.f32.partialorder %v1048, 0.0
    %vm1370 = vcmp.gt.f32.partialorder %v1053, 0.0
    %vm1371 = vcmp.gt.f32.partialorder %v1056, 0.0
    %vm1372 = vcmp.gt.f32.partialorder %v1061, 0.0
    %vm1373 = vcmp.gt.f32.partialorder %v1064, 0.0
    %vm1374 = vcmp.gt.f32.partialorder %v1069, 0.0
    %vm1375 = vcmp.gt.f32.partialorder %v1072, 0.0
    %vm1376 = vcmp.gt.f32.partialorder %v1077, 0.0
    %vm1377 = vcmp.gt.f32.partialorder %v1080, 0.0
    %vm1378 = vcmp.gt.f32.partialorder %v1085, 0.0
    %vm1379 = vcmp.gt.f32.partialorder %v1088, 0.0
    %vm1380 = vcmp.gt.f32.partialorder %v1093, 0.0
    %vm1381 = vcmp.gt.f32.partialorder %v1096, 0.0
    %vm1382 = vcmp.gt.f32.partialorder %v1101, 0.0
    %vm1383 = vcmp.gt.f32.partialorder %v1104, 0.0
    %vm1384 = vcmp.gt.f32.partialorder %v1109, 0.0
    %vm1385 = vcmp.gt.f32.partialorder %v1112, 0.0
    %vm1386 = vcmp.gt.f32.partialorder %v1117, 0.0
    %vm1387 = vcmp.gt.f32.partialorder %v1120, 0.0
    %vm1388 = vcmp.gt.f32.partialorder %v1125, 0.0
    %vm1389 = vcmp.gt.f32.partialorder %v1128, 0.0
    %vm1390 = vcmp.gt.f32.partialorder %v1133, 0.0
    %vm1391 = vcmp.gt.f32.partialorder %v1136, 0.0
    %vm1392 = vcmp.gt.f32.partialorder %v1141, 0.0
    %vm1393 = vcmp.gt.f32.partialorder %v1144, 0.0
    %vm1394 = vcmp.gt.f32.partialorder %v1149, 0.0
    %vm1395 = vcmp.gt.f32.partialorder %v1152, 0.0
    %vm1396 = vcmp.gt.f32.partialorder %v1157, 0.0
    %vm1397 = vcmp.gt.f32.partialorder %v1160, 0.0
    %vm1398 = vcmp.gt.f32.partialorder %v1165, 0.0
    %vm1399 = vcmp.gt.f32.partialorder %v1168, 0.0
    %vm1400 = vcmp.gt.f32.partialorder %v1173, 0.0
    %vm1401 = vcmp.gt.f32.partialorder %v1176, 0.0
    %vm1402 = vcmp.gt.f32.partialorder %v1181, 0.0
    %vm1403 = vcmp.gt.f32.partialorder %v1184, 0.0
    %vm1404 = vcmp.gt.f32.partialorder %v1189, 0.0
    %vm1405 = vcmp.gt.f32.partialorder %v1192, 0.0
    %vm1406 = vcmp.gt.f32.partialorder %v1197, 0.0
    %vm1407 = vcmp.gt.f32.partialorder %v1200, 0.0
    %vm1408 = vcmp.gt.f32.partialorder %v1205, 0.0
    %vm1409 = vcmp.gt.f32.partialorder %v1208, 0.0
    %vm1410 = vcmp.gt.f32.partialorder %v1213, 0.0
    %vm1411 = vcmp.gt.f32.partialorder %v1216, 0.0
    %vm1412 = vcmp.gt.f32.partialorder %v1221, 0.0
    %vm1413 = vcmp.gt.f32.partialorder %v1224, 0.0
    %vm1414 = vcmp.gt.f32.partialorder %v1229, 0.0
    %vm1415 = vcmp.gt.f32.partialorder %v1232, 0.0
    %vm1416 = vcmp.gt.f32.partialorder %v1237, 0.0
    %vm1417 = vcmp.gt.f32.partialorder %v1240, 0.0
    %vm1418 = vcmp.gt.f32.partialorder %v1245, 0.0
    %vm1419 = vcmp.gt.f32.partialorder %v1248, 0.0
    %vm1420 = vcmp.gt.f32.partialorder %v1253, 0.0
    %vm1421 = vcmp.gt.f32.partialorder %v1256, 0.0
    %vm1422 = vcmp.gt.f32.partialorder %v1261, 0.0
    %vm1423 = vcmp.gt.f32.partialorder %v1264, 0.0
    %vm1424 = vcmp.gt.f32.partialorder %v1269, 0.0
    %vm1425 = vcmp.gt.f32.partialorder %v1272, 0.0
    %vm1426 = vcmp.gt.f32.partialorder %v1277, 0.0
    %vm1427 = vcmp.gt.f32.partialorder %v1280, 0.0
    %vm1428 = vcmp.gt.f32.partialorder %v1285, 0.0
    %vm1429 = vcmp.gt.f32.partialorder %v1288, 0.0
    %vm1430 = vcmp.gt.f32.partialorder %v1293, 0.0
    %v1431 = vmul.f32 %v765, 0.02
    %v1432 = vmul.f32 %v768, 0.02
    %v1433 = vmul.f32 %v773, 0.02
    %v1434 = vmul.f32 %v776, 0.02
    %v1435 = vmul.f32 %v781, 0.02
    %v1436 = vmul.f32 %v784, 0.02
    %v1437 = vmul.f32 %v789, 0.02
    %v1438 = vmul.f32 %v792, 0.02
    %v1439 = vmul.f32 %v797, 0.02
    %v1440 = vmul.f32 %v800, 0.02
    %v1441 = vmul.f32 %v805, 0.02
    %v1442 = vmul.f32 %v808, 0.02
    %v1443 = vmul.f32 %v813, 0.02
    %v1444 = vmul.f32 %v816, 0.02
    %v1445 = vmul.f32 %v821, 0.02
    %v1446 = vmul.f32 %v824, 0.02
    %v1447 = vmul.f32 %v829, 0.02
    %v1448 = vmul.f32 %v832, 0.02
    %v1449 = vmul.f32 %v837, 0.02
    %v1450 = vmul.f32 %v840, 0.02
    %v1451 = vmul.f32 %v845, 0.02
    %v1452 = vmul.f32 %v848, 0.02
    %v1453 = vmul.f32 %v853, 0.02
    %v1454 = vmul.f32 %v856, 0.02
    %v1455 = vmul.f32 %v861, 0.02
    %v1456 = vmul.f32 %v864, 0.02
    %v1457 = vmul.f32 %v869, 0.02
    %v1458 = vmul.f32 %v872, 0.02
    %v1459 = vmul.f32 %v877, 0.02
    %v1460 = vmul.f32 %v880, 0.02
    %v1461 = vmul.f32 %v885, 0.02
    %v1462 = vmul.f32 %v888, 0.02
    %v1463 = vmul.f32 %v893, 0.02
    %v1464 = vmul.f32 %v896, 0.02
    %v1465 = vmul.f32 %v901, 0.02
    %v1466 = vmul.f32 %v904, 0.02
    %v1467 = vmul.f32 %v909, 0.02
    %v1468 = vmul.f32 %v912, 0.02
    %v1469 = vmul.f32 %v917, 0.02
    %v1470 = vmul.f32 %v920, 0.02
    %v1471 = vmul.f32 %v925, 0.02
    %v1472 = vmul.f32 %v928, 0.02
    %v1473 = vmul.f32 %v933, 0.02
    %v1474 = vmul.f32 %v936, 0.02
    %v1475 = vmul.f32 %v941, 0.02
    %v1476 = vmul.f32 %v944, 0.02
    %v1477 = vmul.f32 %v949, 0.02
    %v1478 = vmul.f32 %v952, 0.02
    %v1479 = vmul.f32 %v957, 0.02
    %v1480 = vmul.f32 %v960, 0.02
    %v1481 = vmul.f32 %v965, 0.02
    %v1482 = vmul.f32 %v968, 0.02
    %v1483 = vmul.f32 %v973, 0.02
    %v1484 = vmul.f32 %v976, 0.02
    %v1485 = vmul.f32 %v981, 0.02
    %v1486 = vmul.f32 %v984, 0.02
    %v1487 = vmul.f32 %v989, 0.02
    %v1488 = vmul.f32 %v992, 0.02
    %v1489 = vmul.f32 %v997, 0.02
    %v1490 = vmul.f32 %v1000, 0.02
    %v1491 = vmul.f32 %v1005, 0.02
    %v1492 = vmul.f32 %v1008, 0.02
    %v1493 = vmul.f32 %v1013, 0.02
    %v1494 = vmul.f32 %v1016, 0.02
    %v1495 = vmul.f32 %v1021, 0.02
    %v1496 = vmul.f32 %v1024, 0.02
    %v1497 = vmul.f32 %v1029, 0.02
    %v1498 = vmul.f32 %v1032, 0.02
    %v1499 = vmul.f32 %v1037, 0.02
    %v1500 = vmul.f32 %v1040, 0.02
    %v1501 = vmul.f32 %v1045, 0.02
    %v1502 = vmul.f32 %v1048, 0.02
    %v1503 = vmul.f32 %v1053, 0.02
    %v1504 = vmul.f32 %v1056, 0.02
    %v1505 = vmul.f32 %v1061, 0.02
    %v1506 = vmul.f32 %v1064, 0.02
    %v1507 = vmul.f32 %v1069, 0.02
    %v1508 = vmul.f32 %v1072, 0.02
    %v1509 = vmul.f32 %v1077, 0.02
    %v1510 = vmul.f32 %v1080, 0.02
    %v1511 = vmul.f32 %v1085, 0.02
    %v1512 = vmul.f32 %v1088, 0.02
    %v1513 = vmul.f32 %v1093, 0.02
    %v1514 = vmul.f32 %v1096, 0.02
    %v1515 = vmul.f32 %v1101, 0.02
    %v1516 = vmul.f32 %v1104, 0.02
    %v1517 = vmul.f32 %v1109, 0.02
    %v1518 = vmul.f32 %v1112, 0.02
    %v1519 = vmul.f32 %v1117, 0.02
    %v1520 = vmul.f32 %v1120, 0.02
    %v1521 = vmul.f32 %v1125, 0.02
    %v1522 = vmul.f32 %v1128, 0.02
    %v1523 = vmul.f32 %v1133, 0.02
    %v1524 = vmul.f32 %v1136, 0.02
    %v1525 = vmul.f32 %v1141, 0.02
    %v1526 = vmul.f32 %v1144, 0.02
    %v1527 = vmul.f32 %v1149, 0.02
    %v1528 = vmul.f32 %v1152, 0.02
    %v1529 = vmul.f32 %v1157, 0.02
    %v1530 = vmul.f32 %v1160, 0.02
    %v1531 = vmul.f32 %v1165, 0.02
    %v1532 = vmul.f32 %v1168, 0.02
    %v1533 = vmul.f32 %v1173, 0.02
    %v1534 = vmul.f32 %v1176, 0.02
    %v1535 = vmul.f32 %v1181, 0.02
    %v1536 = vmul.f32 %v1184, 0.02
    %v1537 = vmul.f32 %v1189, 0.02
    %v1538 = vmul.f32 %v1192, 0.02
    %v1539 = vmul.f32 %v1197, 0.02
    %v1540 = vmul.f32 %v1200, 0.02
    %v1541 = vmul.f32 %v1205, 0.02
    %v1542 = vmul.f32 %v1208, 0.02
    %v1543 = vmul.f32 %v1213, 0.02
    %v1544 = vmul.f32 %v1216, 0.02
    %v1545 = vmul.f32 %v1221, 0.02
    %v1546 = vmul.f32 %v1224, 0.02
    %v1547 = vmul.f32 %v1229, 0.02
    %v1548 = vmul.f32 %v1232, 0.02
    %v1549 = vmul.f32 %v1237, 0.02
    %v1550 = vmul.f32 %v1240, 0.02
    %v1551 = vmul.f32 %v1245, 0.02
    %v1552 = vmul.f32 %v1248, 0.02
    %v1553 = vmul.f32 %v1253, 0.02
    %v1554 = vmul.f32 %v1256, 0.02
    %v1555 = vmul.f32 %v1261, 0.02
    %v1556 = vmul.f32 %v1264, 0.02
    %v1557 = vmul.f32 %v1269, 0.02
    %v1558 = vmul.f32 %v1272, 0.02
    %v1559 = vmul.f32 %v1277, 0.02
    %v1560 = vmul.f32 %v1280, 0.02
    %v1561 = vmul.f32 %v1285, 0.02
    %v1562 = vmul.f32 %v1288, 0.02
    %v1563 = vmul.f32 %v1293, 0.02
    %v1564 = vsel %vm1298, %v765, %v1431
    %v1565 = vsel %vm1299, %v768, %v1432
    %v1566 = vsel %vm1300, %v773, %v1433
    %v1567 = vsel %vm1301, %v776, %v1434
    %v1568 = vsel %vm1302, %v781, %v1435
    %v1569 = vsel %vm1303, %v784, %v1436
    %v1570 = vsel %vm1304, %v789, %v1437
    %v1571 = vsel %vm1305, %v792, %v1438
    %v1572 = vsel %vm1306, %v797, %v1439
    %v1573 = vsel %vm1307, %v800, %v1440
    %v1574 = vsel %vm1308, %v805, %v1441
    %v1575 = vsel %vm1309, %v808, %v1442
    %v1576 = vsel %vm1310, %v813, %v1443
    %v1577 = vsel %vm1311, %v816, %v1444
    %v1578 = vsel %vm1312, %v821, %v1445
    %v1579 = vsel %vm1313, %v824, %v1446
    %v1580 = vsel %vm1314, %v829, %v1447
    %v1581 = vsel %vm1315, %v832, %v1448
    %v1582 = vsel %vm1316, %v837, %v1449
    %v1583 = vsel %vm1317, %v840, %v1450
    %v1584 = vsel %vm1318, %v845, %v1451
    %v1585 = vsel %vm1319, %v848, %v1452
    %v1586 = vsel %vm1320, %v853, %v1453
    %v1587 = vsel %vm1321, %v856, %v1454
    %v1588 = vsel %vm1322, %v861, %v1455
    %v1589 = vsel %vm1323, %v864, %v1456
    %v1590 = vsel %vm1324, %v869, %v1457
    %v1591 = vsel %vm1325, %v872, %v1458
    %v1592 = vsel %vm1326, %v877, %v1459
    %v1593 = vsel %vm1327, %v880, %v1460
    %v1594 = vsel %vm1328, %v885, %v1461
    %v1595 = vsel %vm1329, %v888, %v1462
    %v1596 = vsel %vm1330, %v893, %v1463
    %v1597 = vsel %vm1331, %v896, %v1464
    %v1598 = vsel %vm1332, %v901, %v1465
    %v1599 = vsel %vm1333, %v904, %v1466
    %v1600 = vsel %vm1334, %v909, %v1467
    %v1601 = vsel %vm1335, %v912, %v1468
    %v1602 = vsel %vm1336, %v917, %v1469
    %v1603 = vsel %vm1337, %v920, %v1470
    %v1604 = vsel %vm1338, %v925, %v1471
    %v1605 = vsel %vm1339, %v928, %v1472
    %v1606 = vsel %vm1340, %v933, %v1473
    %v1607 = vsel %vm1341, %v936, %v1474
    %v1608 = vsel %vm1342, %v941, %v1475
    %v1609 = vsel %vm1343, %v944, %v1476
    %v1610 = vsel %vm1344, %v949, %v1477
    %v1611 = vsel %vm1345, %v952, %v1478
    %v1612 = vsel %vm1346, %v957, %v1479
    %v1613 = vsel %vm1347, %v960, %v1480
    %v1614 = vsel %vm1348, %v965, %v1481
    %v1615 = vsel %vm1349, %v968, %v1482
    %v1616 = vsel %vm1350, %v973, %v1483
    %v1617 = vsel %vm1351, %v976, %v1484
    %v1618 = vsel %vm1352, %v981, %v1485
    %v1619 = vsel %vm1353, %v984, %v1486
    %v1620 = vsel %vm1354, %v989, %v1487
    %v1621 = vsel %vm1355, %v992, %v1488
    %v1622 = vsel %vm1356, %v997, %v1489
    %v1623 = vsel %vm1357, %v1000, %v1490
    %v1624 = vsel %vm1358, %v1005, %v1491
    %v1625 = vsel %vm1359, %v1008, %v1492
    %v1626 = vsel %vm1360, %v1013, %v1493
    %v1627 = vsel %vm1361, %v1016, %v1494
    %v1628 = vsel %vm1362, %v1021, %v1495
    %v1629 = vsel %vm1363, %v1024, %v1496
    %v1630 = vsel %vm1364, %v1029, %v1497
    %v1631 = vsel %vm1365, %v1032, %v1498
    %v1632 = vsel %vm1366, %v1037, %v1499
    %v1633 = vsel %vm1367, %v1040, %v1500
    %v1634 = vsel %vm1368, %v1045, %v1501
    %v1635 = vsel %vm1369, %v1048, %v1502
    %v1636 = vsel %vm1370, %v1053, %v1503
    %v1637 = vsel %vm1371, %v1056, %v1504
    %v1638 = vsel %vm1372, %v1061, %v1505
    %v1639 = vsel %vm1373, %v1064, %v1506
    %v1640 = vsel %vm1374, %v1069, %v1507
    %v1641 = vsel %vm1375, %v1072, %v1508
    %v1642 = vsel %vm1376, %v1077, %v1509
    %v1643 = vsel %vm1377, %v1080, %v1510
    %v1644 = vsel %vm1378, %v1085, %v1511
    %v1645 = vsel %vm1379, %v1088, %v1512
    %v1646 = vsel %vm1380, %v1093, %v1513
    %v1647 = vsel %vm1381, %v1096, %v1514
    %v1648 = vsel %vm1382, %v1101, %v1515
    %v1649 = vsel %vm1383, %v1104, %v1516
    %v1650 = vsel %vm1384, %v1109, %v1517
    %v1651 = vsel %vm1385, %v1112, %v1518
    %v1652 = vsel %vm1386, %v1117, %v1519
    %v1653 = vsel %vm1387, %v1120, %v1520
    %v1654 = vsel %vm1388, %v1125, %v1521
    %v1655 = vsel %vm1389, %v1128, %v1522
    %v1656 = vsel %vm1390, %v1133, %v1523
    %v1657 = vsel %vm1391, %v1136, %v1524
    %v1658 = vsel %vm1392, %v1141, %v1525
    %v1659 = vsel %vm1393, %v1144, %v1526
    %v1660 = vsel %vm1394, %v1149, %v1527
    %v1661 = vsel %vm1395, %v1152, %v1528
    %v1662 = vsel %vm1396, %v1157, %v1529
    %v1663 = vsel %vm1397, %v1160, %v1530
    %v1664 = vsel %vm1398, %v1165, %v1531
    %v1665 = vsel %vm1399, %v1168, %v1532
    %v1666 = vsel %vm1400, %v1173, %v1533
    %v1667 = vsel %vm1401, %v1176, %v1534
    %v1668 = vsel %vm1402, %v1181, %v1535
    %v1669 = vsel %vm1403, %v1184, %v1536
    %v1670 = vsel %vm1404, %v1189, %v1537
    %v1671 = vsel %vm1405, %v1192, %v1538
    %v1672 = vsel %vm1406, %v1197, %v1539
    %v1673 = vsel %vm1407, %v1200, %v1540
    %v1674 = vsel %vm1408, %v1205, %v1541
    %v1675 = vsel %vm1409, %v1208, %v1542
    %v1676 = vsel %vm1410, %v1213, %v1543
    %v1677 = vsel %vm1411, %v1216, %v1544
    %v1678 = vsel %vm1412, %v1221, %v1545
    %v1679 = vsel %vm1413, %v1224, %v1546
    %v1680 = vsel %vm1414, %v1229, %v1547
    %v1681 = vsel %vm1415, %v1232, %v1548
    %v1682 = vsel %vm1416, %v1237, %v1549
    %v1683 = vsel %vm1417, %v1240, %v1550
    %v1684 = vsel %vm1418, %v1245, %v1551
    %v1685 = vsel %vm1419, %v1248, %v1552
    %v1686 = vsel %vm1420, %v1253, %v1553
    %v1687 = vsel %vm1421, %v1256, %v1554
    %v1688 = vsel %vm1422, %v1261, %v1555
    %v1689 = vsel %vm1423, %v1264, %v1556
    %v1690 = vsel %vm1424, %v1269, %v1557
    %v1691 = vsel %vm1425, %v1272, %v1558
    %v1692 = vsel %vm1426, %v1277, %v1559
    %v1693 = vsel %vm1427, %v1280, %v1560
    %v1694 = vsel %vm1428, %v1285, %v1561
    %v1695 = vsel %vm1429, %v1288, %v1562
    %v1696 = vsel %vm1430, %v1293, %v1563
    %v1697 = vpack.c.bf16 %v1565, %v1564
    %v1698 = vpack.c.bf16 %v1567, %v1566
    %v1699 = vpack.c.bf16 %v1569, %v1568
    %v1700 = vpack.c.bf16 %v1571, %v1570
    %v1701 = vpack.c.bf16 %v1573, %v1572
    %v1702 = vpack.c.bf16 %v1575, %v1574
    %v1703 = vpack.c.bf16 %v1577, %v1576
    %v1704 = vpack.c.bf16 %v1579, %v1578
    %v1705 = vpack.c.bf16 %v1581, %v1580
    %v1706 = vpack.c.bf16 %v1583, %v1582
    %v1707 = vpack.c.bf16 %v1585, %v1584
    %v1708 = vpack.c.bf16 %v1587, %v1586
    %v1709 = vpack.c.bf16 %v1589, %v1588
    %v1710 = vpack.c.bf16 %v1591, %v1590
    %v1711 = vpack.c.bf16 %v1593, %v1592
    %v1712 = vpack.c.bf16 %v1595, %v1594
    %v1713 = vpack.c.bf16 %v1597, %v1596
    %v1714 = vpack.c.bf16 %v1599, %v1598
    %v1715 = vpack.c.bf16 %v1601, %v1600
    %v1716 = vpack.c.bf16 %v1603, %v1602
    %v1717 = vpack.c.bf16 %v1605, %v1604
    %v1718 = vpack.c.bf16 %v1607, %v1606
    %v1719 = vpack.c.bf16 %v1609, %v1608
    %v1720 = vpack.c.bf16 %v1611, %v1610
    %v1721 = vpack.c.bf16 %v1613, %v1612
    %v1722 = vpack.c.bf16 %v1615, %v1614
    %v1723 = vpack.c.bf16 %v1617, %v1616
    %v1724 = vpack.c.bf16 %v1619, %v1618
    %v1725 = vpack.c.bf16 %v1621, %v1620
    %v1726 = vpack.c.bf16 %v1623, %v1622
    %v1727 = vpack.c.bf16 %v1625, %v1624
    %v1728 = vpack.c.bf16 %v1627, %v1626
    %v1729 = vpack.c.bf16 %v1629, %v1628
    %v1730 = vpack.c.bf16 %v1631, %v1630
    %v1731 = vpack.c.bf16 %v1633, %v1632
    %v1732 = vpack.c.bf16 %v1635, %v1634
    %v1733 = vpack.c.bf16 %v1637, %v1636
    %v1734 = vpack.c.bf16 %v1639, %v1638
    %v1735 = vpack.c.bf16 %v1641, %v1640
    %v1736 = vpack.c.bf16 %v1643, %v1642
    %v1737 = vpack.c.bf16 %v1645, %v1644
    %v1738 = vpack.c.bf16 %v1647, %v1646
    %v1739 = vpack.c.bf16 %v1649, %v1648
    %v1740 = vpack.c.bf16 %v1651, %v1650
    %v1741 = vpack.c.bf16 %v1653, %v1652
    %v1742 = vpack.c.bf16 %v1655, %v1654
    %v1743 = vpack.c.bf16 %v1657, %v1656
    %v1744 = vpack.c.bf16 %v1659, %v1658
    %v1745 = vpack.c.bf16 %v1661, %v1660
    %v1746 = vpack.c.bf16 %v1663, %v1662
    %v1747 = vpack.c.bf16 %v1665, %v1664
    %v1748 = vpack.c.bf16 %v1667, %v1666
    %v1749 = vpack.c.bf16 %v1669, %v1668
    %v1750 = vpack.c.bf16 %v1671, %v1670
    %v1751 = vpack.c.bf16 %v1673, %v1672
    %v1752 = vpack.c.bf16 %v1675, %v1674
    %v1753 = vpack.c.bf16 %v1677, %v1676
    %v1754 = vpack.c.bf16 %v1679, %v1678
    %v1755 = vpack.c.bf16 %v1681, %v1680
    %v1756 = vpack.c.bf16 %v1683, %v1682
    %v1757 = vpack.c.bf16 %v1685, %v1684
    %v1758 = vpack.c.bf16 %v1687, %v1686
    %v1759 = vpack.c.bf16 %v1689, %v1688
    %v1760 = vpack.c.bf16 %v1691, %v1690
    %v1761 = vpack.c.bf16 %v1693, %v1692
    %v1762 = vpack.c.bf16 %v1695, %v1694
    %v1763 = vpack.c.bf16 %v1696, %v1696
    %v1831 = vunpack.c.l.b16 %v1697
    %v1832 = vunpack.c.h.b16 %v1697
    %v1833 = vunpack.c.l.b16 %v1698
    %v1834 = vunpack.c.h.b16 %v1698
    %v1835 = vunpack.c.l.b16 %v1699
    %v1836 = vunpack.c.h.b16 %v1699
    %v1837 = vunpack.c.l.b16 %v1700
    %v1838 = vunpack.c.h.b16 %v1700
    %v1839 = vunpack.c.l.b16 %v1701
    %v1840 = vunpack.c.h.b16 %v1701
    %v1841 = vunpack.c.l.b16 %v1702
    %v1842 = vunpack.c.h.b16 %v1702
    %v1843 = vunpack.c.l.b16 %v1703
    %v1844 = vunpack.c.h.b16 %v1703
    %v1845 = vunpack.c.l.b16 %v1704
    %v1846 = vunpack.c.h.b16 %v1704
    %v1847 = vunpack.c.l.b16 %v1705
    %v1848 = vunpack.c.h.b16 %v1705
    %v1849 = vunpack.c.l.b16 %v1706
    %v1850 = vunpack.c.h.b16 %v1706
    %v1851 = vunpack.c.l.b16 %v1707
    %v1852 = vunpack.c.h.b16 %v1707
    %v1853 = vunpack.c.l.b16 %v1708
    %v1854 = vunpack.c.h.b16 %v1708
    %v1855 = vunpack.c.l.b16 %v1709
    %v1856 = vunpack.c.h.b16 %v1709
    %v1857 = vunpack.c.l.b16 %v1710
    %v1858 = vunpack.c.h.b16 %v1710
    %v1859 = vunpack.c.l.b16 %v1711
    %v1860 = vunpack.c.h.b16 %v1711
    %v1861 = vunpack.c.l.b16 %v1712
    %v1862 = vunpack.c.h.b16 %v1712
    %v1863 = vunpack.c.l.b16 %v1713
    %v1864 = vunpack.c.h.b16 %v1713
    %v1865 = vunpack.c.l.b16 %v1714
    %v1866 = vunpack.c.h.b16 %v1714
    %v1867 = vunpack.c.l.b16 %v1715
    %v1868 = vunpack.c.h.b16 %v1715
    %v1869 = vunpack.c.l.b16 %v1716
    %v1870 = vunpack.c.h.b16 %v1716
    %v1871 = vunpack.c.l.b16 %v1717
    %v1872 = vunpack.c.h.b16 %v1717
    %v1873 = vunpack.c.l.b16 %v1718
    %v1874 = vunpack.c.h.b16 %v1718
    %v1875 = vunpack.c.l.b16 %v1719
    %v1876 = vunpack.c.h.b16 %v1719
    %v1877 = vunpack.c.l.b16 %v1720
    %v1878 = vunpack.c.h.b16 %v1720
    %v1879 = vunpack.c.l.b16 %v1721
    %v1880 = vunpack.c.h.b16 %v1721
    %v1881 = vunpack.c.l.b16 %v1722
    %v1882 = vunpack.c.h.b16 %v1722
    %v1883 = vunpack.c.l.b16 %v1723
    %v1884 = vunpack.c.h.b16 %v1723
    %v1885 = vunpack.c.l.b16 %v1724
    %v1886 = vunpack.c.h.b16 %v1724
    %v1887 = vunpack.c.l.b16 %v1725
    %v1888 = vunpack.c.h.b16 %v1725
    %v1889 = vunpack.c.l.b16 %v1726
    %v1890 = vunpack.c.h.b16 %v1726
    %v1891 = vunpack.c.l.b16 %v1727
    %v1892 = vunpack.c.h.b16 %v1727
    %v1893 = vunpack.c.l.b16 %v1728
    %v1894 = vunpack.c.h.b16 %v1728
    %v1895 = vunpack.c.l.b16 %v1729
    %v1896 = vunpack.c.h.b16 %v1729
    %v1897 = vunpack.c.l.b16 %v1730
    %v1898 = vunpack.c.h.b16 %v1730
    %v1899 = vunpack.c.l.b16 %v1731
    %v1900 = vunpack.c.h.b16 %v1731
    %v1901 = vunpack.c.l.b16 %v1732
    %v1902 = vunpack.c.h.b16 %v1732
    %v1903 = vunpack.c.l.b16 %v1733
    %v1904 = vunpack.c.h.b16 %v1733
    %v1905 = vunpack.c.l.b16 %v1734
    %v1906 = vunpack.c.h.b16 %v1734
    %v1907 = vunpack.c.l.b16 %v1735
    %v1908 = vunpack.c.h.b16 %v1735
    %v1909 = vunpack.c.l.b16 %v1736
    %v1910 = vunpack.c.h.b16 %v1736
    %v1911 = vunpack.c.l.b16 %v1737
    %v1912 = vunpack.c.h.b16 %v1737
    %v1913 = vunpack.c.l.b16 %v1738
    %v1914 = vunpack.c.h.b16 %v1738
    %v1915 = vunpack.c.l.b16 %v1739
    %v1916 = vunpack.c.h.b16 %v1739
    %v1917 = vunpack.c.l.b16 %v1740
    %v1918 = vunpack.c.h.b16 %v1740
    %v1919 = vunpack.c.l.b16 %v1741
    %v1920 = vunpack.c.h.b16 %v1741
    %v1921 = vunpack.c.l.b16 %v1742
    %v1922 = vunpack.c.h.b16 %v1742
    %v1923 = vunpack.c.l.b16 %v1743
    %v1924 = vunpack.c.h.b16 %v1743
    %v1925 = vunpack.c.l.b16 %v1744
    %v1926 = vunpack.c.h.b16 %v1744
    %v1927 = vunpack.c.l.b16 %v1745
    %v1928 = vunpack.c.h.b16 %v1745
    %v1929 = vunpack.c.l.b16 %v1746
    %v1930 = vunpack.c.h.b16 %v1746
    %v1931 = vunpack.c.l.b16 %v1747
    %v1932 = vunpack.c.h.b16 %v1747
    %v1933 = vunpack.c.l.b16 %v1748
    %v1934 = vunpack.c.h.b16 %v1748
    %v1935 = vunpack.c.l.b16 %v1749
    %v1936 = vunpack.c.h.b16 %v1749
    %v1937 = vunpack.c.l.b16 %v1750
    %v1938 = vunpack.c.h.b16 %v1750
    %v1939 = vunpack.c.l.b16 %v1751
    %v1940 = vunpack.c.h.b16 %v1751
    %v1941 = vunpack.c.l.b16 %v1752
    %v1942 = vunpack.c.h.b16 %v1752
    %v1943 = vunpack.c.l.b16 %v1753
    %v1944 = vunpack.c.h.b16 %v1753
    %v1945 = vunpack.c.l.b16 %v1754
    %v1946 = vunpack.c.h.b16 %v1754
    %v1947 = vunpack.c.l.b16 %v1755
    %v1948 = vunpack.c.h.b16 %v1755
    %v1949 = vunpack.c.l.b16 %v1756
    %v1950 = vunpack.c.h.b16 %v1756
    %v1951 = vunpack.c.l.b16 %v1757
    %v1952 = vunpack.c.h.b16 %v1757
    %v1953 = vunpack.c.l.b16 %v1758
    %v1954 = vunpack.c.h.b16 %v1758
    %v1955 = vunpack.c.l.b16 %v1759
    %v1956 = vunpack.c.h.b16 %v1759
    %v1957 = vunpack.c.l.b16 %v1760
    %v1958 = vunpack.c.h.b16 %v1760
    %v1959 = vunpack.c.l.b16 %v1761
    %v1960 = vunpack.c.h.b16 %v1761
    %v1961 = vunpack.c.l.b16 %v1762
    %v1962 = vunpack.c.h.b16 %v1762
    %v1963 = vunpack.c.l.b16 %v1763
    %v1964 = vpack.c.b16 %v1831, %v1831
    %v1965 = vpack.c.b16 %v1832, %v1832
    %v1966 = vpack.c.b16 %v1833, %v1833
    %v1967 = vpack.c.b16 %v1834, %v1834
    %v1968 = vpack.c.b16 %v1835, %v1835
    %v1969 = vpack.c.b16 %v1836, %v1836
    %v1970 = vpack.c.b16 %v1837, %v1837
    %v1971 = vpack.c.b16 %v1838, %v1838
    %v1972 = vpack.c.b16 %v1839, %v1839
    %v1973 = vpack.c.b16 %v1840, %v1840
    %v1974 = vpack.c.b16 %v1841, %v1841
    %v1975 = vpack.c.b16 %v1842, %v1842
    %v1976 = vpack.c.b16 %v1843, %v1843
    %v1977 = vpack.c.b16 %v1844, %v1844
    %v1978 = vpack.c.b16 %v1845, %v1845
    %v1979 = vpack.c.b16 %v1846, %v1846
    %v1980 = vpack.c.b16 %v1847, %v1847
    %v1981 = vpack.c.b16 %v1848, %v1848
    %v1982 = vpack.c.b16 %v1849, %v1849
    %v1983 = vpack.c.b16 %v1850, %v1850
    %v1984 = vpack.c.b16 %v1851, %v1851
    %v1985 = vpack.c.b16 %v1852, %v1852
    %v1986 = vpack.c.b16 %v1853, %v1853
    %v1987 = vpack.c.b16 %v1854, %v1854
    %v1988 = vpack.c.b16 %v1855, %v1855
    %v1989 = vpack.c.b16 %v1856, %v1856
    %v1990 = vpack.c.b16 %v1857, %v1857
    %v1991 = vpack.c.b16 %v1858, %v1858
    %v1992 = vpack.c.b16 %v1859, %v1859
    %v1993 = vpack.c.b16 %v1860, %v1860
    %v1994 = vpack.c.b16 %v1861, %v1861
    %v1995 = vpack.c.b16 %v1862, %v1862
    %v1996 = vpack.c.b16 %v1863, %v1863
    %v1997 = vpack.c.b16 %v1864, %v1864
    %v1998 = vpack.c.b16 %v1865, %v1865
    %v1999 = vpack.c.b16 %v1866, %v1866
    %v2000 = vpack.c.b16 %v1867, %v1867
    %v2001 = vpack.c.b16 %v1868, %v1868
    %v2002 = vpack.c.b16 %v1869, %v1869
    %v2003 = vpack.c.b16 %v1870, %v1870
    %v2004 = vpack.c.b16 %v1871, %v1871
    %v2005 = vpack.c.b16 %v1872, %v1872
    %v2006 = vpack.c.b16 %v1873, %v1873
    %v2007 = vpack.c.b16 %v1874, %v1874
    %v2008 = vpack.c.b16 %v1875, %v1875
    %v2009 = vpack.c.b16 %v1876, %v1876
    %v2010 = vpack.c.b16 %v1877, %v1877
    %v2011 = vpack.c.b16 %v1878, %v1878
    %v2012 = vpack.c.b16 %v1879, %v1879
    %v2013 = vpack.c.b16 %v1880, %v1880
    %v2014 = vpack.c.b16 %v1881, %v1881
    %v2015 = vpack.c.b16 %v1882, %v1882
    %v2016 = vpack.c.b16 %v1883, %v1883
    %v2017 = vpack.c.b16 %v1884, %v1884
    %v2018 = vpack.c.b16 %v1885, %v1885
    %v2019 = vpack.c.b16 %v1886, %v1886
    %v2020 = vpack.c.b16 %v1887, %v1887
    %v2021 = vpack.c.b16 %v1888, %v1888
    %v2022 = vpack.c.b16 %v1889, %v1889
    %v2023 = vpack.c.b16 %v1890, %v1890
    %v2024 = vpack.c.b16 %v1891, %v1891
    %v2025 = vpack.c.b16 %v1892, %v1892
    %v2026 = vpack.c.b16 %v1893, %v1893
    %v2027 = vpack.c.b16 %v1894, %v1894
    %v2028 = vpack.c.b16 %v1895, %v1895
    %v2029 = vpack.c.b16 %v1896, %v1896
    %v2030 = vpack.c.b16 %v1897, %v1897
    %v2031 = vpack.c.b16 %v1898, %v1898
    %v2032 = vpack.c.b16 %v1899, %v1899
    %v2033 = vpack.c.b16 %v1900, %v1900
    %v2034 = vpack.c.b16 %v1901, %v1901
    %v2035 = vpack.c.b16 %v1902, %v1902
    %v2036 = vpack.c.b16 %v1903, %v1903
    %v2037 = vpack.c.b16 %v1904, %v1904
    %v2038 = vpack.c.b16 %v1905, %v1905
    %v2039 = vpack.c.b16 %v1906, %v1906
    %v2040 = vpack.c.b16 %v1907, %v1907
    %v2041 = vpack.c.b16 %v1908, %v1908
    %v2042 = vpack.c.b16 %v1909, %v1909
    %v2043 = vpack.c.b16 %v1910, %v1910
    %v2044 = vpack.c.b16 %v1911, %v1911
    %v2045 = vpack.c.b16 %v1912, %v1912
    %v2046 = vpack.c.b16 %v1913, %v1913
    %v2047 = vpack.c.b16 %v1914, %v1914
    %v2048 = vpack.c.b16 %v1915, %v1915
    %v2049 = vpack.c.b16 %v1916, %v1916
    %v2050 = vpack.c.b16 %v1917, %v1917
    %v2051 = vpack.c.b16 %v1918, %v1918
    %v2052 = vpack.c.b16 %v1919, %v1919
    %v2053 = vpack.c.b16 %v1920, %v1920
    %v2054 = vpack.c.b16 %v1921, %v1921
    %v2055 = vpack.c.b16 %v1922, %v1922
    %v2056 = vpack.c.b16 %v1923, %v1923
    %v2057 = vpack.c.b16 %v1924, %v1924
    %v2058 = vpack.c.b16 %v1925, %v1925
    %v2059 = vpack.c.b16 %v1926, %v1926
    %v2060 = vpack.c.b16 %v1927, %v1927
    %v2061 = vpack.c.b16 %v1928, %v1928
    %v2062 = vpack.c.b16 %v1929, %v1929
    %v2063 = vpack.c.b16 %v1930, %v1930
    %v2064 = vpack.c.b16 %v1931, %v1931
    %v2065 = vpack.c.b16 %v1932, %v1932
    %v2066 = vpack.c.b16 %v1933, %v1933
    %v2067 = vpack.c.b16 %v1934, %v1934
    %v2068 = vpack.c.b16 %v1935, %v1935
    %v2069 = vpack.c.b16 %v1936, %v1936
    %v2070 = vpack.c.b16 %v1937, %v1937
    %v2071 = vpack.c.b16 %v1938, %v1938
    %v2072 = vpack.c.b16 %v1939, %v1939
    %v2073 = vpack.c.b16 %v1940, %v1940
    %v2074 = vpack.c.b16 %v1941, %v1941
    %v2075 = vpack.c.b16 %v1942, %v1942
    %v2076 = vpack.c.b16 %v1943, %v1943
    %v2077 = vpack.c.b16 %v1944, %v1944
    %v2078 = vpack.c.b16 %v1945, %v1945
    %v2079 = vpack.c.b16 %v1946, %v1946
    %v2080 = vpack.c.b16 %v1947, %v1947
    %v2081 = vpack.c.b16 %v1948, %v1948
    %v2082 = vpack.c.b16 %v1949, %v1949
    %v2083 = vpack.c.b16 %v1950, %v1950
    %v2084 = vpack.c.b16 %v1951, %v1951
    %v2085 = vpack.c.b16 %v1952, %v1952
    %v2086 = vpack.c.b16 %v1953, %v1953
    %v2087 = vpack.c.b16 %v1954, %v1954
    %v2088 = vpack.c.b16 %v1955, %v1955
    %v2089 = vpack.c.b16 %v1956, %v1956
    %v2090 = vpack.c.b16 %v1957, %v1957
    %v2091 = vpack.c.b16 %v1958, %v1958
    %v2092 = vpack.c.b16 %v1959, %v1959
    %v2093 = vpack.c.b16 %v1960, %v1960
    %v2094 = vpack.c.b16 %v1961, %v1961
    %v2095 = vpack.c.b16 %v1962, %v1962
    %v2096 = vpack.c.b16 %v1963, %v1963
    %vm2230 = vcmask 257024
    %2231 = vst.msk [vmem:[%s3] sm:$0xf] %vm2230, %v1964
    %2232 = vst.msk [vmem:[%s3 + $0x4] sm:$0xf] %vm2230, %v1965
    %2233 = vst.msk [vmem:[%s3 + $0x8] sm:$0xf] %vm2230, %v1966
    %2234 = vst.msk [vmem:[%s3 + $0xc] sm:$0xf] %vm2230, %v1967
    %2235 = vst.msk [vmem:[%s3 + $0x10] sm:$0xf] %vm2230, %v1968
    %2236 = vst.msk [vmem:[%s3 + $0x14] sm:$0xf] %vm2230, %v1969
    %2237 = vst.msk [vmem:[%s3 + $0x18] sm:$0xf] %vm2230, %v1970
    %2238 = vst.msk [vmem:[%s3 + $0x1c] sm:$0xf] %vm2230, %v1971
    %2239 = vst.msk [vmem:[%s3 + $0x20] sm:$0xf] %vm2230, %v1972
    %2240 = vst.msk [vmem:[%s3 + $0x24] sm:$0xf] %vm2230, %v1973
    %2241 = vst.msk [vmem:[%s3 + $0x28] sm:$0xf] %vm2230, %v1974
    %2242 = vst.msk [vmem:[%s3 + $0x2c] sm:$0xf] %vm2230, %v1975
    %2243 = vst.msk [vmem:[%s3 + $0x30] sm:$0xf] %vm2230, %v1976
    %2244 = vst.msk [vmem:[%s3 + $0x34] sm:$0xf] %vm2230, %v1977
    %2245 = vst.msk [vmem:[%s3 + $0x38] sm:$0xf] %vm2230, %v1978
    %2246 = vst.msk [vmem:[%s3 + $0x3c] sm:$0xf] %vm2230, %v1979
    %2247 = vst.msk [vmem:[%s3 + $0x40] sm:$0xf] %vm2230, %v1980
    %2248 = vst.msk [vmem:[%s3 + $0x44] sm:$0xf] %vm2230, %v1981
    %2249 = vst.msk [vmem:[%s3 + $0x48] sm:$0xf] %vm2230, %v1982
    %2250 = vst.msk [vmem:[%s3 + $0x4c] sm:$0xf] %vm2230, %v1983
    %2251 = vst.msk [vmem:[%s3 + $0x50] sm:$0xf] %vm2230, %v1984
    %2252 = vst.msk [vmem:[%s3 + $0x54] sm:$0xf] %vm2230, %v1985
    %2253 = vst.msk [vmem:[%s3 + $0x58] sm:$0xf] %vm2230, %v1986
    %2254 = vst.msk [vmem:[%s3 + $0x5c] sm:$0xf] %vm2230, %v1987
    %2255 = vst.msk [vmem:[%s3 + $0x60] sm:$0xf] %vm2230, %v1988
    %2256 = vst.msk [vmem:[%s3 + $0x64] sm:$0xf] %vm2230, %v1989
    %2257 = vst.msk [vmem:[%s3 + $0x68] sm:$0xf] %vm2230, %v1990
    %2258 = vst.msk [vmem:[%s3 + $0x6c] sm:$0xf] %vm2230, %v1991
    %2259 = vst.msk [vmem:[%s3 + $0x70] sm:$0xf] %vm2230, %v1992
    %2260 = vst.msk [vmem:[%s3 + $0x74] sm:$0xf] %vm2230, %v1993
    %2261 = vst.msk [vmem:[%s3 + $0x78] sm:$0xf] %vm2230, %v1994
    %2262 = vst.msk [vmem:[%s3 + $0x7c] sm:$0xf] %vm2230, %v1995
    %2263 = vst.msk [vmem:[%s3 + $0x80] sm:$0xf] %vm2230, %v1996
    %2264 = vst.msk [vmem:[%s3 + $0x84] sm:$0xf] %vm2230, %v1997
    %2265 = vst.msk [vmem:[%s3 + $0x88] sm:$0xf] %vm2230, %v1998
    %2266 = vst.msk [vmem:[%s3 + $0x8c] sm:$0xf] %vm2230, %v1999
    %2267 = vst.msk [vmem:[%s3 + $0x90] sm:$0xf] %vm2230, %v2000
    %2268 = vst.msk [vmem:[%s3 + $0x94] sm:$0xf] %vm2230, %v2001
    %2269 = vst.msk [vmem:[%s3 + $0x98] sm:$0xf] %vm2230, %v2002
    %2270 = vst.msk [vmem:[%s3 + $0x9c] sm:$0xf] %vm2230, %v2003
    %2271 = vst.msk [vmem:[%s3 + $0xa0] sm:$0xf] %vm2230, %v2004
    %2272 = vst.msk [vmem:[%s3 + $0xa4] sm:$0xf] %vm2230, %v2005
    %2273 = vst.msk [vmem:[%s3 + $0xa8] sm:$0xf] %vm2230, %v2006
    %2274 = vst.msk [vmem:[%s3 + $0xac] sm:$0xf] %vm2230, %v2007
    %2275 = vst.msk [vmem:[%s3 + $0xb0] sm:$0xf] %vm2230, %v2008
    %2276 = vst.msk [vmem:[%s3 + $0xb4] sm:$0xf] %vm2230, %v2009
    %2277 = vst.msk [vmem:[%s3 + $0xb8] sm:$0xf] %vm2230, %v2010
    %2278 = vst.msk [vmem:[%s3 + $0xbc] sm:$0xf] %vm2230, %v2011
    %2279 = vst.msk [vmem:[%s3 + $0xc0] sm:$0xf] %vm2230, %v2012
    %2280 = vst.msk [vmem:[%s3 + $0xc4] sm:$0xf] %vm2230, %v2013
    %2281 = vst.msk [vmem:[%s3 + $0xc8] sm:$0xf] %vm2230, %v2014
    %2282 = vst.msk [vmem:[%s3 + $0xcc] sm:$0xf] %vm2230, %v2015
    %2283 = vst.msk [vmem:[%s3 + $0xd0] sm:$0xf] %vm2230, %v2016
    %2284 = vst.msk [vmem:[%s3 + $0xd4] sm:$0xf] %vm2230, %v2017
    %2285 = vst.msk [vmem:[%s3 + $0xd8] sm:$0xf] %vm2230, %v2018
    %2286 = vst.msk [vmem:[%s3 + $0xdc] sm:$0xf] %vm2230, %v2019
    %2287 = vst.msk [vmem:[%s3 + $0xe0] sm:$0xf] %vm2230, %v2020
    %2288 = vst.msk [vmem:[%s3 + $0xe4] sm:$0xf] %vm2230, %v2021
    %2289 = vst.msk [vmem:[%s3 + $0xe8] sm:$0xf] %vm2230, %v2022
    %2290 = vst.msk [vmem:[%s3 + $0xec] sm:$0xf] %vm2230, %v2023
    %2291 = vst.msk [vmem:[%s3 + $0xf0] sm:$0xf] %vm2230, %v2024
    %2292 = vst.msk [vmem:[%s3 + $0xf4] sm:$0xf] %vm2230, %v2025
    %2293 = vst.msk [vmem:[%s3 + $0xf8] sm:$0xf] %vm2230, %v2026
    %2294 = vst.msk [vmem:[%s3 + $0xfc] sm:$0xf] %vm2230, %v2027
    %2295 = vst.msk [vmem:[%s3 + $0x100] sm:$0xf] %vm2230, %v2028
    %2296 = vst.msk [vmem:[%s3 + $0x104] sm:$0xf] %vm2230, %v2029
    %2297 = vst.msk [vmem:[%s3 + $0x108] sm:$0xf] %vm2230, %v2030
    %2298 = vst.msk [vmem:[%s3 + $0x10c] sm:$0xf] %vm2230, %v2031
    %2299 = vst.msk [vmem:[%s3 + $0x110] sm:$0xf] %vm2230, %v2032
    %2300 = vst.msk [vmem:[%s3 + $0x114] sm:$0xf] %vm2230, %v2033
    %2301 = vst.msk [vmem:[%s3 + $0x118] sm:$0xf] %vm2230, %v2034
    %2302 = vst.msk [vmem:[%s3 + $0x11c] sm:$0xf] %vm2230, %v2035
    %2303 = vst.msk [vmem:[%s3 + $0x120] sm:$0xf] %vm2230, %v2036
    %2304 = vst.msk [vmem:[%s3 + $0x124] sm:$0xf] %vm2230, %v2037
    %2305 = vst.msk [vmem:[%s3 + $0x128] sm:$0xf] %vm2230, %v2038
    %2306 = vst.msk [vmem:[%s3 + $0x12c] sm:$0xf] %vm2230, %v2039
    %2307 = vst.msk [vmem:[%s3 + $0x130] sm:$0xf] %vm2230, %v2040
    %2308 = vst.msk [vmem:[%s3 + $0x134] sm:$0xf] %vm2230, %v2041
    %2309 = vst.msk [vmem:[%s3 + $0x138] sm:$0xf] %vm2230, %v2042
    %2310 = vst.msk [vmem:[%s3 + $0x13c] sm:$0xf] %vm2230, %v2043
    %2311 = vst.msk [vmem:[%s3 + $0x140] sm:$0xf] %vm2230, %v2044
    %2312 = vst.msk [vmem:[%s3 + $0x144] sm:$0xf] %vm2230, %v2045
    %2313 = vst.msk [vmem:[%s3 + $0x148] sm:$0xf] %vm2230, %v2046
    %2314 = vst.msk [vmem:[%s3 + $0x14c] sm:$0xf] %vm2230, %v2047
    %2315 = vst.msk [vmem:[%s3 + $0x150] sm:$0xf] %vm2230, %v2048
    %2316 = vst.msk [vmem:[%s3 + $0x154] sm:$0xf] %vm2230, %v2049
    %2317 = vst.msk [vmem:[%s3 + $0x158] sm:$0xf] %vm2230, %v2050
    %2318 = vst.msk [vmem:[%s3 + $0x15c] sm:$0xf] %vm2230, %v2051
    %2319 = vst.msk [vmem:[%s3 + $0x160] sm:$0xf] %vm2230, %v2052
    %2320 = vst.msk [vmem:[%s3 + $0x164] sm:$0xf] %vm2230, %v2053
    %2321 = vst.msk [vmem:[%s3 + $0x168] sm:$0xf] %vm2230, %v2054
    %2322 = vst.msk [vmem:[%s3 + $0x16c] sm:$0xf] %vm2230, %v2055
    %2323 = vst.msk [vmem:[%s3 + $0x170] sm:$0xf] %vm2230, %v2056
    %2324 = vst.msk [vmem:[%s3 + $0x174] sm:$0xf] %vm2230, %v2057
    %2325 = vst.msk [vmem:[%s3 + $0x178] sm:$0xf] %vm2230, %v2058
    %2326 = vst.msk [vmem:[%s3 + $0x17c] sm:$0xf] %vm2230, %v2059
    %2327 = vst.msk [vmem:[%s3 + $0x180] sm:$0xf] %vm2230, %v2060
    %2328 = vst.msk [vmem:[%s3 + $0x184] sm:$0xf] %vm2230, %v2061
    %2329 = vst.msk [vmem:[%s3 + $0x188] sm:$0xf] %vm2230, %v2062
    %2330 = vst.msk [vmem:[%s3 + $0x18c] sm:$0xf] %vm2230, %v2063
    %2331 = vst.msk [vmem:[%s3 + $0x190] sm:$0xf] %vm2230, %v2064
    %2332 = vst.msk [vmem:[%s3 + $0x194] sm:$0xf] %vm2230, %v2065
    %2333 = vst.msk [vmem:[%s3 + $0x198] sm:$0xf] %vm2230, %v2066
    %2334 = vst.msk [vmem:[%s3 + $0x19c] sm:$0xf] %vm2230, %v2067
    %2335 = vst.msk [vmem:[%s3 + $0x1a0] sm:$0xf] %vm2230, %v2068
    %2336 = vst.msk [vmem:[%s3 + $0x1a4] sm:$0xf] %vm2230, %v2069
    %2337 = vst.msk [vmem:[%s3 + $0x1a8] sm:$0xf] %vm2230, %v2070
    %2338 = vst.msk [vmem:[%s3 + $0x1ac] sm:$0xf] %vm2230, %v2071
    %2339 = vst.msk [vmem:[%s3 + $0x1b0] sm:$0xf] %vm2230, %v2072
    %2340 = vst.msk [vmem:[%s3 + $0x1b4] sm:$0xf] %vm2230, %v2073
    %2341 = vst.msk [vmem:[%s3 + $0x1b8] sm:$0xf] %vm2230, %v2074
    %2342 = vst.msk [vmem:[%s3 + $0x1bc] sm:$0xf] %vm2230, %v2075
    %2343 = vst.msk [vmem:[%s3 + $0x1c0] sm:$0xf] %vm2230, %v2076
    %2344 = vst.msk [vmem:[%s3 + $0x1c4] sm:$0xf] %vm2230, %v2077
    %2345 = vst.msk [vmem:[%s3 + $0x1c8] sm:$0xf] %vm2230, %v2078
    %2346 = vst.msk [vmem:[%s3 + $0x1cc] sm:$0xf] %vm2230, %v2079
    %2347 = vst.msk [vmem:[%s3 + $0x1d0] sm:$0xf] %vm2230, %v2080
    %2348 = vst.msk [vmem:[%s3 + $0x1d4] sm:$0xf] %vm2230, %v2081
    %2349 = vst.msk [vmem:[%s3 + $0x1d8] sm:$0xf] %vm2230, %v2082
    %2350 = vst.msk [vmem:[%s3 + $0x1dc] sm:$0xf] %vm2230, %v2083
    %2351 = vst.msk [vmem:[%s3 + $0x1e0] sm:$0xf] %vm2230, %v2084
    %2352 = vst.msk [vmem:[%s3 + $0x1e4] sm:$0xf] %vm2230, %v2085
    %2353 = vst.msk [vmem:[%s3 + $0x1e8] sm:$0xf] %vm2230, %v2086
    %2354 = vst.msk [vmem:[%s3 + $0x1ec] sm:$0xf] %vm2230, %v2087
    %2355 = vst.msk [vmem:[%s3 + $0x1f0] sm:$0xf] %vm2230, %v2088
    %2356 = vst.msk [vmem:[%s3 + $0x1f4] sm:$0xf] %vm2230, %v2089
    %2357 = vst.msk [vmem:[%s3 + $0x1f8] sm:$0xf] %vm2230, %v2090
    %2358 = vst.msk [vmem:[%s3 + $0x1fc] sm:$0xf] %vm2230, %v2091
    %2359 = vst.msk [vmem:[%s3 + $0x200] sm:$0xf] %vm2230, %v2092
    %2360 = vst.msk [vmem:[%s3 + $0x204] sm:$0xf] %vm2230, %v2093
    %2361 = vst.msk [vmem:[%s3 + $0x208] sm:$0xf] %vm2230, %v2094
    %2362 = vst.msk [vmem:[%s3 + $0x20c] sm:$0xf] %vm2230, %v2095
    %vm2363 = vcmask 253952
    %2364 = vst.msk [vmem:[%s3 + $0x210] sm:$0x1] %vm2363, %v2096
    // Predicated region
    $region22: #{discriminator_forward.4} parent=1 // pred_check
      _
    $region23: #{discriminator_forward.4} parent=1 // pred_check_branch
      %2366 = sbr.rel (0) target = $region25
    $region24: #{discriminator_forward.4} parent=1 // pred_region
      _
    $region25: #{discriminator_forward.4} parent=1 // pred_fallthru
      _
    // Predicated region
    $region26: #{discriminator_forward.4} parent=1 // pred_check
      _
    $region27: #{discriminator_forward.4} parent=1 // pred_check_branch
      %2368 = sbr.rel (0) target = $region29
    $region28: #{discriminator_forward.4} parent=1 // pred_region
      _
    $region29: #{discriminator_forward.4} parent=1 // pred_fallthru
      _
    %2369 = vsyncpa [#allocation3], 1
    %2370 = vsyncpa [#allocation5], 1

// kernel: discriminator_forward.5
$region0: #{discriminator_forward.5}
  #allocation0 [shape = 'u32[]', space=smem, size = 0x4, offset = 0x4, fixed_abs, tag = 'smem constant byte address 0x4 - core index']
  #allocation1 [shape = 'u32[144,128]{1,0:T(1,128)}', space=vmem, size = 0x12000, scoped, tag = 'internal scratch']
  %s0 = inlined_call_operand.vmem [shape: bf16[242,288], index: 0, kind: input, shape index: {}]
  %s1 = inlined_call_operand.vmem [shape: bf16[288,64], index: 1, kind: input, shape index: {}]
  %s2 = inlined_call_operand.vmem [shape: f32[1,64], index: 2, kind: input, shape index: {}]
  %s3 = inlined_call_operand.vmem [shape: f32[1,64], index: 3, kind: input, shape index: {}]
  %s4 = inlined_call_operand.vmem [shape: f32[1,64], index: 4, kind: input, shape index: {}]
  %s5 = inlined_call_operand.vmem [shape: bf16[242,64], index: 5, kind: output, shape index: {}]
  %s6 = sld [smem:[#allocation0]]
  $region30: #{discriminator_forward.5} parent=0
    _
  %s8 = ssub.s32 1, %s6
  %s9 = scalar_select 0, %s8, %s6
  // Predicated region
  $region2: #{discriminator_forward.5} parent=0 // pred_check
    _
  $region3: #{discriminator_forward.5} parent=0 // pred_check_branch
    %11 = sbr.rel (0) target = $region5
  $region4: #{discriminator_forward.5} parent=0 // pred_region
    _
  $region5: #{discriminator_forward.5} parent=0 // pred_fallthru
    _
  // Predicated region
  $region6: #{discriminator_forward.5} parent=0 // pred_check
    _
  $region7: #{discriminator_forward.5} parent=0 // pred_check_branch
    %13 = sbr.rel (0) target = $region9
  $region8: #{discriminator_forward.5} parent=0 // pred_region
    _
  $region9: #{discriminator_forward.5} parent=0 // pred_fallthru
    _
  // Predicated region
  $region10: #{discriminator_forward.5} parent=0 // pred_check
    _
  $region11: #{discriminator_forward.5} parent=0 // pred_check_branch
    %15 = sbr.rel (0) target = $region13
  $region12: #{discriminator_forward.5} parent=0 // pred_region
    _
  $region13: #{discriminator_forward.5} parent=0 // pred_fallthru
    _
  // Predicated region
  $region14: #{discriminator_forward.5} parent=0 // pred_check
    _
  $region15: #{discriminator_forward.5} parent=0 // pred_check_branch
    %17 = sbr.rel (0) target = $region17
  $region16: #{discriminator_forward.5} parent=0 // pred_region
    _
  $region17: #{discriminator_forward.5} parent=0 // pred_fallthru
    _
  // Predicated region
  $region18: #{discriminator_forward.5} parent=0 // pred_check
    _
  $region19: #{discriminator_forward.5} parent=0 // pred_check_branch
    %19 = sbr.rel (0) target = $region21
  $region20: #{discriminator_forward.5} parent=0 // pred_region
    _
  $region21: #{discriminator_forward.5} parent=0 // pred_fallthru
    _
  %v21 = vld [vmem:[%s0] sm:$0xff]
  %v22 = vld [vmem:[%s0 + $0x8] sm:$0xf]
  %v23 = vld [vmem:[%s0 + $0xc] sm:$0xff]
  %v24 = vld [vmem:[%s0 + $0x14] sm:$0xf]
  %v25 = vld [vmem:[%s0 + $0x18] sm:$0xff]
  %v26 = vld [vmem:[%s0 + $0x20] sm:$0xf]
  %v27 = vld [vmem:[%s0 + $0x24] sm:$0xff]
  %v28 = vld [vmem:[%s0 + $0x2c] sm:$0xf]
  %v29 = vld [vmem:[%s0 + $0x30] sm:$0xff]
  %v30 = vld [vmem:[%s0 + $0x38] sm:$0xf]
  %v31 = vld [vmem:[%s0 + $0x3c] sm:$0xff]
  %v32 = vld [vmem:[%s0 + $0x44] sm:$0xf]
  %v33 = vld [vmem:[%s0 + $0x48] sm:$0xff]
  %v34 = vld [vmem:[%s0 + $0x50] sm:$0xf]
  %v35 = vld [vmem:[%s0 + $0x54] sm:$0xff]
  %v36 = vld [vmem:[%s0 + $0x5c] sm:$0xf]
  %v37 = vld [vmem:[%s0 + $0x60] sm:$0xff]
  %v38 = vld [vmem:[%s0 + $0x68] sm:$0xf]
  %v39 = vld [vmem:[%s0 + $0x6c] sm:$0xff]
  %v40 = vld [vmem:[%s0 + $0x74] sm:$0xf]
  %v41 = vld [vmem:[%s0 + $0x78] sm:$0xff]
  %v42 = vld [vmem:[%s0 + $0x80] sm:$0xf]
  %v43 = vld [vmem:[%s0 + $0x84] sm:$0xff]
  %v44 = vld [vmem:[%s0 + $0x8c] sm:$0xf]
  %v45 = vld [vmem:[%s0 + $0x90] sm:$0xff]
  %v46 = vld [vmem:[%s0 + $0x98] sm:$0xf]
  %v47 = vld [vmem:[%s0 + $0x9c] sm:$0xff]
  %v48 = vld [vmem:[%s0 + $0xa4] sm:$0xf]
  %v49 = vld [vmem:[%s0 + $0xa8] sm:$0xff]
  %v50 = vld [vmem:[%s0 + $0xb0] sm:$0xf]
  %v51 = vld [vmem:[%s0 + $0xb4] sm:$0xff]
  %v52 = vld [vmem:[%s0 + $0xbc] sm:$0xf]
  %v53 = vld [vmem:[%s0 + $0xc0] sm:$0xff]
  %v54 = vld [vmem:[%s0 + $0xc8] sm:$0xf]
  %v55 = vld [vmem:[%s0 + $0xcc] sm:$0xff]
  %v56 = vld [vmem:[%s0 + $0xd4] sm:$0xf]
  %v57 = vld [vmem:[%s0 + $0xd8] sm:$0xff]
  %v58 = vld [vmem:[%s0 + $0xe0] sm:$0xf]
  %v59 = vld [vmem:[%s0 + $0xe4] sm:$0xff]
  %v60 = vld [vmem:[%s0 + $0xec] sm:$0xf]
  %v61 = vld [vmem:[%s0 + $0xf0] sm:$0xff]
  %v62 = vld [vmem:[%s0 + $0xf8] sm:$0xf]
  %v63 = vld [vmem:[%s0 + $0xfc] sm:$0xff]
  %v64 = vld [vmem:[%s0 + $0x104] sm:$0xf]
  %v65 = vld [vmem:[%s0 + $0x108] sm:$0xff]
  %v66 = vld [vmem:[%s0 + $0x110] sm:$0xf]
  %v67 = vld [vmem:[%s0 + $0x114] sm:$0xff]
  %v68 = vld [vmem:[%s0 + $0x11c] sm:$0xf]
  %v69 = vld [vmem:[%s0 + $0x120] sm:$0xff]
  %v70 = vld [vmem:[%s0 + $0x128] sm:$0xf]
  %v71 = vld [vmem:[%s0 + $0x12c] sm:$0xff]
  %v72 = vld [vmem:[%s0 + $0x134] sm:$0xf]
  %v73 = vld [vmem:[%s0 + $0x138] sm:$0xff]
  %v74 = vld [vmem:[%s0 + $0x140] sm:$0xf]
  %v75 = vld [vmem:[%s0 + $0x144] sm:$0xff]
  %v76 = vld [vmem:[%s0 + $0x14c] sm:$0xf]
  %v77 = vld [vmem:[%s0 + $0x150] sm:$0xff]
  %v78 = vld [vmem:[%s0 + $0x158] sm:$0xf]
  %v79 = vld [vmem:[%s0 + $0x15c] sm:$0xff]
  %v80 = vld [vmem:[%s0 + $0x164] sm:$0xf]
  %v81 = vld [vmem:[%s0 + $0x168] sm:$0x11]
  %v82 = vld [vmem:[%s0 + $0x170] sm:$0x1]
  %v83 = vld [vmem:[%s1] sm:$0xf]
  %v84 = vld [vmem:[%s1 + $0x4] sm:$0xf]
  %v85 = vld [vmem:[%s1 + $0x8] sm:$0xf]
  %v86 = vld [vmem:[%s1 + $0xc] sm:$0xf]
  %v87 = vld [vmem:[%s1 + $0x10] sm:$0xf]
  %v88 = vld [vmem:[%s1 + $0x14] sm:$0xf]
  %v89 = vld [vmem:[%s1 + $0x18] sm:$0xf]
  %v90 = vld [vmem:[%s1 + $0x1c] sm:$0xf]
  %v91 = vld [vmem:[%s1 + $0x20] sm:$0xf]
  %v92 = vld [vmem:[%s1 + $0x24] sm:$0xf]
  %v93 = vld [vmem:[%s1 + $0x28] sm:$0xf]
  %v94 = vld [vmem:[%s1 + $0x2c] sm:$0xf]
  %v95 = vld [vmem:[%s1 + $0x30] sm:$0xf]
  %v96 = vld [vmem:[%s1 + $0x34] sm:$0xf]
  %v97 = vld [vmem:[%s1 + $0x38] sm:$0xf]
  %v98 = vld [vmem:[%s1 + $0x3c] sm:$0xf]
  %v99 = vld [vmem:[%s1 + $0x40] sm:$0xf]
  %v100 = vld [vmem:[%s1 + $0x44] sm:$0xf]
  %v101 = vld [vmem:[%s1 + $0x48] sm:$0xf]
  %v102 = vld [vmem:[%s1 + $0x4c] sm:$0xf]
  %v103 = vld [vmem:[%s1 + $0x50] sm:$0xf]
  %v104 = vld [vmem:[%s1 + $0x54] sm:$0xf]
  %v105 = vld [vmem:[%s1 + $0x58] sm:$0xf]
  %v106 = vld [vmem:[%s1 + $0x5c] sm:$0xf]
  %v107 = vld [vmem:[%s1 + $0x60] sm:$0xf]
  %v108 = vld [vmem:[%s1 + $0x64] sm:$0xf]
  %v109 = vld [vmem:[%s1 + $0x68] sm:$0xf]
  %v110 = vld [vmem:[%s1 + $0x6c] sm:$0xf]
  %v111 = vld [vmem:[%s1 + $0x70] sm:$0xf]
  %v112 = vld [vmem:[%s1 + $0x74] sm:$0xf]
  %v113 = vld [vmem:[%s1 + $0x78] sm:$0xf]
  %v114 = vld [vmem:[%s1 + $0x7c] sm:$0xf]
  %v115 = vld [vmem:[%s1 + $0x80] sm:$0xf]
  %v116 = vld [vmem:[%s1 + $0x84] sm:$0xf]
  %v117 = vld [vmem:[%s1 + $0x88] sm:$0xf]
  %v118 = vld [vmem:[%s1 + $0x8c] sm:$0xf]
  %v119 = vld [vmem:[%s2] sm:$0x1]
  %v121 = vlaneseq
  %v122 = vshrl.u32 %v121, 7
  %v123 = vsub.s32 0, %v122
  %v124 = vrot.slane %v119, %v123
  %v188 = vunpack.c.l.b16 %v21
  %v189 = vunpack.c.h.b16 %v21
  %v190 = vunpack.c.l.b16 %v22
  %v191 = vunpack.c.l.b16 %v23
  %v192 = vunpack.c.h.b16 %v23
  %v193 = vunpack.c.l.b16 %v24
  %v194 = vunpack.c.l.b16 %v25
  %v195 = vunpack.c.h.b16 %v25
  %v196 = vunpack.c.l.b16 %v26
  %v197 = vunpack.c.l.b16 %v27
  %v198 = vunpack.c.h.b16 %v27
  %v199 = vunpack.c.l.b16 %v28
  %v200 = vunpack.c.l.b16 %v29
  %v201 = vunpack.c.h.b16 %v29
  %v202 = vunpack.c.l.b16 %v30
  %v203 = vunpack.c.l.b16 %v31
  %v204 = vunpack.c.h.b16 %v31
  %v205 = vunpack.c.l.b16 %v32
  %v206 = vunpack.c.l.b16 %v33
  %v207 = vunpack.c.h.b16 %v33
  %v208 = vunpack.c.l.b16 %v34
  %v209 = vunpack.c.l.b16 %v35
  %v210 = vunpack.c.h.b16 %v35
  %v211 = vunpack.c.l.b16 %v36
  %v212 = vunpack.c.l.b16 %v37
  %v213 = vunpack.c.h.b16 %v37
  %v214 = vunpack.c.l.b16 %v38
  %v215 = vunpack.c.l.b16 %v39
  %v216 = vunpack.c.h.b16 %v39
  %v217 = vunpack.c.l.b16 %v40
  %v218 = vunpack.c.l.b16 %v41
  %v219 = vunpack.c.h.b16 %v41
  %v220 = vunpack.c.l.b16 %v42
  %v221 = vunpack.c.l.b16 %v43
  %v222 = vunpack.c.h.b16 %v43
  %v223 = vunpack.c.l.b16 %v44
  %v224 = vunpack.c.l.b16 %v45
  %v225 = vunpack.c.h.b16 %v45
  %v226 = vunpack.c.l.b16 %v46
  %v227 = vunpack.c.l.b16 %v47
  %v228 = vunpack.c.h.b16 %v47
  %v229 = vunpack.c.l.b16 %v48
  %v230 = vunpack.c.l.b16 %v49
  %v231 = vunpack.c.h.b16 %v49
  %v232 = vunpack.c.l.b16 %v50
  %v233 = vunpack.c.l.b16 %v51
  %v234 = vunpack.c.h.b16 %v51
  %v235 = vunpack.c.l.b16 %v52
  %v236 = vunpack.c.l.b16 %v53
  %v237 = vunpack.c.h.b16 %v53
  %v238 = vunpack.c.l.b16 %v54
  %v239 = vunpack.c.l.b16 %v55
  %v240 = vunpack.c.h.b16 %v55
  %v241 = vunpack.c.l.b16 %v56
  %v242 = vunpack.c.l.b16 %v57
  %v243 = vunpack.c.h.b16 %v57
  %v244 = vunpack.c.l.b16 %v58
  %v245 = vunpack.c.l.b16 %v59
  %v246 = vunpack.c.h.b16 %v59
  %v247 = vunpack.c.l.b16 %v60
  %v248 = vunpack.c.l.b16 %v61
  %v249 = vunpack.c.h.b16 %v61
  %v250 = vunpack.c.l.b16 %v62
  %v251 = vunpack.c.l.b16 %v63
  %v252 = vunpack.c.h.b16 %v63
  %v253 = vunpack.c.l.b16 %v64
  %v254 = vunpack.c.l.b16 %v65
  %v255 = vunpack.c.h.b16 %v65
  %v256 = vunpack.c.l.b16 %v66
  %v257 = vunpack.c.l.b16 %v67
  %v258 = vunpack.c.h.b16 %v67
  %v259 = vunpack.c.l.b16 %v68
  %v260 = vunpack.c.l.b16 %v69
  %v261 = vunpack.c.h.b16 %v69
  %v262 = vunpack.c.l.b16 %v70
  %v263 = vunpack.c.l.b16 %v71
  %v264 = vunpack.c.h.b16 %v71
  %v265 = vunpack.c.l.b16 %v72
  %v266 = vunpack.c.l.b16 %v73
  %v267 = vunpack.c.h.b16 %v73
  %v268 = vunpack.c.l.b16 %v74
  %v269 = vunpack.c.l.b16 %v75
  %v270 = vunpack.c.h.b16 %v75
  %v271 = vunpack.c.l.b16 %v76
  %v272 = vunpack.c.l.b16 %v77
  %v273 = vunpack.c.h.b16 %v77
  %v274 = vunpack.c.l.b16 %v78
  %v275 = vunpack.c.l.b16 %v79
  %v276 = vunpack.c.h.b16 %v79
  %v277 = vunpack.c.l.b16 %v80
  %v278 = vunpack.c.l.b16 %v81
  %v279 = vunpack.c.h.b16 %v81
  %v280 = vunpack.c.l.b16 %v82
  %v281 = vpack.c.b16 %v191, %v188
  %v282 = vpack.c.b16 %v192, %v189
  %v283 = vpack.c.b16 %v193, %v190
  %v284 = vpack.c.b16 %v197, %v194
  %v285 = vpack.c.b16 %v198, %v195
  %v286 = vpack.c.b16 %v199, %v196
  %v287 = vpack.c.b16 %v203, %v200
  %v288 = vpack.c.b16 %v204, %v201
  %v289 = vpack.c.b16 %v205, %v202
  %v290 = vpack.c.b16 %v209, %v206
  %v291 = vpack.c.b16 %v210, %v207
  %v292 = vpack.c.b16 %v211, %v208
  %v293 = vpack.c.b16 %v215, %v212
  %v294 = vpack.c.b16 %v216, %v213
  %v295 = vpack.c.b16 %v217, %v214
  %v296 = vpack.c.b16 %v221, %v218
  %v297 = vpack.c.b16 %v222, %v219
  %v298 = vpack.c.b16 %v223, %v220
  %v299 = vpack.c.b16 %v227, %v224
  %v300 = vpack.c.b16 %v228, %v225
  %v301 = vpack.c.b16 %v229, %v226
  %v302 = vpack.c.b16 %v233, %v230
  %v303 = vpack.c.b16 %v234, %v231
  %v304 = vpack.c.b16 %v235, %v232
  %v305 = vpack.c.b16 %v239, %v236
  %v306 = vpack.c.b16 %v240, %v237
  %v307 = vpack.c.b16 %v241, %v238
  %v308 = vpack.c.b16 %v245, %v242
  %v309 = vpack.c.b16 %v246, %v243
  %v310 = vpack.c.b16 %v247, %v244
  %v311 = vpack.c.b16 %v251, %v248
  %v312 = vpack.c.b16 %v252, %v249
  %v313 = vpack.c.b16 %v253, %v250
  %v314 = vpack.c.b16 %v257, %v254
  %v315 = vpack.c.b16 %v258, %v255
  %v316 = vpack.c.b16 %v259, %v256
  %v317 = vpack.c.b16 %v263, %v260
  %v318 = vpack.c.b16 %v264, %v261
  %v319 = vpack.c.b16 %v265, %v262
  %v320 = vpack.c.b16 %v269, %v266
  %v321 = vpack.c.b16 %v270, %v267
  %v322 = vpack.c.b16 %v271, %v268
  %v323 = vpack.c.b16 %v275, %v272
  %v324 = vpack.c.b16 %v276, %v273
  %v325 = vpack.c.b16 %v277, %v274
  %v326 = vpack.c.b16 %v278, %v278
  %v327 = vpack.c.b16 %v279, %v279
  %v328 = vpack.c.b16 %v280, %v280
  %v397 = vunpack.c.l.b16 %v83
  %v398 = vunpack.c.l.b16 %v84
  %v399 = vunpack.c.l.b16 %v85
  %v400 = vunpack.c.l.b16 %v86
  %v401 = vunpack.c.l.b16 %v87
  %v402 = vunpack.c.l.b16 %v88
  %v403 = vunpack.c.l.b16 %v89
  %v404 = vunpack.c.l.b16 %v90
  %v405 = vunpack.c.l.b16 %v91
  %v406 = vunpack.c.l.b16 %v92
  %v407 = vunpack.c.l.b16 %v93
  %v408 = vunpack.c.l.b16 %v94
  %v409 = vunpack.c.l.b16 %v95
  %v410 = vunpack.c.l.b16 %v96
  %v411 = vunpack.c.l.b16 %v97
  %v412 = vunpack.c.l.b16 %v98
  %v413 = vunpack.c.l.b16 %v99
  %v414 = vunpack.c.l.b16 %v100
  %v415 = vunpack.c.l.b16 %v101
  %v416 = vunpack.c.l.b16 %v102
  %v417 = vunpack.c.l.b16 %v103
  %v418 = vunpack.c.l.b16 %v104
  %v419 = vunpack.c.l.b16 %v105
  %v420 = vunpack.c.l.b16 %v106
  %v421 = vunpack.c.l.b16 %v107
  %v422 = vunpack.c.l.b16 %v108
  %v423 = vunpack.c.l.b16 %v109
  %v424 = vunpack.c.l.b16 %v110
  %v425 = vunpack.c.l.b16 %v111
  %v426 = vunpack.c.l.b16 %v112
  %v427 = vunpack.c.l.b16 %v113
  %v428 = vunpack.c.l.b16 %v114
  %v429 = vunpack.c.l.b16 %v115
  %v430 = vunpack.c.l.b16 %v116
  %v431 = vunpack.c.l.b16 %v117
  %v432 = vunpack.c.l.b16 %v118
  %v433 = vpack.c.b16 %v398, %v397
  %v434 = vpack.c.b16 %v400, %v399
  %v435 = vpack.c.b16 %v402, %v401
  %v436 = vpack.c.b16 %v404, %v403
  %v437 = vpack.c.b16 %v406, %v405
  %v438 = vpack.c.b16 %v408, %v407
  %v439 = vpack.c.b16 %v410, %v409
  %v440 = vpack.c.b16 %v412, %v411
  %v441 = vpack.c.b16 %v414, %v413
  %v442 = vpack.c.b16 %v416, %v415
  %v443 = vpack.c.b16 %v418, %v417
  %v444 = vpack.c.b16 %v420, %v419
  %v445 = vpack.c.b16 %v422, %v421
  %v446 = vpack.c.b16 %v424, %v423
  %v447 = vpack.c.b16 %v426, %v425
  %v448 = vpack.c.b16 %v428, %v427
  %v449 = vpack.c.b16 %v430, %v429
  %v450 = vpack.c.b16 %v432, %v431
  %vm469 = vcmask 261120
  %v471 = vsel %vm469, %v283, 0
  %v474 = vsel %vm469, %v286, 0
  %v477 = vsel %vm469, %v289, 0
  %v480 = vsel %vm469, %v292, 0
  %v483 = vsel %vm469, %v295, 0
  %v486 = vsel %vm469, %v298, 0
  %v489 = vsel %vm469, %v301, 0
  %v492 = vsel %vm469, %v304, 0
  %v495 = vsel %vm469, %v307, 0
  %v498 = vsel %vm469, %v310, 0
  %v501 = vsel %vm469, %v313, 0
  %v504 = vsel %vm469, %v316, 0
  %v507 = vsel %vm469, %v319, 0
  %v510 = vsel %vm469, %v322, 0
  %v513 = vsel %vm469, %v325, 0
  %v516 = vsel %vm469, %v328, 0
  %518 = vmatprep.subr.bf16.mxu0 0
  %519 = vmatpush1.bf16.msra.mxu0 %v433
  %520 = vmatprep.subr.bf16.mxu0 0
  %521 = vmatpush1.bf16.msra.mxu0 %v434
  %522 = vmatprep.subr.bf16.mxu0 0
  %523 = vmatpush1.bf16.msra.mxu0 %v435
  %524 = vmatprep.subr.bf16.mxu0 0
  %525 = vmatpush1.bf16.msra.mxu0 %v436
  %526 = vmatprep.subr.bf16.mxu0 0
  %527 = vmatpush1.bf16.msra.mxu0 %v437
  %528 = vmatprep.subr.bf16.mxu0 0
  %529 = vmatpush1.bf16.msra.mxu0 %v438
  %530 = vmatprep.subr.bf16.mxu0 0
  %531 = vmatpush1.bf16.msra.mxu0 %v439
  %532 = vmatprep.subr.bf16.mxu0 0
  %533 = vmatpush1.bf16.msra.mxu0 %v440
  %534 = vmatprep.subr.bf16.mxu0 0
  %535 = vmatpush1.bf16.msra.mxu0 %v441
  %536 = vmatprep.subr.bf16.mxu0 0
  %537 = vmatpush1.bf16.msra.mxu0 %v442
  %538 = vmatprep.subr.bf16.mxu0 0
  %539 = vmatpush1.bf16.msra.mxu0 %v443
  %540 = vmatprep.subr.bf16.mxu0 0
  %541 = vmatpush1.bf16.msra.mxu0 %v444
  %542 = vmatprep.subr.bf16.mxu0 0
  %543 = vmatpush1.bf16.msra.mxu0 %v445
  %544 = vmatprep.subr.bf16.mxu0 0
  %545 = vmatpush1.bf16.msra.mxu0 %v446
  %546 = vmatprep.subr.bf16.mxu0 0
  %547 = vmatpush1.bf16.msra.mxu0 %v447
  %548 = vmatprep.subr.bf16.mxu0 0
  %549 = vmatpush1.bf16.msra.mxu0 %v448
  %550 = vmatprep.mubr.bf16.mxu0 %v282
  %551 = vmatmul.mubr.bf16.gmra.mrb[0].mxu0 %v281
  %v552 = vpop.f32.mrb[0].mxu0
  %v553 = vadd.f32 %v124, %v552
  %v554 = vpop.f32.mrb[0].mxu0
  %v555 = vpop.f32.mrb[0].mxu0
  %v556 = vadd.f32 %v124, %v555
  %v557 = vpop.f32.mrb[0].mxu0
  %558 = vmatprep.mubr.bf16.mxu0 %v285
  %559 = vmatmul.mubr.bf16.gmra.mrb[0].mxu0 %v284
  %v560 = vpop.f32.mrb[0].mxu0
  %v561 = vadd.f32 %v124, %v560
  %v562 = vpop.f32.mrb[0].mxu0
  %v563 = vpop.f32.mrb[0].mxu0
  %v564 = vadd.f32 %v124, %v563
  %v565 = vpop.f32.mrb[0].mxu0
  %566 = vmatprep.mubr.bf16.mxu0 %v288
  %567 = vmatmul.mubr.bf16.gmra.mrb[0].mxu0 %v287
  %v568 = vpop.f32.mrb[0].mxu0
  %v569 = vadd.f32 %v124, %v568
  %v570 = vpop.f32.mrb[0].mxu0
  %v571 = vpop.f32.mrb[0].mxu0
  %v572 = vadd.f32 %v124, %v571
  %v573 = vpop.f32.mrb[0].mxu0
  %574 = vmatprep.mubr.bf16.mxu0 %v291
  %575 = vmatmul.mubr.bf16.gmra.mrb[0].mxu0 %v290
  %v576 = vpop.f32.mrb[0].mxu0
  %v577 = vadd.f32 %v124, %v576
  %v578 = vpop.f32.mrb[0].mxu0
  %v579 = vpop.f32.mrb[0].mxu0
  %v580 = vadd.f32 %v124, %v579
  %v581 = vpop.f32.mrb[0].mxu0
  %582 = vmatprep.mubr.bf16.mxu0 %v294
  %583 = vmatmul.mubr.bf16.gmra.mrb[0].mxu0 %v293
  %v584 = vpop.f32.mrb[0].mxu0
  %v585 = vadd.f32 %v124, %v584
  %v586 = vpop.f32.mrb[0].mxu0
  %v587 = vpop.f32.mrb[0].mxu0
  %v588 = vadd.f32 %v124, %v587
  %v589 = vpop.f32.mrb[0].mxu0
  %590 = vmatprep.mubr.bf16.mxu0 %v297
  %591 = vmatmul.mubr.bf16.gmra.mrb[0].mxu0 %v296
  %v592 = vpop.f32.mrb[0].mxu0
  %v593 = vadd.f32 %v124, %v592
  %v594 = vpop.f32.mrb[0].mxu0
  %v595 = vpop.f32.mrb[0].mxu0
  %v596 = vadd.f32 %v124, %v595
  %v597 = vpop.f32.mrb[0].mxu0
  %598 = vmatprep.mubr.bf16.mxu0 %v300
  %599 = vmatmul.mubr.bf16.gmra.mrb[0].mxu0 %v299
  %v600 = vpop.f32.mrb[0].mxu0
  %v601 = vadd.f32 %v124, %v600
  %v602 = vpop.f32.mrb[0].mxu0
  %v603 = vpop.f32.mrb[0].mxu0
  %v604 = vadd.f32 %v124, %v603
  %v605 = vpop.f32.mrb[0].mxu0
  %606 = vmatprep.mubr.bf16.mxu0 %v303
  %607 = vmatmul.mubr.bf16.gmra.mrb[0].mxu0 %v302
  %v608 = vpop.f32.mrb[0].mxu0
  %v609 = vadd.f32 %v124, %v608
  %v610 = vpop.f32.mrb[0].mxu0
  %v611 = vpop.f32.mrb[0].mxu0
  %v612 = vadd.f32 %v124, %v611
  %v613 = vpop.f32.mrb[0].mxu0
  %614 = vmatprep.mubr.bf16.mxu0 %v306
  %615 = vmatmul.mubr.bf16.gmra.mrb[0].mxu0 %v305
  %v616 = vpop.f32.mrb[0].mxu0
  %v617 = vadd.f32 %v124, %v616
  %v618 = vpop.f32.mrb[0].mxu0
  %v619 = vpop.f32.mrb[0].mxu0
  %v620 = vadd.f32 %v124, %v619
  %v621 = vpop.f32.mrb[0].mxu0
  %622 = vmatprep.mubr.bf16.mxu0 %v309
  %623 = vmatmul.mubr.bf16.gmra.mrb[0].mxu0 %v308
  %v624 = vpop.f32.mrb[0].mxu0
  %v625 = vadd.f32 %v124, %v624
  %v626 = vpop.f32.mrb[0].mxu0
  %v627 = vpop.f32.mrb[0].mxu0
  %v628 = vadd.f32 %v124, %v627
  %v629 = vpop.f32.mrb[0].mxu0
  %630 = vmatprep.mubr.bf16.mxu0 %v312
  %631 = vmatmul.mubr.bf16.gmra.mrb[0].mxu0 %v311
  %v632 = vpop.f32.mrb[0].mxu0
  %v633 = vadd.f32 %v124, %v632
  %v634 = vpop.f32.mrb[0].mxu0
  %v635 = vpop.f32.mrb[0].mxu0
  %v636 = vadd.f32 %v124, %v635
  %v637 = vpop.f32.mrb[0].mxu0
  %638 = vmatprep.mubr.bf16.mxu0 %v315
  %639 = vmatmul.mubr.bf16.gmra.mrb[0].mxu0 %v314
  %v640 = vpop.f32.mrb[0].mxu0
  %v641 = vadd.f32 %v124, %v640
  %v642 = vpop.f32.mrb[0].mxu0
  %v643 = vpop.f32.mrb[0].mxu0
  %v644 = vadd.f32 %v124, %v643
  %v645 = vpop.f32.mrb[0].mxu0
  %646 = vmatprep.mubr.bf16.mxu0 %v318
  %647 = vmatmul.mubr.bf16.gmra.mrb[0].mxu0 %v317
  %v648 = vpop.f32.mrb[0].mxu0
  %v649 = vadd.f32 %v124, %v648
  %v650 = vpop.f32.mrb[0].mxu0
  %v651 = vpop.f32.mrb[0].mxu0
  %v652 = vadd.f32 %v124, %v651
  %v653 = vpop.f32.mrb[0].mxu0
  %654 = vmatprep.mubr.bf16.mxu0 %v321
  %655 = vmatmul.mubr.bf16.gmra.mrb[0].mxu0 %v320
  %v656 = vpop.f32.mrb[0].mxu0
  %v657 = vadd.f32 %v124, %v656
  %v658 = vpop.f32.mrb[0].mxu0
  %v659 = vpop.f32.mrb[0].mxu0
  %v660 = vadd.f32 %v124, %v659
  %v661 = vpop.f32.mrb[0].mxu0
  %662 = vmatprep.mubr.bf16.mxu0 %v324
  %663 = vmatmul.mubr.bf16.gmra.mrb[0].mxu0 %v323
  %v664 = vpop.f32.mrb[0].mxu0
  %v665 = vadd.f32 %v124, %v664
  %v666 = vpop.f32.mrb[0].mxu0
  %v667 = vpop.f32.mrb[0].mxu0
  %v668 = vadd.f32 %v124, %v667
  %v669 = vpop.f32.mrb[0].mxu0
  %670 = vmatprep.mubr.bf16.mxu0 %v327
  %671 = vmatmul.mubr.bf16.gmra.mrb[0].mxu0 %v326
  %v672 = vpop.f32.mrb[0].mxu0
  %v673 = vadd.f32 %v124, %v672
  %v674 = vpop.f32.mrb[0].mxu0
  %v675 = vpop.f32.mrb[0].mxu0
  %v676 = vpop.f32.mrb[0].mxu0
  %677 = vdwg.mxu0
  %678 = vmatprep.subr.bf16.mxu0 0
  %679 = vmatpush1.bf16.msra.mxu0 %v449
  %680 = vmatprep.subr.bf16.mxu0 0
  %681 = vmatpush1.bf16.msra.mxu0 %v450
  %682 = vmatprep.subr.bf16.mxu0 0
  %683 = vmatpush1.bf16.msra.mxu0 0
  %684 = vmatprep.subr.bf16.mxu0 0
  %685 = vmatpush1.bf16.msra.mxu0 0
  %686 = vmatprep.subr.bf16.mxu0 0
  %687 = vmatpush1.bf16.msra.mxu0 0
  %688 = vmatprep.subr.bf16.mxu0 0
  %689 = vmatpush1.bf16.msra.mxu0 0
  %690 = vmatprep.subr.bf16.mxu0 0
  %691 = vmatpush1.bf16.msra.mxu0 0
  %692 = vmatprep.subr.bf16.mxu0 0
  %693 = vmatpush1.bf16.msra.mxu0 0
  %694 = vmatprep.subr.bf16.mxu0 0
  %695 = vmatpush1.bf16.msra.mxu0 0
  %696 = vmatprep.subr.bf16.mxu0 0
  %697 = vmatpush1.bf16.msra.mxu0 0
  %698 = vmatprep.subr.bf16.mxu0 0
  %699 = vmatpush1.bf16.msra.mxu0 0
  %700 = vmatprep.subr.bf16.mxu0 0
  %701 = vmatpush1.bf16.msra.mxu0 0
  %702 = vmatprep.subr.bf16.mxu0 0
  %703 = vmatpush1.bf16.msra.mxu0 0
  %704 = vmatprep.subr.bf16.mxu0 0
  %705 = vmatpush1.bf16.msra.mxu0 0
  %706 = vmatprep.subr.bf16.mxu0 0
  %707 = vmatpush1.bf16.msra.mxu0 0
  %708 = vmatprep.subr.bf16.mxu0 0
  %709 = vmatpush1.bf16.msra.mxu0 0
  %710 = vmatprep.mubr.bf16.mxu0 0
  %711 = vmatmul.mubr.bf16.gmra.mrb[0].mxu0 %v471
  %v712 = vpop.f32.mrb[0].mxu0
  %v713 = vadd.f32 %v553, %v712
  %v714 = vpop.f32.mrb[0].mxu0
  %v715 = vpop.f32.mrb[0].mxu0
  %v716 = vadd.f32 %v556, %v715
  %v717 = vpop.f32.mrb[0].mxu0
  %718 = vmatprep.mubr.bf16.mxu0 0
  %719 = vmatmul.mubr.bf16.gmra.mrb[0].mxu0 %v474
  %v720 = vpop.f32.mrb[0].mxu0
  %v721 = vadd.f32 %v561, %v720
  %v722 = vpop.f32.mrb[0].mxu0
  %v723 = vpop.f32.mrb[0].mxu0
  %v724 = vadd.f32 %v564, %v723
  %v725 = vpop.f32.mrb[0].mxu0
  %726 = vmatprep.mubr.bf16.mxu0 0
  %727 = vmatmul.mubr.bf16.gmra.mrb[0].mxu0 %v477
  %v728 = vpop.f32.mrb[0].mxu0
  %v729 = vadd.f32 %v569, %v728
  %v730 = vpop.f32.mrb[0].mxu0
  %v731 = vpop.f32.mrb[0].mxu0
  %v732 = vadd.f32 %v572, %v731
  %v733 = vpop.f32.mrb[0].mxu0
  %734 = vmatprep.mubr.bf16.mxu0 0
  %735 = vmatmul.mubr.bf16.gmra.mrb[0].mxu0 %v480
  %v736 = vpop.f32.mrb[0].mxu0
  %v737 = vadd.f32 %v577, %v736
  %v738 = vpop.f32.mrb[0].mxu0
  %v739 = vpop.f32.mrb[0].mxu0
  %v740 = vadd.f32 %v580, %v739
  %v741 = vpop.f32.mrb[0].mxu0
  %742 = vmatprep.mubr.bf16.mxu0 0
  %743 = vmatmul.mubr.bf16.gmra.mrb[0].mxu0 %v483
  %v744 = vpop.f32.mrb[0].mxu0
  %v745 = vadd.f32 %v585, %v744
  %v746 = vpop.f32.mrb[0].mxu0
  %v747 = vpop.f32.mrb[0].mxu0
  %v748 = vadd.f32 %v588, %v747
  %v749 = vpop.f32.mrb[0].mxu0
  %750 = vmatprep.mubr.bf16.mxu0 0
  %751 = vmatmul.mubr.bf16.gmra.mrb[0].mxu0 %v486
  %v752 = vpop.f32.mrb[0].mxu0
  %v753 = vadd.f32 %v593, %v752
  %v754 = vpop.f32.mrb[0].mxu0
  %v755 = vpop.f32.mrb[0].mxu0
  %v756 = vadd.f32 %v596, %v755
  %v757 = vpop.f32.mrb[0].mxu0
  %758 = vmatprep.mubr.bf16.mxu0 0
  %759 = vmatmul.mubr.bf16.gmra.mrb[0].mxu0 %v489
  %v760 = vpop.f32.mrb[0].mxu0
  %v761 = vadd.f32 %v601, %v760
  %v762 = vpop.f32.mrb[0].mxu0
  %v763 = vpop.f32.mrb[0].mxu0
  %v764 = vadd.f32 %v604, %v763
  %v765 = vpop.f32.mrb[0].mxu0
  %766 = vmatprep.mubr.bf16.mxu0 0
  %767 = vmatmul.mubr.bf16.gmra.mrb[0].mxu0 %v492
  %v768 = vpop.f32.mrb[0].mxu0
  %v769 = vadd.f32 %v609, %v768
  %v770 = vpop.f32.mrb[0].mxu0
  %v771 = vpop.f32.mrb[0].mxu0
  %v772 = vadd.f32 %v612, %v771
  %v773 = vpop.f32.mrb[0].mxu0
  %774 = vmatprep.mubr.bf16.mxu0 0
  %775 = vmatmul.mubr.bf16.gmra.mrb[0].mxu0 %v495
  %v776 = vpop.f32.mrb[0].mxu0
  %v777 = vadd.f32 %v617, %v776
  %v778 = vpop.f32.mrb[0].mxu0
  %v779 = vpop.f32.mrb[0].mxu0
  %v780 = vadd.f32 %v620, %v779
  %v781 = vpop.f32.mrb[0].mxu0
  %782 = vmatprep.mubr.bf16.mxu0 0
  %783 = vmatmul.mubr.bf16.gmra.mrb[0].mxu0 %v498
  %v784 = vpop.f32.mrb[0].mxu0
  %v785 = vadd.f32 %v625, %v784
  %v786 = vpop.f32.mrb[0].mxu0
  %v787 = vpop.f32.mrb[0].mxu0
  %v788 = vadd.f32 %v628, %v787
  %v789 = vpop.f32.mrb[0].mxu0
  %790 = vmatprep.mubr.bf16.mxu0 0
  %791 = vmatmul.mubr.bf16.gmra.mrb[0].mxu0 %v501
  %v792 = vpop.f32.mrb[0].mxu0
  %v793 = vadd.f32 %v633, %v792
  %v794 = vpop.f32.mrb[0].mxu0
  %v795 = vpop.f32.mrb[0].mxu0
  %v796 = vadd.f32 %v636, %v795
  %v797 = vpop.f32.mrb[0].mxu0
  %798 = vmatprep.mubr.bf16.mxu0 0
  %799 = vmatmul.mubr.bf16.gmra.mrb[0].mxu0 %v504
  %v800 = vpop.f32.mrb[0].mxu0
  %v801 = vadd.f32 %v641, %v800
  %v802 = vpop.f32.mrb[0].mxu0
  %v803 = vpop.f32.mrb[0].mxu0
  %v804 = vadd.f32 %v644, %v803
  %v805 = vpop.f32.mrb[0].mxu0
  %806 = vmatprep.mubr.bf16.mxu0 0
  %807 = vmatmul.mubr.bf16.gmra.mrb[0].mxu0 %v507
  %v808 = vpop.f32.mrb[0].mxu0
  %v809 = vadd.f32 %v649, %v808
  %v810 = vpop.f32.mrb[0].mxu0
  %v811 = vpop.f32.mrb[0].mxu0
  %v812 = vadd.f32 %v652, %v811
  %v813 = vpop.f32.mrb[0].mxu0
  %814 = vmatprep.mubr.bf16.mxu0 0
  %815 = vmatmul.mubr.bf16.gmra.mrb[0].mxu0 %v510
  %v816 = vpop.f32.mrb[0].mxu0
  %v817 = vadd.f32 %v657, %v816
  %v818 = vpop.f32.mrb[0].mxu0
  %v819 = vpop.f32.mrb[0].mxu0
  %v820 = vadd.f32 %v660, %v819
  %v821 = vpop.f32.mrb[0].mxu0
  %822 = vmatprep.mubr.bf16.mxu0 0
  %823 = vmatmul.mubr.bf16.gmra.mrb[0].mxu0 %v513
  %v824 = vpop.f32.mrb[0].mxu0
  %v825 = vadd.f32 %v665, %v824
  %v826 = vpop.f32.mrb[0].mxu0
  %v827 = vpop.f32.mrb[0].mxu0
  %v828 = vadd.f32 %v668, %v827
  %v829 = vpop.f32.mrb[0].mxu0
  %830 = vmatprep.mubr.bf16.mxu0 0
  %831 = vmatmul.mubr.bf16.gmra.mrb[0].mxu0 %v516
  %v832 = vpop.f32.mrb[0].mxu0
  %v833 = vadd.f32 %v673, %v832
  %v834 = vpop.f32.mrb[0].mxu0
  %v835 = vpop.f32.mrb[0].mxu0
  %v836 = vpop.f32.mrb[0].mxu0
  %837 = vdwg.mxu0
  %vm838 = vcmask 523264
  %v839 = vsel %vm838, %v713, 0.0
  %v840 = vsel %vm838, %v716, 0.0
  %v841 = vadd.f32 %v839, %v840
  %v842 = vsel %vm838, %v721, 0.0
  %v843 = vadd.f32 %v841, %v842
  %v844 = vsel %vm838, %v724, 0.0
  %v845 = vadd.f32 %v843, %v844
  %v846 = vsel %vm838, %v729, 0.0
  %v847 = vadd.f32 %v845, %v846
  %v848 = vsel %vm838, %v732, 0.0
  %v849 = vadd.f32 %v847, %v848
  %v850 = vsel %vm838, %v737, 0.0
  %v851 = vadd.f32 %v849, %v850
  %v852 = vsel %vm838, %v740, 0.0
  %v853 = vadd.f32 %v851, %v852
  %v854 = vsel %vm838, %v745, 0.0
  %v855 = vadd.f32 %v853, %v854
  %v856 = vsel %vm838, %v748, 0.0
  %v857 = vadd.f32 %v855, %v856
  %v858 = vsel %vm838, %v753, 0.0
  %v859 = vadd.f32 %v857, %v858
  %v860 = vsel %vm838, %v756, 0.0
  %v861 = vadd.f32 %v859, %v860
  %v862 = vsel %vm838, %v761, 0.0
  %v863 = vadd.f32 %v861, %v862
  %v864 = vsel %vm838, %v764, 0.0
  %v865 = vadd.f32 %v863, %v864
  %v866 = vsel %vm838, %v769, 0.0
  %v867 = vadd.f32 %v865, %v866
  %v868 = vsel %vm838, %v772, 0.0
  %v869 = vadd.f32 %v867, %v868
  %v870 = vsel %vm838, %v777, 0.0
  %v871 = vadd.f32 %v869, %v870
  %v872 = vsel %vm838, %v780, 0.0
  %v873 = vadd.f32 %v871, %v872
  %v874 = vsel %vm838, %v785, 0.0
  %v875 = vadd.f32 %v873, %v874
  %v876 = vsel %vm838, %v788, 0.0
  %v877 = vadd.f32 %v875, %v876
  %v878 = vsel %vm838, %v793, 0.0
  %v879 = vadd.f32 %v877, %v878
  %v880 = vsel %vm838, %v796, 0.0
  %v881 = vadd.f32 %v879, %v880
  %v882 = vsel %vm838, %v801, 0.0
  %v883 = vadd.f32 %v881, %v882
  %v884 = vsel %vm838, %v804, 0.0
  %v885 = vadd.f32 %v883, %v884
  %v886 = vsel %vm838, %v809, 0.0
  %v887 = vadd.f32 %v885, %v886
  %v888 = vsel %vm838, %v812, 0.0
  %v889 = vadd.f32 %v887, %v888
  %v890 = vsel %vm838, %v817, 0.0
  %v891 = vadd.f32 %v889, %v890
  %v892 = vsel %vm838, %v820, 0.0
  %v893 = vadd.f32 %v891, %v892
  %v894 = vsel %vm838, %v825, 0.0
  %v895 = vadd.f32 %v893, %v894
  %v896 = vsel %vm838, %v828, 0.0
  %v897 = vadd.f32 %v895, %v896
  %vm898 = vcmask 517120
  %v899 = vsel %vm898, %v833, 0.0
  %v900 = vadd.f32 %v897, %v899
  %v901 = vrot.slane %v900, 4
  %v902 = vadd.f32 %v900, %v901
  %v903 = vrot.slane %v902, 2
  %v904 = vadd.f32 %v902, %v903
  %v905 = vrot.slane %v904, 1
  %v906 = vadd.f32 %v904, %v905
  %v907 = vrcp.pop 242.0
  %v908 = vmul.f32 %v906, %v907
  %v909 = vmul.f32 %v713, %v713
  %v910 = vmul.f32 %v716, %v716
  %v911 = vmul.f32 %v721, %v721
  %v912 = vmul.f32 %v724, %v724
  %v913 = vmul.f32 %v729, %v729
  %v914 = vmul.f32 %v732, %v732
  %v915 = vmul.f32 %v737, %v737
  %v916 = vmul.f32 %v740, %v740
  %v917 = vmul.f32 %v745, %v745
  %v918 = vmul.f32 %v748, %v748
  %v919 = vmul.f32 %v753, %v753
  %v920 = vmul.f32 %v756, %v756
  %v921 = vmul.f32 %v761, %v761
  %v922 = vmul.f32 %v764, %v764
  %v923 = vmul.f32 %v769, %v769
  %v924 = vmul.f32 %v772, %v772
  %v925 = vmul.f32 %v777, %v777
  %v926 = vmul.f32 %v780, %v780
  %v927 = vmul.f32 %v785, %v785
  %v928 = vmul.f32 %v788, %v788
  %v929 = vmul.f32 %v793, %v793
  %v930 = vmul.f32 %v796, %v796
  %v931 = vmul.f32 %v801, %v801
  %v932 = vmul.f32 %v804, %v804
  %v933 = vmul.f32 %v809, %v809
  %v934 = vmul.f32 %v812, %v812
  %v935 = vmul.f32 %v817, %v817
  %v936 = vmul.f32 %v820, %v820
  %v937 = vmul.f32 %v825, %v825
  %v938 = vmul.f32 %v828, %v828
  %v939 = vmul.f32 %v833, %v833
  %v940 = vsel %vm838, %v909, 0.0
  %v941 = vsel %vm838, %v910, 0.0
  %v942 = vadd.f32 %v940, %v941
  %v943 = vsel %vm838, %v911, 0.0
  %v944 = vadd.f32 %v942, %v943
  %v945 = vsel %vm838, %v912, 0.0
  %v946 = vadd.f32 %v944, %v945
  %v947 = vsel %vm838, %v913, 0.0
  %v948 = vadd.f32 %v946, %v947
  %v949 = vsel %vm838, %v914, 0.0
  %v950 = vadd.f32 %v948, %v949
  %v951 = vsel %vm838, %v915, 0.0
  %v952 = vadd.f32 %v950, %v951
  %v953 = vsel %vm838, %v916, 0.0
  %v954 = vadd.f32 %v952, %v953
  %v955 = vsel %vm838, %v917, 0.0
  %v956 = vadd.f32 %v954, %v955
  %v957 = vsel %vm838, %v918, 0.0
  %v958 = vadd.f32 %v956, %v957
  %v959 = vsel %vm838, %v919, 0.0
  %v960 = vadd.f32 %v958, %v959
  %v961 = vsel %vm838, %v920, 0.0
  %v962 = vadd.f32 %v960, %v961
  %v963 = vsel %vm838, %v921, 0.0
  %v964 = vadd.f32 %v962, %v963
  %v965 = vsel %vm838, %v922, 0.0
  %v966 = vadd.f32 %v964, %v965
  %v967 = vsel %vm838, %v923, 0.0
  %v968 = vadd.f32 %v966, %v967
  %v969 = vsel %vm838, %v924, 0.0
  %v970 = vadd.f32 %v968, %v969
  %v971 = vsel %vm838, %v925, 0.0
  %v972 = vadd.f32 %v970, %v971
  %v973 = vsel %vm838, %v926, 0.0
  %v974 = vadd.f32 %v972, %v973
  %v975 = vsel %vm838, %v927, 0.0
  %v976 = vadd.f32 %v974, %v975
  %v977 = vsel %vm838, %v928, 0.0
  %v978 = vadd.f32 %v976, %v977
  %v979 = vsel %vm838, %v929, 0.0
  %v980 = vadd.f32 %v978, %v979
  %v981 = vsel %vm838, %v930, 0.0
  %v982 = vadd.f32 %v980, %v981
  %v983 = vsel %vm838, %v931, 0.0
  %v984 = vadd.f32 %v982, %v983
  %v985 = vsel %vm838, %v932, 0.0
  %v986 = vadd.f32 %v984, %v985
  %v987 = vsel %vm838, %v933, 0.0
  %v988 = vadd.f32 %v986, %v987
  %v989 = vsel %vm838, %v934, 0.0
  %v990 = vadd.f32 %v988, %v989
  %v991 = vsel %vm838, %v935, 0.0
  %v992 = vadd.f32 %v990, %v991
  %v993 = vsel %vm838, %v936, 0.0
  %v994 = vadd.f32 %v992, %v993
  %v995 = vsel %vm838, %v937, 0.0
  %v996 = vadd.f32 %v994, %v995
  %v997 = vsel %vm838, %v938, 0.0
  %v998 = vadd.f32 %v996, %v997
  %v999 = vsel %vm898, %v939, 0.0
  %v1000 = vadd.f32 %v998, %v999
  %v1001 = vrot.slane %v1000, 4
  %v1002 = vadd.f32 %v1000, %v1001
  %v1003 = vrot.slane %v1002, 2
  %v1004 = vadd.f32 %v1002, %v1003
  %v1005 = vrot.slane %v1004, 1
  %v1006 = vadd.f32 %v1004, %v1005
  %v1007 = vmul.f32 %v1006, %v907
  %v1008 = vmul.f32 %v908, %v908
  %v1009 = vsub.f32 %v1007, %v1008
  %v1010 = vmax.f32 %v1009, 0.0
  %v1011 = vadd.f32 %v1010, 1e-05
  %v1012 = vrsqrt.pop %v1011
  %v1013 = vld [vmem:[%s3] sm:$0x1]
  %v1014 = vmul.f32 %v1012, %v1013
  %v1015 = vld [vmem:[%s4] sm:$0x1]
  %v1016 = vmul.f32 %v908, %v1014
  %v1017 = vsub.f32 %v1015, %v1016
  %v1018 = vlaneseq
  %v1019 = vshrl.u32 %v1018, 7
  %v1020 = vsub.s32 0, %v1019
  %v1021 = vrot.slane %v1014, %v1020
  %v1022 = vmul.f32 %v713, %v1021
  %v1023 = vmul.f32 %v716, %v1021
  %v1024 = vmul.f32 %v721, %v1021
  %v1025 = vmul.f32 %v724, %v1021
  %v1026 = vmul.f32 %v729, %v1021
  %v1027 = vmul.f32 %v732, %v1021
  %v1028 = vmul.f32 %v737, %v1021
  %v1029 = vmul.f32 %v740, %v1021
  %v1030 = vmul.f32 %v745, %v1021
  %v1031 = vmul.f32 %v748, %v1021
  %v1032 = vmul.f32 %v753, %v1021
  %v1033 = vmul.f32 %v756, %v1021
  %v1034 = vmul.f32 %v761, %v1021
  %v1035 = vmul.f32 %v764, %v1021
  %v1036 = vmul.f32 %v769, %v1021
  %v1037 = vmul.f32 %v772, %v1021
  %v1038 = vmul.f32 %v777, %v1021
  %v1039 = vmul.f32 %v780, %v1021
  %v1040 = vmul.f32 %v785, %v1021
  %v1041 = vmul.f32 %v788, %v1021
  %v1042 = vmul.f32 %v793, %v1021
  %v1043 = vmul.f32 %v796, %v1021
  %v1044 = vmul.f32 %v801, %v1021
  %v1045 = vmul.f32 %v804, %v1021
  %v1046 = vmul.f32 %v809, %v1021
  %v1047 = vmul.f32 %v812, %v1021
  %v1048 = vmul.f32 %v817, %v1021
  %v1049 = vmul.f32 %v820, %v1021
  %v1050 = vmul.f32 %v825, %v1021
  %v1051 = vmul.f32 %v828, %v1021
  %v1052 = vmul.f32 %v833, %v1021
  %v1054 = vlaneseq
  %v1055 = vshrl.u32 %v1054, 7
  %v1056 = vsub.s32 0, %v1055
  %v1057 = vrot.slane %v1017, %v1056
  %v1059 = vadd.f32 %v1022, %v1057
  %v1060 = vadd.f32 %v1023, %v1057
  %v1061 = vadd.f32 %v1024, %v1057
  %v1062 = vadd.f32 %v1025, %v1057
  %v1063 = vadd.f32 %v1026, %v1057
  %v1064 = vadd.f32 %v1027, %v1057
  %v1065 = vadd.f32 %v1028, %v1057
  %v1066 = vadd.f32 %v1029, %v1057
  %v1067 = vadd.f32 %v1030, %v1057
  %v1068 = vadd.f32 %v1031, %v1057
  %v1069 = vadd.f32 %v1032, %v1057
  %v1070 = vadd.f32 %v1033, %v1057
  %v1071 = vadd.f32 %v1034, %v1057
  %v1072 = vadd.f32 %v1035, %v1057
  %v1073 = vadd.f32 %v1036, %v1057
  %v1074 = vadd.f32 %v1037, %v1057
  %v1075 = vadd.f32 %v1038, %v1057
  %v1076 = vadd.f32 %v1039, %v1057
  %v1077 = vadd.f32 %v1040, %v1057
  %v1078 = vadd.f32 %v1041, %v1057
  %v1079 = vadd.f32 %v1042, %v1057
  %v1080 = vadd.f32 %v1043, %v1057
  %v1081 = vadd.f32 %v1044, %v1057
  %v1082 = vadd.f32 %v1045, %v1057
  %v1083 = vadd.f32 %v1046, %v1057
  %v1084 = vadd.f32 %v1047, %v1057
  %v1085 = vadd.f32 %v1048, %v1057
  %v1086 = vadd.f32 %v1049, %v1057
  %v1087 = vadd.f32 %v1050, %v1057
  %v1088 = vadd.f32 %v1051, %v1057
  %v1089 = vadd.f32 %v1052, %v1057
  %vm1090 = vcmp.gt.f32.partialorder %v1059, 0.0
  %vm1091 = vcmp.gt.f32.partialorder %v1060, 0.0
  %vm1092 = vcmp.gt.f32.partialorder %v1061, 0.0
  %vm1093 = vcmp.gt.f32.partialorder %v1062, 0.0
  %vm1094 = vcmp.gt.f32.partialorder %v1063, 0.0
  %vm1095 = vcmp.gt.f32.partialorder %v1064, 0.0
  %vm1096 = vcmp.gt.f32.partialorder %v1065, 0.0
  %vm1097 = vcmp.gt.f32.partialorder %v1066, 0.0
  %vm1098 = vcmp.gt.f32.partialorder %v1067, 0.0
  %vm1099 = vcmp.gt.f32.partialorder %v1068, 0.0
  %vm1100 = vcmp.gt.f32.partialorder %v1069, 0.0
  %vm1101 = vcmp.gt.f32.partialorder %v1070, 0.0
  %vm1102 = vcmp.gt.f32.partialorder %v1071, 0.0
  %vm1103 = vcmp.gt.f32.partialorder %v1072, 0.0
  %vm1104 = vcmp.gt.f32.partialorder %v1073, 0.0
  %vm1105 = vcmp.gt.f32.partialorder %v1074, 0.0
  %vm1106 = vcmp.gt.f32.partialorder %v1075, 0.0
  %vm1107 = vcmp.gt.f32.partialorder %v1076, 0.0
  %vm1108 = vcmp.gt.f32.partialorder %v1077, 0.0
  %vm1109 = vcmp.gt.f32.partialorder %v1078, 0.0
  %vm1110 = vcmp.gt.f32.partialorder %v1079, 0.0
  %vm1111 = vcmp.gt.f32.partialorder %v1080, 0.0
  %vm1112 = vcmp.gt.f32.partialorder %v1081, 0.0
  %vm1113 = vcmp.gt.f32.partialorder %v1082, 0.0
  %vm1114 = vcmp.gt.f32.partialorder %v1083, 0.0
  %vm1115 = vcmp.gt.f32.partialorder %v1084, 0.0
  %vm1116 = vcmp.gt.f32.partialorder %v1085, 0.0
  %vm1117 = vcmp.gt.f32.partialorder %v1086, 0.0
  %vm1118 = vcmp.gt.f32.partialorder %v1087, 0.0
  %vm1119 = vcmp.gt.f32.partialorder %v1088, 0.0
  %vm1120 = vcmp.gt.f32.partialorder %v1089, 0.0
  %v1121 = vmul.f32 %v1059, 0.02
  %v1122 = vmul.f32 %v1060, 0.02
  %v1123 = vmul.f32 %v1061, 0.02
  %v1124 = vmul.f32 %v1062, 0.02
  %v1125 = vmul.f32 %v1063, 0.02
  %v1126 = vmul.f32 %v1064, 0.02
  %v1127 = vmul.f32 %v1065, 0.02
  %v1128 = vmul.f32 %v1066, 0.02
  %v1129 = vmul.f32 %v1067, 0.02
  %v1130 = vmul.f32 %v1068, 0.02
  %v1131 = vmul.f32 %v1069, 0.02
  %v1132 = vmul.f32 %v1070, 0.02
  %v1133 = vmul.f32 %v1071, 0.02
  %v1134 = vmul.f32 %v1072, 0.02
  %v1135 = vmul.f32 %v1073, 0.02
  %v1136 = vmul.f32 %v1074, 0.02
  %v1137 = vmul.f32 %v1075, 0.02
  %v1138 = vmul.f32 %v1076, 0.02
  %v1139 = vmul.f32 %v1077, 0.02
  %v1140 = vmul.f32 %v1078, 0.02
  %v1141 = vmul.f32 %v1079, 0.02
  %v1142 = vmul.f32 %v1080, 0.02
  %v1143 = vmul.f32 %v1081, 0.02
  %v1144 = vmul.f32 %v1082, 0.02
  %v1145 = vmul.f32 %v1083, 0.02
  %v1146 = vmul.f32 %v1084, 0.02
  %v1147 = vmul.f32 %v1085, 0.02
  %v1148 = vmul.f32 %v1086, 0.02
  %v1149 = vmul.f32 %v1087, 0.02
  %v1150 = vmul.f32 %v1088, 0.02
  %v1151 = vmul.f32 %v1089, 0.02
  %v1152 = vsel %vm1090, %v1059, %v1121
  %v1153 = vsel %vm1091, %v1060, %v1122
  %v1154 = vsel %vm1092, %v1061, %v1123
  %v1155 = vsel %vm1093, %v1062, %v1124
  %v1156 = vsel %vm1094, %v1063, %v1125
  %v1157 = vsel %vm1095, %v1064, %v1126
  %v1158 = vsel %vm1096, %v1065, %v1127
  %v1159 = vsel %vm1097, %v1066, %v1128
  %v1160 = vsel %vm1098, %v1067, %v1129
  %v1161 = vsel %vm1099, %v1068, %v1130
  %v1162 = vsel %vm1100, %v1069, %v1131
  %v1163 = vsel %vm1101, %v1070, %v1132
  %v1164 = vsel %vm1102, %v1071, %v1133
  %v1165 = vsel %vm1103, %v1072, %v1134
  %v1166 = vsel %vm1104, %v1073, %v1135
  %v1167 = vsel %vm1105, %v1074, %v1136
  %v1168 = vsel %vm1106, %v1075, %v1137
  %v1169 = vsel %vm1107, %v1076, %v1138
  %v1170 = vsel %vm1108, %v1077, %v1139
  %v1171 = vsel %vm1109, %v1078, %v1140
  %v1172 = vsel %vm1110, %v1079, %v1141
  %v1173 = vsel %vm1111, %v1080, %v1142
  %v1174 = vsel %vm1112, %v1081, %v1143
  %v1175 = vsel %vm1113, %v1082, %v1144
  %v1176 = vsel %vm1114, %v1083, %v1145
  %v1177 = vsel %vm1115, %v1084, %v1146
  %v1178 = vsel %vm1116, %v1085, %v1147
  %v1179 = vsel %vm1117, %v1086, %v1148
  %v1180 = vsel %vm1118, %v1087, %v1149
  %v1181 = vsel %vm1119, %v1088, %v1150
  %v1182 = vsel %vm1120, %v1089, %v1151
  %v1183 = vpack.c.bf16 %v1153, %v1152
  %v1184 = vpack.c.bf16 %v1155, %v1154
  %v1185 = vpack.c.bf16 %v1157, %v1156
  %v1186 = vpack.c.bf16 %v1159, %v1158
  %v1187 = vpack.c.bf16 %v1161, %v1160
  %v1188 = vpack.c.bf16 %v1163, %v1162
  %v1189 = vpack.c.bf16 %v1165, %v1164
  %v1190 = vpack.c.bf16 %v1167, %v1166
  %v1191 = vpack.c.bf16 %v1169, %v1168
  %v1192 = vpack.c.bf16 %v1171, %v1170
  %v1193 = vpack.c.bf16 %v1173, %v1172
  %v1194 = vpack.c.bf16 %v1175, %v1174
  %v1195 = vpack.c.bf16 %v1177, %v1176
  %v1196 = vpack.c.bf16 %v1179, %v1178
  %v1197 = vpack.c.bf16 %v1181, %v1180
  %v1198 = vpack.c.bf16 %v1182, %v1182
  %v1215 = vunpack.c.l.b16 %v1183
  %v1216 = vunpack.c.h.b16 %v1183
  %v1217 = vunpack.c.l.b16 %v1184
  %v1218 = vunpack.c.h.b16 %v1184
  %v1219 = vunpack.c.l.b16 %v1185
  %v1220 = vunpack.c.h.b16 %v1185
  %v1221 = vunpack.c.l.b16 %v1186
  %v1222 = vunpack.c.h.b16 %v1186
  %v1223 = vunpack.c.l.b16 %v1187
  %v1224 = vunpack.c.h.b16 %v1187
  %v1225 = vunpack.c.l.b16 %v1188
  %v1226 = vunpack.c.h.b16 %v1188
  %v1227 = vunpack.c.l.b16 %v1189
  %v1228 = vunpack.c.h.b16 %v1189
  %v1229 = vunpack.c.l.b16 %v1190
  %v1230 = vunpack.c.h.b16 %v1190
  %v1231 = vunpack.c.l.b16 %v1191
  %v1232 = vunpack.c.h.b16 %v1191
  %v1233 = vunpack.c.l.b16 %v1192
  %v1234 = vunpack.c.h.b16 %v1192
  %v1235 = vunpack.c.l.b16 %v1193
  %v1236 = vunpack.c.h.b16 %v1193
  %v1237 = vunpack.c.l.b16 %v1194
  %v1238 = vunpack.c.h.b16 %v1194
  %v1239 = vunpack.c.l.b16 %v1195
  %v1240 = vunpack.c.h.b16 %v1195
  %v1241 = vunpack.c.l.b16 %v1196
  %v1242 = vunpack.c.h.b16 %v1196
  %v1243 = vunpack.c.l.b16 %v1197
  %v1244 = vunpack.c.h.b16 %v1197
  %v1245 = vunpack.c.l.b16 %v1198
  %v1246 = vpack.c.b16 %v1215, %v1215
  %v1247 = vpack.c.b16 %v1216, %v1216
  %v1248 = vpack.c.b16 %v1217, %v1217
  %v1249 = vpack.c.b16 %v1218, %v1218
  %v1250 = vpack.c.b16 %v1219, %v1219
  %v1251 = vpack.c.b16 %v1220, %v1220
  %v1252 = vpack.c.b16 %v1221, %v1221
  %v1253 = vpack.c.b16 %v1222, %v1222
  %v1254 = vpack.c.b16 %v1223, %v1223
  %v1255 = vpack.c.b16 %v1224, %v1224
  %v1256 = vpack.c.b16 %v1225, %v1225
  %v1257 = vpack.c.b16 %v1226, %v1226
  %v1258 = vpack.c.b16 %v1227, %v1227
  %v1259 = vpack.c.b16 %v1228, %v1228
  %v1260 = vpack.c.b16 %v1229, %v1229
  %v1261 = vpack.c.b16 %v1230, %v1230
  %v1262 = vpack.c.b16 %v1231, %v1231
  %v1263 = vpack.c.b16 %v1232, %v1232
  %v1264 = vpack.c.b16 %v1233, %v1233
  %v1265 = vpack.c.b16 %v1234, %v1234
  %v1266 = vpack.c.b16 %v1235, %v1235
  %v1267 = vpack.c.b16 %v1236, %v1236
  %v1268 = vpack.c.b16 %v1237, %v1237
  %v1269 = vpack.c.b16 %v1238, %v1238
  %v1270 = vpack.c.b16 %v1239, %v1239
  %v1271 = vpack.c.b16 %v1240, %v1240
  %v1272 = vpack.c.b16 %v1241, %v1241
  %v1273 = vpack.c.b16 %v1242, %v1242
  %v1274 = vpack.c.b16 %v1243, %v1243
  %v1275 = vpack.c.b16 %v1244, %v1244
  %v1276 = vpack.c.b16 %v1245, %v1245
  %vm1308 = vcmask 519168
  %1309 = vst.msk [vmem:[%s5] sm:$0xf] %vm1308, %v1246
  %1310 = vst.msk [vmem:[%s5 + $0x4] sm:$0xf] %vm1308, %v1247
  %1311 = vst.msk [vmem:[%s5 + $0x8] sm:$0xf] %vm1308, %v1248
  %1312 = vst.msk [vmem:[%s5 + $0xc] sm:$0xf] %vm1308, %v1249
  %1313 = vst.msk [vmem:[%s5 + $0x10] sm:$0xf] %vm1308, %v1250
  %1314 = vst.msk [vmem:[%s5 + $0x14] sm:$0xf] %vm1308, %v1251
  %1315 = vst.msk [vmem:[%s5 + $0x18] sm:$0xf] %vm1308, %v1252
  %1316 = vst.msk [vmem:[%s5 + $0x1c] sm:$0xf] %vm1308, %v1253
  %1317 = vst.msk [vmem:[%s5 + $0x20] sm:$0xf] %vm1308, %v1254
  %1318 = vst.msk [vmem:[%s5 + $0x24] sm:$0xf] %vm1308, %v1255
  %1319 = vst.msk [vmem:[%s5 + $0x28] sm:$0xf] %vm1308, %v1256
  %1320 = vst.msk [vmem:[%s5 + $0x2c] sm:$0xf] %vm1308, %v1257
  %1321 = vst.msk [vmem:[%s5 + $0x30] sm:$0xf] %vm1308, %v1258
  %1322 = vst.msk [vmem:[%s5 + $0x34] sm:$0xf] %vm1308, %v1259
  %1323 = vst.msk [vmem:[%s5 + $0x38] sm:$0xf] %vm1308, %v1260
  %1324 = vst.msk [vmem:[%s5 + $0x3c] sm:$0xf] %vm1308, %v1261
  %1325 = vst.msk [vmem:[%s5 + $0x40] sm:$0xf] %vm1308, %v1262
  %1326 = vst.msk [vmem:[%s5 + $0x44] sm:$0xf] %vm1308, %v1263
  %1327 = vst.msk [vmem:[%s5 + $0x48] sm:$0xf] %vm1308, %v1264
  %1328 = vst.msk [vmem:[%s5 + $0x4c] sm:$0xf] %vm1308, %v1265
  %1329 = vst.msk [vmem:[%s5 + $0x50] sm:$0xf] %vm1308, %v1266
  %1330 = vst.msk [vmem:[%s5 + $0x54] sm:$0xf] %vm1308, %v1267
  %1331 = vst.msk [vmem:[%s5 + $0x58] sm:$0xf] %vm1308, %v1268
  %1332 = vst.msk [vmem:[%s5 + $0x5c] sm:$0xf] %vm1308, %v1269
  %1333 = vst.msk [vmem:[%s5 + $0x60] sm:$0xf] %vm1308, %v1270
  %1334 = vst.msk [vmem:[%s5 + $0x64] sm:$0xf] %vm1308, %v1271
  %1335 = vst.msk [vmem:[%s5 + $0x68] sm:$0xf] %vm1308, %v1272
  %1336 = vst.msk [vmem:[%s5 + $0x6c] sm:$0xf] %vm1308, %v1273
  %1337 = vst.msk [vmem:[%s5 + $0x70] sm:$0xf] %vm1308, %v1274
  %1338 = vst.msk [vmem:[%s5 + $0x74] sm:$0xf] %vm1308, %v1275
  %vm1339 = vcmask 516096
  %1340 = vst.msk [vmem:[%s5 + $0x78] sm:$0x1] %vm1339, %v1276
  // Predicated region
  $region22: #{discriminator_forward.5} parent=0 // pred_check
    _
  $region23: #{discriminator_forward.5} parent=0 // pred_check_branch
    %1342 = sbr.rel (0) target = $region25
  $region24: #{discriminator_forward.5} parent=0 // pred_region
    _
  $region25: #{discriminator_forward.5} parent=0 // pred_fallthru
    _
  // Predicated region
  $region26: #{discriminator_forward.5} parent=0 // pred_check
    _
  $region27: #{discriminator_forward.5} parent=0 // pred_check_branch
    %1344 = sbr.rel (0) target = $region29
  $region28: #{discriminator_forward.5} parent=0 // pred_region
    _
  $region29: #{discriminator_forward.5} parent=0 // pred_fallthru
    _

// kernel: discriminator_forward.6
$region0: #{discriminator_forward.6}
  #allocation0 [shape = 'u32[]', space=smem, size = 0x4, offset = 0x4, fixed_abs, tag = 'smem constant byte address 0x4 - core index']
  #allocation1 [shape = 'u32[144,128]{1,0:T(1,128)}', space=vmem, size = 0x12000, scoped, tag = 'internal scratch']
  %s0 = inlined_call_operand.vmem [shape: bf16[50,576], index: 0, kind: input, shape index: {}]
  %s1 = inlined_call_operand.vmem [shape: bf16[576,128], index: 1, kind: input, shape index: {}]
  %s2 = inlined_call_operand.vmem [shape: f32[1,128], index: 2, kind: input, shape index: {}]
  %s3 = inlined_call_operand.vmem [shape: f32[1,128], index: 3, kind: input, shape index: {}]
  %s4 = inlined_call_operand.vmem [shape: f32[1,128], index: 4, kind: input, shape index: {}]
  %s5 = inlined_call_operand.vmem [shape: bf16[50,128], index: 5, kind: output, shape index: {}]
  %s6 = sld [smem:[#allocation0]]
  $region30: #{discriminator_forward.6} parent=0
    _
  %s8 = ssub.s32 1, %s6
  %s9 = scalar_select 0, %s8, %s6
  // Predicated region
  $region2: #{discriminator_forward.6} parent=0 // pred_check
    _
  $region3: #{discriminator_forward.6} parent=0 // pred_check_branch
    %11 = sbr.rel (0) target = $region5
  $region4: #{discriminator_forward.6} parent=0 // pred_region
    _
  $region5: #{discriminator_forward.6} parent=0 // pred_fallthru
    _
  // Predicated region
  $region6: #{discriminator_forward.6} parent=0 // pred_check
    _
  $region7: #{discriminator_forward.6} parent=0 // pred_check_branch
    %13 = sbr.rel (0) target = $region9
  $region8: #{discriminator_forward.6} parent=0 // pred_region
    _
  $region9: #{discriminator_forward.6} parent=0 // pred_fallthru
    _
  // Predicated region
  $region10: #{discriminator_forward.6} parent=0 // pred_check
    _
  $region11: #{discriminator_forward.6} parent=0 // pred_check_branch
    %15 = sbr.rel (0) target = $region13
  $region12: #{discriminator_forward.6} parent=0 // pred_region
    _
  $region13: #{discriminator_forward.6} parent=0 // pred_fallthru
    _
  // Predicated region
  $region14: #{discriminator_forward.6} parent=0 // pred_check
    _
  $region15: #{discriminator_forward.6} parent=0 // pred_check_branch
    %17 = sbr.rel (0) target = $region17
  $region16: #{discriminator_forward.6} parent=0 // pred_region
    _
  $region17: #{discriminator_forward.6} parent=0 // pred_fallthru
    _
  // Predicated region
  $region18: #{discriminator_forward.6} parent=0 // pred_check
    _
  $region19: #{discriminator_forward.6} parent=0 // pred_check_branch
    %19 = sbr.rel (0) target = $region21
  $region20: #{discriminator_forward.6} parent=0 // pred_region
    _
  $region21: #{discriminator_forward.6} parent=0 // pred_fallthru
    _
  %v21 = vld [vmem:[%s0] sm:$0xff]
  %v22 = vld [vmem:[%s0 + $0x8] sm:$0xff]
  %v23 = vld [vmem:[%s0 + $0x10] sm:$0xf]
  %v24 = vld [vmem:[%s0 + $0x14] sm:$0xff]
  %v25 = vld [vmem:[%s0 + $0x1c] sm:$0xff]
  %v26 = vld [vmem:[%s0 + $0x24] sm:$0xf]
  %v27 = vld [vmem:[%s0 + $0x28] sm:$0xff]
  %v28 = vld [vmem:[%s0 + $0x30] sm:$0xff]
  %v29 = vld [vmem:[%s0 + $0x38] sm:$0xf]
  %v30 = vld [vmem:[%s0 + $0x3c] sm:$0xff]
  %v31 = vld [vmem:[%s0 + $0x44] sm:$0xff]
  %v32 = vld [vmem:[%s0 + $0x4c] sm:$0xf]
  %v33 = vld [vmem:[%s0 + $0x50] sm:$0xff]
  %v34 = vld [vmem:[%s0 + $0x58] sm:$0xff]
  %v35 = vld [vmem:[%s0 + $0x60] sm:$0xf]
  %v36 = vld [vmem:[%s0 + $0x64] sm:$0xff]
  %v37 = vld [vmem:[%s0 + $0x6c] sm:$0xff]
  %v38 = vld [vmem:[%s0 + $0x74] sm:$0xf]
  %v39 = vld [vmem:[%s0 + $0x78] sm:$0x11]
  %v40 = vld [vmem:[%s0 + $0x80] sm:$0x11]
  %v41 = vld [vmem:[%s0 + $0x88] sm:$0x1]
  %v42 = vld [vmem:[%s1] sm:$0xf]
  %v43 = vld [vmem:[%s1 + $0x4] sm:$0xf]
  %v44 = vld [vmem:[%s1 + $0x8] sm:$0xf]
  %v45 = vld [vmem:[%s1 + $0xc] sm:$0xf]
  %v46 = vld [vmem:[%s1 + $0x10] sm:$0xf]
  %v47 = vld [vmem:[%s1 + $0x14] sm:$0xf]
  %v48 = vld [vmem:[%s1 + $0x18] sm:$0xf]
  %v49 = vld [vmem:[%s1 + $0x1c] sm:$0xf]
  %v50 = vld [vmem:[%s1 + $0x20] sm:$0xf]
  %v51 = vld [vmem:[%s1 + $0x24] sm:$0xf]
  %v52 = vld [vmem:[%s1 + $0x28] sm:$0xf]
  %v53 = vld [vmem:[%s1 + $0x2c] sm:$0xf]
  %v54 = vld [vmem:[%s1 + $0x30] sm:$0xf]
  %v55 = vld [vmem:[%s1 + $0x34] sm:$0xf]
  %v56 = vld [vmem:[%s1 + $0x38] sm:$0xf]
  %v57 = vld [vmem:[%s1 + $0x3c] sm:$0xf]
  %v58 = vld [vmem:[%s1 + $0x40] sm:$0xf]
  %v59 = vld [vmem:[%s1 + $0x44] sm:$0xf]
  %v60 = vld [vmem:[%s1 + $0x48] sm:$0xf]
  %v61 = vld [vmem:[%s1 + $0x4c] sm:$0xf]
  %v62 = vld [vmem:[%s1 + $0x50] sm:$0xf]
  %v63 = vld [vmem:[%s1 + $0x54] sm:$0xf]
  %v64 = vld [vmem:[%s1 + $0x58] sm:$0xf]
  %v65 = vld [vmem:[%s1 + $0x5c] sm:$0xf]
  %v66 = vld [vmem:[%s1 + $0x60] sm:$0xf]
  %v67 = vld [vmem:[%s1 + $0x64] sm:$0xf]
  %v68 = vld [vmem:[%s1 + $0x68] sm:$0xf]
  %v69 = vld [vmem:[%s1 + $0x6c] sm:$0xf]
  %v70 = vld [vmem:[%s1 + $0x70] sm:$0xf]
  %v71 = vld [vmem:[%s1 + $0x74] sm:$0xf]
  %v72 = vld [vmem:[%s1 + $0x78] sm:$0xf]
  %v73 = vld [vmem:[%s1 + $0x7c] sm:$0xf]
  %v74 = vld [vmem:[%s1 + $0x80] sm:$0xf]
  %v75 = vld [vmem:[%s1 + $0x84] sm:$0xf]
  %v76 = vld [vmem:[%s1 + $0x88] sm:$0xf]
  %v77 = vld [vmem:[%s1 + $0x8c] sm:$0xf]
  %v78 = vld [vmem:[%s1 + $0x90] sm:$0xf]
  %v79 = vld [vmem:[%s1 + $0x94] sm:$0xf]
  %v80 = vld [vmem:[%s1 + $0x98] sm:$0xf]
  %v81 = vld [vmem:[%s1 + $0x9c] sm:$0xf]
  %v82 = vld [vmem:[%s1 + $0xa0] sm:$0xf]
  %v83 = vld [vmem:[%s1 + $0xa4] sm:$0xf]
  %v84 = vld [vmem:[%s1 + $0xa8] sm:$0xf]
  %v85 = vld [vmem:[%s1 + $0xac] sm:$0xf]
  %v86 = vld [vmem:[%s1 + $0xb0] sm:$0xf]
  %v87 = vld [vmem:[%s1 + $0xb4] sm:$0xf]
  %v88 = vld [vmem:[%s1 + $0xb8] sm:$0xf]
  %v89 = vld [vmem:[%s1 + $0xbc] sm:$0xf]
  %v90 = vld [vmem:[%s1 + $0xc0] sm:$0xf]
  %v91 = vld [vmem:[%s1 + $0xc4] sm:$0xf]
  %v92 = vld [vmem:[%s1 + $0xc8] sm:$0xf]
  %v93 = vld [vmem:[%s1 + $0xcc] sm:$0xf]
  %v94 = vld [vmem:[%s1 + $0xd0] sm:$0xf]
  %v95 = vld [vmem:[%s1 + $0xd4] sm:$0xf]
  %v96 = vld [vmem:[%s1 + $0xd8] sm:$0xf]
  %v97 = vld [vmem:[%s1 + $0xdc] sm:$0xf]
  %v98 = vld [vmem:[%s1 + $0xe0] sm:$0xf]
  %v99 = vld [vmem:[%s1 + $0xe4] sm:$0xf]
  %v100 = vld [vmem:[%s1 + $0xe8] sm:$0xf]
  %v101 = vld [vmem:[%s1 + $0xec] sm:$0xf]
  %v102 = vld [vmem:[%s1 + $0xf0] sm:$0xf]
  %v103 = vld [vmem:[%s1 + $0xf4] sm:$0xf]
  %v104 = vld [vmem:[%s1 + $0xf8] sm:$0xf]
  %v105 = vld [vmem:[%s1 + $0xfc] sm:$0xf]
  %v106 = vld [vmem:[%s1 + $0x100] sm:$0xf]
  %v107 = vld [vmem:[%s1 + $0x104] sm:$0xf]
  %v108 = vld [vmem:[%s1 + $0x108] sm:$0xf]
  %v109 = vld [vmem:[%s1 + $0x10c] sm:$0xf]
  %v110 = vld [vmem:[%s1 + $0x110] sm:$0xf]
  %v111 = vld [vmem:[%s1 + $0x114] sm:$0xf]
  %v112 = vld [vmem:[%s1 + $0x118] sm:$0xf]
  %v113 = vld [vmem:[%s1 + $0x11c] sm:$0xf]
  %v114 = vld [vmem:[%s2] sm:$0x1]
  %v116 = vlaneseq
  %v117 = vshrl.u32 %v116, 7
  %v118 = vsub.s32 0, %v117
  %v119 = vrot.slane %v114, %v118
  %v142 = vunpack.c.l.b16 %v21
  %v143 = vunpack.c.h.b16 %v21
  %v144 = vunpack.c.l.b16 %v22
  %v145 = vunpack.c.h.b16 %v22
  %v146 = vunpack.c.l.b16 %v23
  %v147 = vunpack.c.l.b16 %v24
  %v148 = vunpack.c.h.b16 %v24
  %v149 = vunpack.c.l.b16 %v25
  %v150 = vunpack.c.h.b16 %v25
  %v151 = vunpack.c.l.b16 %v26
  %v152 = vunpack.c.l.b16 %v27
  %v153 = vunpack.c.h.b16 %v27
  %v154 = vunpack.c.l.b16 %v28
  %v155 = vunpack.c.h.b16 %v28
  %v156 = vunpack.c.l.b16 %v29
  %v157 = vunpack.c.l.b16 %v30
  %v158 = vunpack.c.h.b16 %v30
  %v159 = vunpack.c.l.b16 %v31
  %v160 = vunpack.c.h.b16 %v31
  %v161 = vunpack.c.l.b16 %v32
  %v162 = vunpack.c.l.b16 %v33
  %v163 = vunpack.c.h.b16 %v33
  %v164 = vunpack.c.l.b16 %v34
  %v165 = vunpack.c.h.b16 %v34
  %v166 = vunpack.c.l.b16 %v35
  %v167 = vunpack.c.l.b16 %v36
  %v168 = vunpack.c.h.b16 %v36
  %v169 = vunpack.c.l.b16 %v37
  %v170 = vunpack.c.h.b16 %v37
  %v171 = vunpack.c.l.b16 %v38
  %v172 = vunpack.c.l.b16 %v39
  %v173 = vunpack.c.h.b16 %v39
  %v174 = vunpack.c.l.b16 %v40
  %v175 = vunpack.c.h.b16 %v40
  %v176 = vunpack.c.l.b16 %v41
  %v177 = vpack.c.b16 %v147, %v142
  %v178 = vpack.c.b16 %v148, %v143
  %v179 = vpack.c.b16 %v149, %v144
  %v180 = vpack.c.b16 %v150, %v145
  %v181 = vpack.c.b16 %v151, %v146
  %v182 = vpack.c.b16 %v157, %v152
  %v183 = vpack.c.b16 %v158, %v153
  %v184 = vpack.c.b16 %v159, %v154
  %v185 = vpack.c.b16 %v160, %v155
  %v186 = vpack.c.b16 %v161, %v156
  %v187 = vpack.c.b16 %v167, %v162
  %v188 = vpack.c.b16 %v168, %v163
  %v189 = vpack.c.b16 %v169, %v164
  %v190 = vpack.c.b16 %v170, %v165
  %v191 = vpack.c.b16 %v171, %v166
  %v192 = vpack.c.b16 %v172, %v172
  %v193 = vpack.c.b16 %v173, %v173
  %v194 = vpack.c.b16 %v174, %v174
  %v195 = vpack.c.b16 %v175, %v175
  %v196 = vpack.c.b16 %v176, %v176
  %v285 = vunpack.c.l.b16 %v42
  %v286 = vunpack.c.l.b16 %v43
  %v287 = vunpack.c.l.b16 %v44
  %v288 = vunpack.c.l.b16 %v45
  %v289 = vunpack.c.l.b16 %v46
  %v290 = vunpack.c.l.b16 %v47
  %v291 = vunpack.c.l.b16 %v48
  %v292 = vunpack.c.l.b16 %v49
  %v293 = vunpack.c.l.b16 %v50
  %v294 = vunpack.c.l.b16 %v51
  %v295 = vunpack.c.l.b16 %v52
  %v296 = vunpack.c.l.b16 %v53
  %v297 = vunpack.c.l.b16 %v54
  %v298 = vunpack.c.l.b16 %v55
  %v299 = vunpack.c.l.b16 %v56
  %v300 = vunpack.c.l.b16 %v57
  %v301 = vunpack.c.l.b16 %v58
  %v302 = vunpack.c.l.b16 %v59
  %v303 = vunpack.c.l.b16 %v60
  %v304 = vunpack.c.l.b16 %v61
  %v305 = vunpack.c.l.b16 %v62
  %v306 = vunpack.c.l.b16 %v63
  %v307 = vunpack.c.l.b16 %v64
  %v308 = vunpack.c.l.b16 %v65
  %v309 = vunpack.c.l.b16 %v66
  %v310 = vunpack.c.l.b16 %v67
  %v311 = vunpack.c.l.b16 %v68
  %v312 = vunpack.c.l.b16 %v69
  %v313 = vunpack.c.l.b16 %v70
  %v314 = vunpack.c.l.b16 %v71
  %v315 = vunpack.c.l.b16 %v72
  %v316 = vunpack.c.l.b16 %v73
  %v317 = vunpack.c.l.b16 %v74
  %v318 = vunpack.c.l.b16 %v75
  %v319 = vunpack.c.l.b16 %v76
  %v320 = vunpack.c.l.b16 %v77
  %v321 = vunpack.c.l.b16 %v78
  %v322 = vunpack.c.l.b16 %v79
  %v323 = vunpack.c.l.b16 %v80
  %v324 = vunpack.c.l.b16 %v81
  %v325 = vunpack.c.l.b16 %v82
  %v326 = vunpack.c.l.b16 %v83
  %v327 = vunpack.c.l.b16 %v84
  %v328 = vunpack.c.l.b16 %v85
  %v329 = vunpack.c.l.b16 %v86
  %v330 = vunpack.c.l.b16 %v87
  %v331 = vunpack.c.l.b16 %v88
  %v332 = vunpack.c.l.b16 %v89
  %v333 = vunpack.c.l.b16 %v90
  %v334 = vunpack.c.l.b16 %v91
  %v335 = vunpack.c.l.b16 %v92
  %v336 = vunpack.c.l.b16 %v93
  %v337 = vunpack.c.l.b16 %v94
  %v338 = vunpack.c.l.b16 %v95
  %v339 = vunpack.c.l.b16 %v96
  %v340 = vunpack.c.l.b16 %v97
  %v341 = vunpack.c.l.b16 %v98
  %v342 = vunpack.c.l.b16 %v99
  %v343 = vunpack.c.l.b16 %v100
  %v344 = vunpack.c.l.b16 %v101
  %v345 = vunpack.c.l.b16 %v102
  %v346 = vunpack.c.l.b16 %v103
  %v347 = vunpack.c.l.b16 %v104
  %v348 = vunpack.c.l.b16 %v105
  %v349 = vunpack.c.l.b16 %v106
  %v350 = vunpack.c.l.b16 %v107
  %v351 = vunpack.c.l.b16 %v108
  %v352 = vunpack.c.l.b16 %v109
  %v353 = vunpack.c.l.b16 %v110
  %v354 = vunpack.c.l.b16 %v111
  %v355 = vunpack.c.l.b16 %v112
  %v356 = vunpack.c.l.b16 %v113
  %v357 = vpack.c.b16 %v286, %v285
  %v358 = vpack.c.b16 %v288, %v287
  %v359 = vpack.c.b16 %v290, %v289
  %v360 = vpack.c.b16 %v292, %v291
  %v361 = vpack.c.b16 %v294, %v293
  %v362 = vpack.c.b16 %v296, %v295
  %v363 = vpack.c.b16 %v298, %v297
  %v364 = vpack.c.b16 %v300, %v299
  %v365 = vpack.c.b16 %v302, %v301
  %v366 = vpack.c.b16 %v304, %v303
  %v367 = vpack.c.b16 %v306, %v305
  %v368 = vpack.c.b16 %v308, %v307
  %v369 = vpack.c.b16 %v310, %v309
  %v370 = vpack.c.b16 %v312, %v311
  %v371 = vpack.c.b16 %v314, %v313
  %v372 = vpack.c.b16 %v316, %v315
  %v373 = vpack.c.b16 %v318, %v317
  %v374 = vpack.c.b16 %v320, %v319
  %v375 = vpack.c.b16 %v322, %v321
  %v376 = vpack.c.b16 %v324, %v323
  %v377 = vpack.c.b16 %v326, %v325
  %v378 = vpack.c.b16 %v328, %v327
  %v379 = vpack.c.b16 %v330, %v329
  %v380 = vpack.c.b16 %v332, %v331
  %v381 = vpack.c.b16 %v334, %v333
  %v382 = vpack.c.b16 %v336, %v335
  %v383 = vpack.c.b16 %v338, %v337
  %v384 = vpack.c.b16 %v340, %v339
  %v385 = vpack.c.b16 %v342, %v341
  %v386 = vpack.c.b16 %v344, %v343
  %v387 = vpack.c.b16 %v346, %v345
  %v388 = vpack.c.b16 %v348, %v347
  %v389 = vpack.c.b16 %v350, %v349
  %v390 = vpack.c.b16 %v352, %v351
  %v391 = vpack.c.b16 %v354, %v353
  %v392 = vpack.c.b16 %v356, %v355
  %vm429 = vcmask 523264
  %v431 = vsel %vm429, %v181, 0
  %v434 = vsel %vm429, %v186, 0
  %v437 = vsel %vm429, %v191, 0
  %v440 = vsel %vm429, %v196, 0
  %442 = vmatprep.subr.bf16.mxu0 0
  %443 = vmatpush1.bf16.msra.mxu0 %v357
  %444 = vmatprep.subr.bf16.mxu0 0
  %445 = vmatpush1.bf16.msra.mxu0 %v358
  %446 = vmatprep.subr.bf16.mxu0 0
  %447 = vmatpush1.bf16.msra.mxu0 %v359
  %448 = vmatprep.subr.bf16.mxu0 0
  %449 = vmatpush1.bf16.msra.mxu0 %v360
  %450 = vmatprep.subr.bf16.mxu0 0
  %451 = vmatpush1.bf16.msra.mxu0 %v361
  %452 = vmatprep.subr.bf16.mxu0 0
  %453 = vmatpush1.bf16.msra.mxu0 %v362
  %454 = vmatprep.subr.bf16.mxu0 0
  %455 = vmatpush1.bf16.msra.mxu0 %v363
  %456 = vmatprep.subr.bf16.mxu0 0
  %457 = vmatpush1.bf16.msra.mxu0 %v364
  %458 = vmatprep.subr.bf16.mxu0 0
  %459 = vmatpush1.bf16.msra.mxu0 %v365
  %460 = vmatprep.subr.bf16.mxu0 0
  %461 = vmatpush1.bf16.msra.mxu0 %v366
  %462 = vmatprep.subr.bf16.mxu0 0
  %463 = vmatpush1.bf16.msra.mxu0 %v367
  %464 = vmatprep.subr.bf16.mxu0 0
  %465 = vmatpush1.bf16.msra.mxu0 %v368
  %466 = vmatprep.subr.bf16.mxu0 0
  %467 = vmatpush1.bf16.msra.mxu0 %v369
  %468 = vmatprep.subr.bf16.mxu0 0
  %469 = vmatpush1.bf16.msra.mxu0 %v370
  %470 = vmatprep.subr.bf16.mxu0 0
  %471 = vmatpush1.bf16.msra.mxu0 %v371
  %472 = vmatprep.subr.bf16.mxu0 0
  %473 = vmatpush1.bf16.msra.mxu0 %v372
  %474 = vmatprep.mubr.bf16.mxu0 %v178
  %475 = vmatmul.mubr.bf16.gmra.mrb[0].mxu0 %v177
  %v476 = vpop.f32.mrb[0].mxu0
  %v477 = vadd.f32 %v119, %v476
  %v478 = vpop.f32.mrb[0].mxu0
  %v479 = vpop.f32.mrb[0].mxu0
  %v480 = vadd.f32 %v119, %v479
  %v481 = vpop.f32.mrb[0].mxu0
  %482 = vmatprep.mubr.bf16.mxu0 %v183
  %483 = vmatmul.mubr.bf16.gmra.mrb[0].mxu0 %v182
  %v484 = vpop.f32.mrb[0].mxu0
  %v485 = vadd.f32 %v119, %v484
  %v486 = vpop.f32.mrb[0].mxu0
  %v487 = vpop.f32.mrb[0].mxu0
  %v488 = vadd.f32 %v119, %v487
  %v489 = vpop.f32.mrb[0].mxu0
  %490 = vmatprep.mubr.bf16.mxu0 %v188
  %491 = vmatmul.mubr.bf16.gmra.mrb[0].mxu0 %v187
  %v492 = vpop.f32.mrb[0].mxu0
  %v493 = vadd.f32 %v119, %v492
  %v494 = vpop.f32.mrb[0].mxu0
  %v495 = vpop.f32.mrb[0].mxu0
  %v496 = vadd.f32 %v119, %v495
  %v497 = vpop.f32.mrb[0].mxu0
  %498 = vmatprep.mubr.bf16.mxu0 %v193
  %499 = vmatmul.mubr.bf16.gmra.mrb[0].mxu0 %v192
  %v500 = vpop.f32.mrb[0].mxu0
  %v501 = vadd.f32 %v119, %v500
  %v502 = vpop.f32.mrb[0].mxu0
  %v503 = vpop.f32.mrb[0].mxu0
  %v504 = vpop.f32.mrb[0].mxu0
  %505 = vdwg.mxu0
  %506 = vmatprep.subr.bf16.mxu0 0
  %507 = vmatpush1.bf16.msra.mxu0 %v373
  %508 = vmatprep.subr.bf16.mxu0 0
  %509 = vmatpush1.bf16.msra.mxu0 %v374
  %510 = vmatprep.subr.bf16.mxu0 0
  %511 = vmatpush1.bf16.msra.mxu0 %v375
  %512 = vmatprep.subr.bf16.mxu0 0
  %513 = vmatpush1.bf16.msra.mxu0 %v376
  %514 = vmatprep.subr.bf16.mxu0 0
  %515 = vmatpush1.bf16.msra.mxu0 %v377
  %516 = vmatprep.subr.bf16.mxu0 0
  %517 = vmatpush1.bf16.msra.mxu0 %v378
  %518 = vmatprep.subr.bf16.mxu0 0
  %519 = vmatpush1.bf16.msra.mxu0 %v379
  %520 = vmatprep.subr.bf16.mxu0 0
  %521 = vmatpush1.bf16.msra.mxu0 %v380
  %522 = vmatprep.subr.bf16.mxu0 0
  %523 = vmatpush1.bf16.msra.mxu0 %v381
  %524 = vmatprep.subr.bf16.mxu0 0
  %525 = vmatpush1.bf16.msra.mxu0 %v382
  %526 = vmatprep.subr.bf16.mxu0 0
  %527 = vmatpush1.bf16.msra.mxu0 %v383
  %528 = vmatprep.subr.bf16.mxu0 0
  %529 = vmatpush1.bf16.msra.mxu0 %v384
  %530 = vmatprep.subr.bf16.mxu0 0
  %531 = vmatpush1.bf16.msra.mxu0 %v385
  %532 = vmatprep.subr.bf16.mxu0 0
  %533 = vmatpush1.bf16.msra.mxu0 %v386
  %534 = vmatprep.subr.bf16.mxu0 0
  %535 = vmatpush1.bf16.msra.mxu0 %v387
  %536 = vmatprep.subr.bf16.mxu0 0
  %537 = vmatpush1.bf16.msra.mxu0 %v388
  %538 = vmatprep.mubr.bf16.mxu0 %v180
  %539 = vmatmul.mubr.bf16.gmra.mrb[0].mxu0 %v179
  %v540 = vpop.f32.mrb[0].mxu0
  %v541 = vadd.f32 %v477, %v540
  %v542 = vpop.f32.mrb[0].mxu0
  %v543 = vpop.f32.mrb[0].mxu0
  %v544 = vadd.f32 %v480, %v543
  %v545 = vpop.f32.mrb[0].mxu0
  %546 = vmatprep.mubr.bf16.mxu0 %v185
  %547 = vmatmul.mubr.bf16.gmra.mrb[0].mxu0 %v184
  %v548 = vpop.f32.mrb[0].mxu0
  %v549 = vadd.f32 %v485, %v548
  %v550 = vpop.f32.mrb[0].mxu0
  %v551 = vpop.f32.mrb[0].mxu0
  %v552 = vadd.f32 %v488, %v551
  %v553 = vpop.f32.mrb[0].mxu0
  %554 = vmatprep.mubr.bf16.mxu0 %v190
  %555 = vmatmul.mubr.bf16.gmra.mrb[0].mxu0 %v189
  %v556 = vpop.f32.mrb[0].mxu0
  %v557 = vadd.f32 %v493, %v556
  %v558 = vpop.f32.mrb[0].mxu0
  %v559 = vpop.f32.mrb[0].mxu0
  %v560 = vadd.f32 %v496, %v559
  %v561 = vpop.f32.mrb[0].mxu0
  %562 = vmatprep.mubr.bf16.mxu0 %v195
  %563 = vmatmul.mubr.bf16.gmra.mrb[0].mxu0 %v194
  %v564 = vpop.f32.mrb[0].mxu0
  %v565 = vadd.f32 %v501, %v564
  %v566 = vpop.f32.mrb[0].mxu0
  %v567 = vpop.f32.mrb[0].mxu0
  %v568 = vpop.f32.mrb[0].mxu0
  %569 = vdwg.mxu0
  %570 = vmatprep.subr.bf16.mxu0 0
  %571 = vmatpush1.bf16.msra.mxu0 %v389
  %572 = vmatprep.subr.bf16.mxu0 0
  %573 = vmatpush1.bf16.msra.mxu0 %v390
  %574 = vmatprep.subr.bf16.mxu0 0
  %575 = vmatpush1.bf16.msra.mxu0 %v391
  %576 = vmatprep.subr.bf16.mxu0 0
  %577 = vmatpush1.bf16.msra.mxu0 %v392
  %578 = vmatprep.subr.bf16.mxu0 0
  %579 = vmatpush1.bf16.msra.mxu0 0
  %580 = vmatprep.subr.bf16.mxu0 0
  %581 = vmatpush1.bf16.msra.mxu0 0
  %582 = vmatprep.subr.bf16.mxu0 0
  %583 = vmatpush1.bf16.msra.mxu0 0
  %584 = vmatprep.subr.bf16.mxu0 0
  %585 = vmatpush1.bf16.msra.mxu0 0
  %586 = vmatprep.subr.bf16.mxu0 0
  %587 = vmatpush1.bf16.msra.mxu0 0
  %588 = vmatprep.subr.bf16.mxu0 0
  %589 = vmatpush1.bf16.msra.mxu0 0
  %590 = vmatprep.subr.bf16.mxu0 0
  %591 = vmatpush1.bf16.msra.mxu0 0
  %592 = vmatprep.subr.bf16.mxu0 0
  %593 = vmatpush1.bf16.msra.mxu0 0
  %594 = vmatprep.subr.bf16.mxu0 0
  %595 = vmatpush1.bf16.msra.mxu0 0
  %596 = vmatprep.subr.bf16.mxu0 0
  %597 = vmatpush1.bf16.msra.mxu0 0
  %598 = vmatprep.subr.bf16.mxu0 0
  %599 = vmatpush1.bf16.msra.mxu0 0
  %600 = vmatprep.subr.bf16.mxu0 0
  %601 = vmatpush1.bf16.msra.mxu0 0
  %602 = vmatprep.mubr.bf16.mxu0 0
  %603 = vmatmul.mubr.bf16.gmra.mrb[0].mxu0 %v431
  %v604 = vpop.f32.mrb[0].mxu0
  %v605 = vadd.f32 %v541, %v604
  %v606 = vpop.f32.mrb[0].mxu0
  %v607 = vpop.f32.mrb[0].mxu0
  %v608 = vadd.f32 %v544, %v607
  %v609 = vpop.f32.mrb[0].mxu0
  %610 = vmatprep.mubr.bf16.mxu0 0
  %611 = vmatmul.mubr.bf16.gmra.mrb[0].mxu0 %v434
  %v612 = vpop.f32.mrb[0].mxu0
  %v613 = vadd.f32 %v549, %v612
  %v614 = vpop.f32.mrb[0].mxu0
  %v615 = vpop.f32.mrb[0].mxu0
  %v616 = vadd.f32 %v552, %v615
  %v617 = vpop.f32.mrb[0].mxu0
  %618 = vmatprep.mubr.bf16.mxu0 0
  %619 = vmatmul.mubr.bf16.gmra.mrb[0].mxu0 %v437
  %v620 = vpop.f32.mrb[0].mxu0
  %v621 = vadd.f32 %v557, %v620
  %v622 = vpop.f32.mrb[0].mxu0
  %v623 = vpop.f32.mrb[0].mxu0
  %v624 = vadd.f32 %v560, %v623
  %v625 = vpop.f32.mrb[0].mxu0
  %626 = vmatprep.mubr.bf16.mxu0 0
  %627 = vmatmul.mubr.bf16.gmra.mrb[0].mxu0 %v440
  %v628 = vpop.f32.mrb[0].mxu0
  %v629 = vadd.f32 %v565, %v628
  %v630 = vpop.f32.mrb[0].mxu0
  %v631 = vpop.f32.mrb[0].mxu0
  %v632 = vpop.f32.mrb[0].mxu0
  %633 = vdwg.mxu0
  %v634 = vadd.f32 %v605, %v608
  %v635 = vadd.f32 %v634, %v613
  %v636 = vadd.f32 %v635, %v616
  %v637 = vadd.f32 %v636, %v621
  %v638 = vadd.f32 %v637, %v624
  %vm639 = vcmask 1041408
  %v640 = vsel %vm639, %v629, 0.0
  %v641 = vadd.f32 %v638, %v640
  %v642 = vrot.slane %v641, 4
  %v643 = vadd.f32 %v641, %v642
  %v644 = vrot.slane %v643, 2
  %v645 = vadd.f32 %v643, %v644
  %v646 = vrot.slane %v645, 1
  %v647 = vadd.f32 %v645, %v646
  %v648 = vrcp.pop 50.0
  %v649 = vmul.f32 %v647, %v648
  %v650 = vmul.f32 %v605, %v605
  %v651 = vmul.f32 %v608, %v608
  %v652 = vmul.f32 %v613, %v613
  %v653 = vmul.f32 %v616, %v616
  %v654 = vmul.f32 %v621, %v621
  %v655 = vmul.f32 %v624, %v624
  %v656 = vmul.f32 %v629, %v629
  %v657 = vadd.f32 %v650, %v651
  %v658 = vadd.f32 %v657, %v652
  %v659 = vadd.f32 %v658, %v653
  %v660 = vadd.f32 %v659, %v654
  %v661 = vadd.f32 %v660, %v655
  %v662 = vsel %vm639, %v656, 0.0
  %v663 = vadd.f32 %v661, %v662
  %v664 = vrot.slane %v663, 4
  %v665 = vadd.f32 %v663, %v664
  %v666 = vrot.slane %v665, 2
  %v667 = vadd.f32 %v665, %v666
  %v668 = vrot.slane %v667, 1
  %v669 = vadd.f32 %v667, %v668
  %v670 = vmul.f32 %v669, %v648
  %v671 = vmul.f32 %v649, %v649
  %v672 = vsub.f32 %v670, %v671
  %v673 = vmax.f32 %v672, 0.0
  %v674 = vadd.f32 %v673, 1e-05
  %v675 = vrsqrt.pop %v674
  %v676 = vld [vmem:[%s3] sm:$0x1]
  %v677 = vmul.f32 %v675, %v676
  %v678 = vld [vmem:[%s4] sm:$0x1]
  %v679 = vmul.f32 %v649, %v677
  %v680 = vsub.f32 %v678, %v679
  %v681 = vlaneseq
  %v682 = vshrl.u32 %v681, 7
  %v683 = vsub.s32 0, %v682
  %v684 = vrot.slane %v677, %v683
  %v685 = vmul.f32 %v605, %v684
  %v686 = vmul.f32 %v608, %v684
  %v687 = vmul.f32 %v613, %v684
  %v688 = vmul.f32 %v616, %v684
  %v689 = vmul.f32 %v621, %v684
  %v690 = vmul.f32 %v624, %v684
  %v691 = vmul.f32 %v629, %v684
  %v693 = vlaneseq
  %v694 = vshrl.u32 %v693, 7
  %v695 = vsub.s32 0, %v694
  %v696 = vrot.slane %v680, %v695
  %v698 = vadd.f32 %v685, %v696
  %v699 = vadd.f32 %v686, %v696
  %v700 = vadd.f32 %v687, %v696
  %v701 = vadd.f32 %v688, %v696
  %v702 = vadd.f32 %v689, %v696
  %v703 = vadd.f32 %v690, %v696
  %v704 = vadd.f32 %v691, %v696
  %vm705 = vcmp.gt.f32.partialorder %v698, 0.0
  %vm706 = vcmp.gt.f32.partialorder %v699, 0.0
  %vm707 = vcmp.gt.f32.partialorder %v700, 0.0
  %vm708 = vcmp.gt.f32.partialorder %v701, 0.0
  %vm709 = vcmp.gt.f32.partialorder %v702, 0.0
  %vm710 = vcmp.gt.f32.partialorder %v703, 0.0
  %vm711 = vcmp.gt.f32.partialorder %v704, 0.0
  %v712 = vmul.f32 %v698, 0.02
  %v713 = vmul.f32 %v699, 0.02
  %v714 = vmul.f32 %v700, 0.02
  %v715 = vmul.f32 %v701, 0.02
  %v716 = vmul.f32 %v702, 0.02
  %v717 = vmul.f32 %v703, 0.02
  %v718 = vmul.f32 %v704, 0.02
  %v719 = vsel %vm705, %v698, %v712
  %v720 = vsel %vm706, %v699, %v713
  %v721 = vsel %vm707, %v700, %v714
  %v722 = vsel %vm708, %v701, %v715
  %v723 = vsel %vm709, %v702, %v716
  %v724 = vsel %vm710, %v703, %v717
  %v725 = vsel %vm711, %v704, %v718
  %v726 = vpack.c.bf16 %v720, %v719
  %v727 = vpack.c.bf16 %v722, %v721
  %v728 = vpack.c.bf16 %v724, %v723
  %v729 = vpack.c.bf16 %v725, %v725
  %v734 = vunpack.c.l.b16 %v726
  %v735 = vunpack.c.h.b16 %v726
  %v736 = vunpack.c.l.b16 %v727
  %v737 = vunpack.c.h.b16 %v727
  %v738 = vunpack.c.l.b16 %v728
  %v739 = vunpack.c.h.b16 %v728
  %v740 = vunpack.c.l.b16 %v729
  %v741 = vpack.c.b16 %v734, %v734
  %v742 = vpack.c.b16 %v735, %v735
  %v743 = vpack.c.b16 %v736, %v736
  %v744 = vpack.c.b16 %v737, %v737
  %v745 = vpack.c.b16 %v738, %v738
  %v746 = vpack.c.b16 %v739, %v739
  %v747 = vpack.c.b16 %v740, %v740
  %755 = vst [vmem:[%s5] sm:$0xf] %v741
  %756 = vst [vmem:[%s5 + $0x4] sm:$0xf] %v742
  %757 = vst [vmem:[%s5 + $0x8] sm:$0xf] %v743
  %758 = vst [vmem:[%s5 + $0xc] sm:$0xf] %v744
  %759 = vst [vmem:[%s5 + $0x10] sm:$0xf] %v745
  %760 = vst [vmem:[%s5 + $0x14] sm:$0xf] %v746
  %761 = vst [vmem:[%s5 + $0x18] sm:$0x1] %v747
  // Predicated region
  $region22: #{discriminator_forward.6} parent=0 // pred_check
    _
  $region23: #{discriminator_forward.6} parent=0 // pred_check_branch
    %763 = sbr.rel (0) target = $region25
  $region24: #{discriminator_forward.6} parent=0 // pred_region
    _
  $region25: #{discriminator_forward.6} parent=0 // pred_fallthru
    _
  // Predicated region
  $region26: #{discriminator_forward.6} parent=0 // pred_check
    _
  $region27: #{discriminator_forward.6} parent=0 // pred_check_branch
    %765 = sbr.rel (0) target = $region29
  $region28: #{discriminator_forward.6} parent=0 // pred_region
    _
  $region29: #{discriminator_forward.6} parent=0 // pred_fallthru
    _

// kernel: discriminator_forward.7
$region0: #{discriminator_forward.7}
  #allocation0 [shape = 'u32[]', space=smem, size = 0x4, offset = 0x4, fixed_abs, tag = 'smem constant byte address 0x4 - core index']
  #allocation1 [shape = 'u32[144,128]{1,0:T(1,128)}', space=vmem, size = 0x12000, scoped, tag = 'internal scratch']
  #allocation2 [shape = 'f32[1,1]{1,0:T(1,128)S(1)}', space=vmem, size = 0x200, scoped, tag = 'scoped memory for discriminator_forward.7']
  %s0 = inlined_call_operand.vmem [shape: bf16[8,1152], index: 0, kind: input, shape index: {}]
  %s1 = inlined_call_operand.vmem [shape: bf16[1152,256], index: 1, kind: input, shape index: {}]
  %s2 = inlined_call_operand.vmem [shape: f32[1,256], index: 2, kind: input, shape index: {}]
  %s3 = inlined_call_operand.vmem [shape: f32[1,256], index: 3, kind: input, shape index: {}]
  %s4 = inlined_call_operand.vmem [shape: f32[1,256], index: 4, kind: input, shape index: {}]
  %s5 = inlined_call_operand.vmem [shape: f32[8,256], index: 5, kind: input, shape index: {}]
  %s6 = inlined_call_operand.vmem [shape: f32[2,8], index: 6, kind: input, shape index: {}]
  %s7 = inlined_call_operand.<no memory space> [shape: f32[1,1], index: 7, kind: input, shape index: {}]
  %s8 = inlined_call_operand.vmem [shape: f32[2,1], index: 8, kind: output, shape index: {}]
  %s9 = sld [smem:[#allocation0]]
  $region42: #{discriminator_forward.7} parent=0
    _
  %s11 = ssub.s32 1, %s9
  %s12 = scalar_select 0, %s11, %s9
  %v13 = vstv %s7
  %14 = vst [vmem:[#allocation2] sm:$0x1] %v13
  // Predicated region
  $region2: #{discriminator_forward.7} parent=0 // pred_check
    _
  $region3: #{discriminator_forward.7} parent=0 // pred_check_branch
    %16 = sbr.rel (0) target = $region5
  $region4: #{discriminator_forward.7} parent=0 // pred_region
    _
  $region5: #{discriminator_forward.7} parent=0 // pred_fallthru
    _
  // Predicated region
  $region6: #{discriminator_forward.7} parent=0 // pred_check
    _
  $region7: #{discriminator_forward.7} parent=0 // pred_check_branch
    %18 = sbr.rel (0) target = $region9
  $region8: #{discriminator_forward.7} parent=0 // pred_region
    _
  $region9: #{discriminator_forward.7} parent=0 // pred_fallthru
    _
  // Predicated region
  $region10: #{discriminator_forward.7} parent=0 // pred_check
    _
  $region11: #{discriminator_forward.7} parent=0 // pred_check_branch
    %20 = sbr.rel (0) target = $region13
  $region12: #{discriminator_forward.7} parent=0 // pred_region
    _
  $region13: #{discriminator_forward.7} parent=0 // pred_fallthru
    _
  // Predicated region
  $region14: #{discriminator_forward.7} parent=0 // pred_check
    _
  $region15: #{discriminator_forward.7} parent=0 // pred_check_branch
    %22 = sbr.rel (0) target = $region17
  $region16: #{discriminator_forward.7} parent=0 // pred_region
    _
  $region17: #{discriminator_forward.7} parent=0 // pred_fallthru
    _
  // Predicated region
  $region18: #{discriminator_forward.7} parent=0 // pred_check
    _
  $region19: #{discriminator_forward.7} parent=0 // pred_check_branch
    %24 = sbr.rel (0) target = $region21
  $region20: #{discriminator_forward.7} parent=0 // pred_region
    _
  $region21: #{discriminator_forward.7} parent=0 // pred_fallthru
    _
  // Predicated region
  $region22: #{discriminator_forward.7} parent=0 // pred_check
    _
  $region23: #{discriminator_forward.7} parent=0 // pred_check_branch
    %26 = sbr.rel (0) target = $region25
  $region24: #{discriminator_forward.7} parent=0 // pred_region
    _
  $region25: #{discriminator_forward.7} parent=0 // pred_fallthru
    _
  // Predicated region
  $region26: #{discriminator_forward.7} parent=0 // pred_check
    _
  $region27: #{discriminator_forward.7} parent=0 // pred_check_branch
    %28 = sbr.rel (0) target = $region29
  $region28: #{discriminator_forward.7} parent=0 // pred_region
    _
  $region29: #{discriminator_forward.7} parent=0 // pred_fallthru
    _
  // Predicated region
  $region30: #{discriminator_forward.7} parent=0 // pred_check
    _
  $region31: #{discriminator_forward.7} parent=0 // pred_check_branch
    %30 = sbr.rel (0) target = $region33
  $region32: #{discriminator_forward.7} parent=0 // pred_region
    _
  $region33: #{discriminator_forward.7} parent=0 // pred_fallthru
    _
  %v32 = vld [vmem:[%s0] sm:$0xff]
  %v33 = vld [vmem:[%s0 + $0x8] sm:$0xff]
  %v34 = vld [vmem:[%s0 + $0x10] sm:$0xff]
  %v35 = vld [vmem:[%s0 + $0x18] sm:$0xff]
  %v36 = vld [vmem:[%s0 + $0x20] sm:$0xf]
  %v37 = vld [vmem:[%s1] sm:$0xff]
  %v38 = vld [vmem:[%s1 + $0x8] sm:$0xff]
  %v39 = vld [vmem:[%s1 + $0x10] sm:$0xff]
  %v40 = vld [vmem:[%s1 + $0x18] sm:$0xff]
  %v41 = vld [vmem:[%s1 + $0x20] sm:$0xff]
  %v42 = vld [vmem:[%s1 + $0x28] sm:$0xff]
  %v43 = vld [vmem:[%s1 + $0x30] sm:$0xff]
  %v44 = vld [vmem:[%s1 + $0x38] sm:$0xff]
  %v45 = vld [vmem:[%s1 + $0x40] sm:$0xff]
  %v46 = vld [vmem:[%s1 + $0x48] sm:$0xff]
  %v47 = vld [vmem:[%s1 + $0x50] sm:$0xff]
  %v48 = vld [vmem:[%s1 + $0x58] sm:$0xff]
  %v49 = vld [vmem:[%s1 + $0x60] sm:$0xff]
  %v50 = vld [vmem:[%s1 + $0x68] sm:$0xff]
  %v51 = vld [vmem:[%s1 + $0x70] sm:$0xff]
  %v52 = vld [vmem:[%s1 + $0x78] sm:$0xff]
  %v53 = vld [vmem:[%s1 + $0x80] sm:$0xff]
  %v54 = vld [vmem:[%s1 + $0x88] sm:$0xff]
  %v55 = vld [vmem:[%s1 + $0x90] sm:$0xff]
  %v56 = vld [vmem:[%s1 + $0x98] sm:$0xff]
  %v57 = vld [vmem:[%s1 + $0xa0] sm:$0xff]
  %v58 = vld [vmem:[%s1 + $0xa8] sm:$0xff]
  %v59 = vld [vmem:[%s1 + $0xb0] sm:$0xff]
  %v60 = vld [vmem:[%s1 + $0xb8] sm:$0xff]
  %v61 = vld [vmem:[%s1 + $0xc0] sm:$0xff]
  %v62 = vld [vmem:[%s1 + $0xc8] sm:$0xff]
  %v63 = vld [vmem:[%s1 + $0xd0] sm:$0xff]
  %v64 = vld [vmem:[%s1 + $0xd8] sm:$0xff]
  %v65 = vld [vmem:[%s1 + $0xe0] sm:$0xff]
  %v66 = vld [vmem:[%s1 + $0xe8] sm:$0xff]
  %v67 = vld [vmem:[%s1 + $0xf0] sm:$0xff]
  %v68 = vld [vmem:[%s1 + $0xf8] sm:$0xff]
  %v69 = vld [vmem:[%s1 + $0x100] sm:$0xff]
  %v70 = vld [vmem:[%s1 + $0x108] sm:$0xff]
  %v71 = vld [vmem:[%s1 + $0x110] sm:$0xff]
  %v72 = vld [vmem:[%s1 + $0x118] sm:$0xff]
  %v73 = vld [vmem:[%s1 + $0x120] sm:$0xff]
  %v74 = vld [vmem:[%s1 + $0x128] sm:$0xff]
  %v75 = vld [vmem:[%s1 + $0x130] sm:$0xff]
  %v76 = vld [vmem:[%s1 + $0x138] sm:$0xff]
  %v77 = vld [vmem:[%s1 + $0x140] sm:$0xff]
  %v78 = vld [vmem:[%s1 + $0x148] sm:$0xff]
  %v79 = vld [vmem:[%s1 + $0x150] sm:$0xff]
  %v80 = vld [vmem:[%s1 + $0x158] sm:$0xff]
  %v81 = vld [vmem:[%s1 + $0x160] sm:$0xff]
  %v82 = vld [vmem:[%s1 + $0x168] sm:$0xff]
  %v83 = vld [vmem:[%s1 + $0x170] sm:$0xff]
  %v84 = vld [vmem:[%s1 + $0x178] sm:$0xff]
  %v85 = vld [vmem:[%s1 + $0x180] sm:$0xff]
  %v86 = vld [vmem:[%s1 + $0x188] sm:$0xff]
  %v87 = vld [vmem:[%s1 + $0x190] sm:$0xff]
  %v88 = vld [vmem:[%s1 + $0x198] sm:$0xff]
  %v89 = vld [vmem:[%s1 + $0x1a0] sm:$0xff]
  %v90 = vld [vmem:[%s1 + $0x1a8] sm:$0xff]
  %v91 = vld [vmem:[%s1 + $0x1b0] sm:$0xff]
  %v92 = vld [vmem:[%s1 + $0x1b8] sm:$0xff]
  %v93 = vld [vmem:[%s1 + $0x1c0] sm:$0xff]
  %v94 = vld [vmem:[%s1 + $0x1c8] sm:$0xff]
  %v95 = vld [vmem:[%s1 + $0x1d0] sm:$0xff]
  %v96 = vld [vmem:[%s1 + $0x1d8] sm:$0xff]
  %v97 = vld [vmem:[%s1 + $0x1e0] sm:$0xff]
  %v98 = vld [vmem:[%s1 + $0x1e8] sm:$0xff]
  %v99 = vld [vmem:[%s1 + $0x1f0] sm:$0xff]
  %v100 = vld [vmem:[%s1 + $0x1f8] sm:$0xff]
  %v101 = vld [vmem:[%s1 + $0x200] sm:$0xff]
  %v102 = vld [vmem:[%s1 + $0x208] sm:$0xff]
  %v103 = vld [vmem:[%s1 + $0x210] sm:$0xff]
  %v104 = vld [vmem:[%s1 + $0x218] sm:$0xff]
  %v105 = vld [vmem:[%s1 + $0x220] sm:$0xff]
  %v106 = vld [vmem:[%s1 + $0x228] sm:$0xff]
  %v107 = vld [vmem:[%s1 + $0x230] sm:$0xff]
  %v108 = vld [vmem:[%s1 + $0x238] sm:$0xff]
  %v109 = vld [vmem:[%s1 + $0x240] sm:$0xff]
  %v110 = vld [vmem:[%s1 + $0x248] sm:$0xff]
  %v111 = vld [vmem:[%s1 + $0x250] sm:$0xff]
  %v112 = vld [vmem:[%s1 + $0x258] sm:$0xff]
  %v113 = vld [vmem:[%s1 + $0x260] sm:$0xff]
  %v114 = vld [vmem:[%s1 + $0x268] sm:$0xff]
  %v115 = vld [vmem:[%s1 + $0x270] sm:$0xff]
  %v116 = vld [vmem:[%s1 + $0x278] sm:$0xff]
  %v117 = vld [vmem:[%s1 + $0x280] sm:$0xff]
  %v118 = vld [vmem:[%s1 + $0x288] sm:$0xff]
  %v119 = vld [vmem:[%s1 + $0x290] sm:$0xff]
  %v120 = vld [vmem:[%s1 + $0x298] sm:$0xff]
  %v121 = vld [vmem:[%s1 + $0x2a0] sm:$0xff]
  %v122 = vld [vmem:[%s1 + $0x2a8] sm:$0xff]
  %v123 = vld [vmem:[%s1 + $0x2b0] sm:$0xff]
  %v124 = vld [vmem:[%s1 + $0x2b8] sm:$0xff]
  %v125 = vld [vmem:[%s1 + $0x2c0] sm:$0xff]
  %v126 = vld [vmem:[%s1 + $0x2c8] sm:$0xff]
  %v127 = vld [vmem:[%s1 + $0x2d0] sm:$0xff]
  %v128 = vld [vmem:[%s1 + $0x2d8] sm:$0xff]
  %v129 = vld [vmem:[%s1 + $0x2e0] sm:$0xff]
  %v130 = vld [vmem:[%s1 + $0x2e8] sm:$0xff]
  %v131 = vld [vmem:[%s1 + $0x2f0] sm:$0xff]
  %v132 = vld [vmem:[%s1 + $0x2f8] sm:$0xff]
  %v133 = vld [vmem:[%s1 + $0x300] sm:$0xff]
  %v134 = vld [vmem:[%s1 + $0x308] sm:$0xff]
  %v135 = vld [vmem:[%s1 + $0x310] sm:$0xff]
  %v136 = vld [vmem:[%s1 + $0x318] sm:$0xff]
  %v137 = vld [vmem:[%s1 + $0x320] sm:$0xff]
  %v138 = vld [vmem:[%s1 + $0x328] sm:$0xff]
  %v139 = vld [vmem:[%s1 + $0x330] sm:$0xff]
  %v140 = vld [vmem:[%s1 + $0x338] sm:$0xff]
  %v141 = vld [vmem:[%s1 + $0x340] sm:$0xff]
  %v142 = vld [vmem:[%s1 + $0x348] sm:$0xff]
  %v143 = vld [vmem:[%s1 + $0x350] sm:$0xff]
  %v144 = vld [vmem:[%s1 + $0x358] sm:$0xff]
  %v145 = vld [vmem:[%s1 + $0x360] sm:$0xff]
  %v146 = vld [vmem:[%s1 + $0x368] sm:$0xff]
  %v147 = vld [vmem:[%s1 + $0x370] sm:$0xff]
  %v148 = vld [vmem:[%s1 + $0x378] sm:$0xff]
  %v149 = vld [vmem:[%s1 + $0x380] sm:$0xff]
  %v150 = vld [vmem:[%s1 + $0x388] sm:$0xff]
  %v151 = vld [vmem:[%s1 + $0x390] sm:$0xff]
  %v152 = vld [vmem:[%s1 + $0x398] sm:$0xff]
  %v153 = vld [vmem:[%s1 + $0x3a0] sm:$0xff]
  %v154 = vld [vmem:[%s1 + $0x3a8] sm:$0xff]
  %v155 = vld [vmem:[%s1 + $0x3b0] sm:$0xff]
  %v156 = vld [vmem:[%s1 + $0x3b8] sm:$0xff]
  %v157 = vld [vmem:[%s1 + $0x3c0] sm:$0xff]
  %v158 = vld [vmem:[%s1 + $0x3c8] sm:$0xff]
  %v159 = vld [vmem:[%s1 + $0x3d0] sm:$0xff]
  %v160 = vld [vmem:[%s1 + $0x3d8] sm:$0xff]
  %v161 = vld [vmem:[%s1 + $0x3e0] sm:$0xff]
  %v162 = vld [vmem:[%s1 + $0x3e8] sm:$0xff]
  %v163 = vld [vmem:[%s1 + $0x3f0] sm:$0xff]
  %v164 = vld [vmem:[%s1 + $0x3f8] sm:$0xff]
  %v165 = vld [vmem:[%s1 + $0x400] sm:$0xff]
  %v166 = vld [vmem:[%s1 + $0x408] sm:$0xff]
  %v167 = vld [vmem:[%s1 + $0x410] sm:$0xff]
  %v168 = vld [vmem:[%s1 + $0x418] sm:$0xff]
  %v169 = vld [vmem:[%s1 + $0x420] sm:$0xff]
  %v170 = vld [vmem:[%s1 + $0x428] sm:$0xff]
  %v171 = vld [vmem:[%s1 + $0x430] sm:$0xff]
  %v172 = vld [vmem:[%s1 + $0x438] sm:$0xff]
  %v173 = vld [vmem:[%s1 + $0x440] sm:$0xff]
  %v174 = vld [vmem:[%s1 + $0x448] sm:$0xff]
  %v175 = vld [vmem:[%s1 + $0x450] sm:$0xff]
  %v176 = vld [vmem:[%s1 + $0x458] sm:$0xff]
  %v177 = vld [vmem:[%s1 + $0x460] sm:$0xff]
  %v178 = vld [vmem:[%s1 + $0x468] sm:$0xff]
  %v179 = vld [vmem:[%s1 + $0x470] sm:$0xff]
  %v180 = vld [vmem:[%s1 + $0x478] sm:$0xff]
  %v181 = vld [vmem:[%s2] sm:$0x3]
  %v183 = vlaneseq
  %v184 = vshrl.u32 %v183, 7
  %v185 = vsub.s32 0, %v184
  %v186 = vrot.slane %v181, %v185
  %v187 = vlaneseq
  %v188 = vshrl.u32 %v187, 7
  %v189 = vsub.s32 1, %v188
  %v190 = vrot.slane %v181, %v189
  %v198 = vunpack.c.l.b16 %v32
  %v199 = vunpack.c.h.b16 %v32
  %v200 = vunpack.c.l.b16 %v33
  %v201 = vunpack.c.h.b16 %v33
  %v202 = vunpack.c.l.b16 %v34
  %v203 = vunpack.c.h.b16 %v34
  %v204 = vunpack.c.l.b16 %v35
  %v205 = vunpack.c.h.b16 %v35
  %v206 = vunpack.c.l.b16 %v36
  %v207 = vpack.c.b16 %v198, %v198
  %v208 = vpack.c.b16 %v199, %v199
  %v209 = vpack.c.b16 %v200, %v200
  %v210 = vpack.c.b16 %v201, %v201
  %v211 = vpack.c.b16 %v202, %v202
  %v212 = vpack.c.b16 %v203, %v203
  %v213 = vpack.c.b16 %v204, %v204
  %v214 = vpack.c.b16 %v205, %v205
  %v215 = vpack.c.b16 %v206, %v206
  %v369 = vunpack.c.l.b16 %v37
  %v370 = vunpack.c.h.b16 %v37
  %v371 = vunpack.c.l.b16 %v38
  %v372 = vunpack.c.h.b16 %v38
  %v373 = vunpack.c.l.b16 %v39
  %v374 = vunpack.c.h.b16 %v39
  %v375 = vunpack.c.l.b16 %v40
  %v376 = vunpack.c.h.b16 %v40
  %v377 = vunpack.c.l.b16 %v41
  %v378 = vunpack.c.h.b16 %v41
  %v379 = vunpack.c.l.b16 %v42
  %v380 = vunpack.c.h.b16 %v42
  %v381 = vunpack.c.l.b16 %v43
  %v382 = vunpack.c.h.b16 %v43
  %v383 = vunpack.c.l.b16 %v44
  %v384 = vunpack.c.h.b16 %v44
  %v385 = vunpack.c.l.b16 %v45
  %v386 = vunpack.c.h.b16 %v45
  %v387 = vunpack.c.l.b16 %v46
  %v388 = vunpack.c.h.b16 %v46
  %v389 = vunpack.c.l.b16 %v47
  %v390 = vunpack.c.h.b16 %v47
  %v391 = vunpack.c.l.b16 %v48
  %v392 = vunpack.c.h.b16 %v48
  %v393 = vunpack.c.l.b16 %v49
  %v394 = vunpack.c.h.b16 %v49
  %v395 = vunpack.c.l.b16 %v50
  %v396 = vunpack.c.h.b16 %v50
  %v397 = vunpack.c.l.b16 %v51
  %v398 = vunpack.c.h.b16 %v51
  %v399 = vunpack.c.l.b16 %v52
  %v400 = vunpack.c.h.b16 %v52
  %v401 = vunpack.c.l.b16 %v53
  %v402 = vunpack.c.h.b16 %v53
  %v403 = vunpack.c.l.b16 %v54
  %v404 = vunpack.c.h.b16 %v54
  %v405 = vunpack.c.l.b16 %v55
  %v406 = vunpack.c.h.b16 %v55
  %v407 = vunpack.c.l.b16 %v56
  %v408 = vunpack.c.h.b16 %v56
  %v409 = vunpack.c.l.b16 %v57
  %v410 = vunpack.c.h.b16 %v57
  %v411 = vunpack.c.l.b16 %v58
  %v412 = vunpack.c.h.b16 %v58
  %v413 = vunpack.c.l.b16 %v59
  %v414 = vunpack.c.h.b16 %v59
  %v415 = vunpack.c.l.b16 %v60
  %v416 = vunpack.c.h.b16 %v60
  %v417 = vunpack.c.l.b16 %v61
  %v418 = vunpack.c.h.b16 %v61
  %v419 = vunpack.c.l.b16 %v62
  %v420 = vunpack.c.h.b16 %v62
  %v421 = vunpack.c.l.b16 %v63
  %v422 = vunpack.c.h.b16 %v63
  %v423 = vunpack.c.l.b16 %v64
  %v424 = vunpack.c.h.b16 %v64
  %v425 = vunpack.c.l.b16 %v65
  %v426 = vunpack.c.h.b16 %v65
  %v427 = vunpack.c.l.b16 %v66
  %v428 = vunpack.c.h.b16 %v66
  %v429 = vunpack.c.l.b16 %v67
  %v430 = vunpack.c.h.b16 %v67
  %v431 = vunpack.c.l.b16 %v68
  %v432 = vunpack.c.h.b16 %v68
  %v433 = vunpack.c.l.b16 %v69
  %v434 = vunpack.c.h.b16 %v69
  %v435 = vunpack.c.l.b16 %v70
  %v436 = vunpack.c.h.b16 %v70
  %v437 = vunpack.c.l.b16 %v71
  %v438 = vunpack.c.h.b16 %v71
  %v439 = vunpack.c.l.b16 %v72
  %v440 = vunpack.c.h.b16 %v72
  %v441 = vunpack.c.l.b16 %v73
  %v442 = vunpack.c.h.b16 %v73
  %v443 = vunpack.c.l.b16 %v74
  %v444 = vunpack.c.h.b16 %v74
  %v445 = vunpack.c.l.b16 %v75
  %v446 = vunpack.c.h.b16 %v75
  %v447 = vunpack.c.l.b16 %v76
  %v448 = vunpack.c.h.b16 %v76
  %v449 = vunpack.c.l.b16 %v77
  %v450 = vunpack.c.h.b16 %v77
  %v451 = vunpack.c.l.b16 %v78
  %v452 = vunpack.c.h.b16 %v78
  %v453 = vunpack.c.l.b16 %v79
  %v454 = vunpack.c.h.b16 %v79
  %v455 = vunpack.c.l.b16 %v80
  %v456 = vunpack.c.h.b16 %v80
  %v457 = vunpack.c.l.b16 %v81
  %v458 = vunpack.c.h.b16 %v81
  %v459 = vunpack.c.l.b16 %v82
  %v460 = vunpack.c.h.b16 %v82
  %v461 = vunpack.c.l.b16 %v83
  %v462 = vunpack.c.h.b16 %v83
  %v463 = vunpack.c.l.b16 %v84
  %v464 = vunpack.c.h.b16 %v84
  %v465 = vunpack.c.l.b16 %v85
  %v466 = vunpack.c.h.b16 %v85
  %v467 = vunpack.c.l.b16 %v86
  %v468 = vunpack.c.h.b16 %v86
  %v469 = vunpack.c.l.b16 %v87
  %v470 = vunpack.c.h.b16 %v87
  %v471 = vunpack.c.l.b16 %v88
  %v472 = vunpack.c.h.b16 %v88
  %v473 = vunpack.c.l.b16 %v89
  %v474 = vunpack.c.h.b16 %v89
  %v475 = vunpack.c.l.b16 %v90
  %v476 = vunpack.c.h.b16 %v90
  %v477 = vunpack.c.l.b16 %v91
  %v478 = vunpack.c.h.b16 %v91
  %v479 = vunpack.c.l.b16 %v92
  %v480 = vunpack.c.h.b16 %v92
  %v481 = vunpack.c.l.b16 %v93
  %v482 = vunpack.c.h.b16 %v93
  %v483 = vunpack.c.l.b16 %v94
  %v484 = vunpack.c.h.b16 %v94
  %v485 = vunpack.c.l.b16 %v95
  %v486 = vunpack.c.h.b16 %v95
  %v487 = vunpack.c.l.b16 %v96
  %v488 = vunpack.c.h.b16 %v96
  %v489 = vunpack.c.l.b16 %v97
  %v490 = vunpack.c.h.b16 %v97
  %v491 = vunpack.c.l.b16 %v98
  %v492 = vunpack.c.h.b16 %v98
  %v493 = vunpack.c.l.b16 %v99
  %v494 = vunpack.c.h.b16 %v99
  %v495 = vunpack.c.l.b16 %v100
  %v496 = vunpack.c.h.b16 %v100
  %v497 = vunpack.c.l.b16 %v101
  %v498 = vunpack.c.h.b16 %v101
  %v499 = vunpack.c.l.b16 %v102
  %v500 = vunpack.c.h.b16 %v102
  %v501 = vunpack.c.l.b16 %v103
  %v502 = vunpack.c.h.b16 %v103
  %v503 = vunpack.c.l.b16 %v104
  %v504 = vunpack.c.h.b16 %v104
  %v505 = vunpack.c.l.b16 %v105
  %v506 = vunpack.c.h.b16 %v105
  %v507 = vunpack.c.l.b16 %v106
  %v508 = vunpack.c.h.b16 %v106
  %v509 = vunpack.c.l.b16 %v107
  %v510 = vunpack.c.h.b16 %v107
  %v511 = vunpack.c.l.b16 %v108
  %v512 = vunpack.c.h.b16 %v108
  %v513 = vunpack.c.l.b16 %v109
  %v514 = vunpack.c.h.b16 %v109
  %v515 = vunpack.c.l.b16 %v110
  %v516 = vunpack.c.h.b16 %v110
  %v517 = vunpack.c.l.b16 %v111
  %v518 = vunpack.c.h.b16 %v111
  %v519 = vunpack.c.l.b16 %v112
  %v520 = vunpack.c.h.b16 %v112
  %v521 = vunpack.c.l.b16 %v113
  %v522 = vunpack.c.h.b16 %v113
  %v523 = vunpack.c.l.b16 %v114
  %v524 = vunpack.c.h.b16 %v114
  %v525 = vunpack.c.l.b16 %v115
  %v526 = vunpack.c.h.b16 %v115
  %v527 = vunpack.c.l.b16 %v116
  %v528 = vunpack.c.h.b16 %v116
  %v529 = vunpack.c.l.b16 %v117
  %v530 = vunpack.c.h.b16 %v117
  %v531 = vunpack.c.l.b16 %v118
  %v532 = vunpack.c.h.b16 %v118
  %v533 = vunpack.c.l.b16 %v119
  %v534 = vunpack.c.h.b16 %v119
  %v535 = vunpack.c.l.b16 %v120
  %v536 = vunpack.c.h.b16 %v120
  %v537 = vunpack.c.l.b16 %v121
  %v538 = vunpack.c.h.b16 %v121
  %v539 = vunpack.c.l.b16 %v122
  %v540 = vunpack.c.h.b16 %v122
  %v541 = vunpack.c.l.b16 %v123
  %v542 = vunpack.c.h.b16 %v123
  %v543 = vunpack.c.l.b16 %v124
  %v544 = vunpack.c.h.b16 %v124
  %v545 = vunpack.c.l.b16 %v125
  %v546 = vunpack.c.h.b16 %v125
  %v547 = vunpack.c.l.b16 %v126
  %v548 = vunpack.c.h.b16 %v126
  %v549 = vunpack.c.l.b16 %v127
  %v550 = vunpack.c.h.b16 %v127
  %v551 = vunpack.c.l.b16 %v128
  %v552 = vunpack.c.h.b16 %v128
  %v553 = vunpack.c.l.b16 %v129
  %v554 = vunpack.c.h.b16 %v129
  %v555 = vunpack.c.l.b16 %v130
  %v556 = vunpack.c.h.b16 %v130
  %v557 = vunpack.c.l.b16 %v131
  %v558 = vunpack.c.h.b16 %v131
  %v559 = vunpack.c.l.b16 %v132
  %v560 = vunpack.c.h.b16 %v132
  %v561 = vunpack.c.l.b16 %v133
  %v562 = vunpack.c.h.b16 %v133
  %v563 = vunpack.c.l.b16 %v134
  %v564 = vunpack.c.h.b16 %v134
  %v565 = vunpack.c.l.b16 %v135
  %v566 = vunpack.c.h.b16 %v135
  %v567 = vunpack.c.l.b16 %v136
  %v568 = vunpack.c.h.b16 %v136
  %v569 = vunpack.c.l.b16 %v137
  %v570 = vunpack.c.h.b16 %v137
  %v571 = vunpack.c.l.b16 %v138
  %v572 = vunpack.c.h.b16 %v138
  %v573 = vunpack.c.l.b16 %v139
  %v574 = vunpack.c.h.b16 %v139
  %v575 = vunpack.c.l.b16 %v140
  %v576 = vunpack.c.h.b16 %v140
  %v577 = vunpack.c.l.b16 %v141
  %v578 = vunpack.c.h.b16 %v141
  %v579 = vunpack.c.l.b16 %v142
  %v580 = vunpack.c.h.b16 %v142
  %v581 = vunpack.c.l.b16 %v143
  %v582 = vunpack.c.h.b16 %v143
  %v583 = vunpack.c.l.b16 %v144
  %v584 = vunpack.c.h.b16 %v144
  %v585 = vunpack.c.l.b16 %v145
  %v586 = vunpack.c.h.b16 %v145
  %v587 = vunpack.c.l.b16 %v146
  %v588 = vunpack.c.h.b16 %v146
  %v589 = vunpack.c.l.b16 %v147
  %v590 = vunpack.c.h.b16 %v147
  %v591 = vunpack.c.l.b16 %v148
  %v592 = vunpack.c.h.b16 %v148
  %v593 = vunpack.c.l.b16 %v149
  %v594 = vunpack.c.h.b16 %v149
  %v595 = vunpack.c.l.b16 %v150
  %v596 = vunpack.c.h.b16 %v150
  %v597 = vunpack.c.l.b16 %v151
  %v598 = vunpack.c.h.b16 %v151
  %v599 = vunpack.c.l.b16 %v152
  %v600 = vunpack.c.h.b16 %v152
  %v601 = vunpack.c.l.b16 %v153
  %v602 = vunpack.c.h.b16 %v153
  %v603 = vunpack.c.l.b16 %v154
  %v604 = vunpack.c.h.b16 %v154
  %v605 = vunpack.c.l.b16 %v155
  %v606 = vunpack.c.h.b16 %v155
  %v607 = vunpack.c.l.b16 %v156
  %v608 = vunpack.c.h.b16 %v156
  %v609 = vunpack.c.l.b16 %v157
  %v610 = vunpack.c.h.b16 %v157
  %v611 = vunpack.c.l.b16 %v158
  %v612 = vunpack.c.h.b16 %v158
  %v613 = vunpack.c.l.b16 %v159
  %v614 = vunpack.c.h.b16 %v159
  %v615 = vunpack.c.l.b16 %v160
  %v616 = vunpack.c.h.b16 %v160
  %v617 = vunpack.c.l.b16 %v161
  %v618 = vunpack.c.h.b16 %v161
  %v619 = vunpack.c.l.b16 %v162
  %v620 = vunpack.c.h.b16 %v162
  %v621 = vunpack.c.l.b16 %v163
  %v622 = vunpack.c.h.b16 %v163
  %v623 = vunpack.c.l.b16 %v164
  %v624 = vunpack.c.h.b16 %v164
  %v625 = vunpack.c.l.b16 %v165
  %v626 = vunpack.c.h.b16 %v165
  %v627 = vunpack.c.l.b16 %v166
  %v628 = vunpack.c.h.b16 %v166
  %v629 = vunpack.c.l.b16 %v167
  %v630 = vunpack.c.h.b16 %v167
  %v631 = vunpack.c.l.b16 %v168
  %v632 = vunpack.c.h.b16 %v168
  %v633 = vunpack.c.l.b16 %v169
  %v634 = vunpack.c.h.b16 %v169
  %v635 = vunpack.c.l.b16 %v170
  %v636 = vunpack.c.h.b16 %v170
  %v637 = vunpack.c.l.b16 %v171
  %v638 = vunpack.c.h.b16 %v171
  %v639 = vunpack.c.l.b16 %v172
  %v640 = vunpack.c.h.b16 %v172
  %v641 = vunpack.c.l.b16 %v173
  %v642 = vunpack.c.h.b16 %v173
  %v643 = vunpack.c.l.b16 %v174
  %v644 = vunpack.c.h.b16 %v174
  %v645 = vunpack.c.l.b16 %v175
  %v646 = vunpack.c.h.b16 %v175
  %v647 = vunpack.c.l.b16 %v176
  %v648 = vunpack.c.h.b16 %v176
  %v649 = vunpack.c.l.b16 %v177
  %v650 = vunpack.c.h.b16 %v177
  %v651 = vunpack.c.l.b16 %v178
  %v652 = vunpack.c.h.b16 %v178
  %v653 = vunpack.c.l.b16 %v179
  %v654 = vunpack.c.h.b16 %v179
  %v655 = vunpack.c.l.b16 %v180
  %v656 = vunpack.c.h.b16 %v180
  %v657 = vpack.c.b16 %v371, %v369
  %v658 = vpack.c.b16 %v372, %v370
  %v659 = vpack.c.b16 %v375, %v373
  %v660 = vpack.c.b16 %v376, %v374
  %v661 = vpack.c.b16 %v379, %v377
  %v662 = vpack.c.b16 %v380, %v378
  %v663 = vpack.c.b16 %v383, %v381
  %v664 = vpack.c.b16 %v384, %v382
  %v665 = vpack.c.b16 %v387, %v385
  %v666 = vpack.c.b16 %v388, %v386
  %v667 = vpack.c.b16 %v391, %v389
  %v668 = vpack.c.b16 %v392, %v390
  %v669 = vpack.c.b16 %v395, %v393
  %v670 = vpack.c.b16 %v396, %v394
  %v671 = vpack.c.b16 %v399, %v397
  %v672 = vpack.c.b16 %v400, %v398
  %v673 = vpack.c.b16 %v403, %v401
  %v674 = vpack.c.b16 %v404, %v402
  %v675 = vpack.c.b16 %v407, %v405
  %v676 = vpack.c.b16 %v408, %v406
  %v677 = vpack.c.b16 %v411, %v409
  %v678 = vpack.c.b16 %v412, %v410
  %v679 = vpack.c.b16 %v415, %v413
  %v680 = vpack.c.b16 %v416, %v414
  %v681 = vpack.c.b16 %v419, %v417
  %v682 = vpack.c.b16 %v420, %v418
  %v683 = vpack.c.b16 %v423, %v421
  %v684 = vpack.c.b16 %v424, %v422
  %v685 = vpack.c.b16 %v427, %v425
  %v686 = vpack.c.b16 %v428, %v426
  %v687 = vpack.c.b16 %v431, %v429
  %v688 = vpack.c.b16 %v432, %v430
  %v689 = vpack.c.b16 %v435, %v433
  %v690 = vpack.c.b16 %v436, %v434
  %v691 = vpack.c.b16 %v439, %v437
  %v692 = vpack.c.b16 %v440, %v438
  %v693 = vpack.c.b16 %v443, %v441
  %v694 = vpack.c.b16 %v444, %v442
  %v695 = vpack.c.b16 %v447, %v445
  %v696 = vpack.c.b16 %v448, %v446
  %v697 = vpack.c.b16 %v451, %v449
  %v698 = vpack.c.b16 %v452, %v450
  %v699 = vpack.c.b16 %v455, %v453
  %v700 = vpack.c.b16 %v456, %v454
  %v701 = vpack.c.b16 %v459, %v457
  %v702 = vpack.c.b16 %v460, %v458
  %v703 = vpack.c.b16 %v463, %v461
  %v704 = vpack.c.b16 %v464, %v462
  %v705 = vpack.c.b16 %v467, %v465
  %v706 = vpack.c.b16 %v468, %v466
  %v707 = vpack.c.b16 %v471, %v469
  %v708 = vpack.c.b16 %v472, %v470
  %v709 = vpack.c.b16 %v475, %v473
  %v710 = vpack.c.b16 %v476, %v474
  %v711 = vpack.c.b16 %v479, %v477
  %v712 = vpack.c.b16 %v480, %v478
  %v713 = vpack.c.b16 %v483, %v481
  %v714 = vpack.c.b16 %v484, %v482
  %v715 = vpack.c.b16 %v487, %v485
  %v716 = vpack.c.b16 %v488, %v486
  %v717 = vpack.c.b16 %v491, %v489
  %v718 = vpack.c.b16 %v492, %v490
  %v719 = vpack.c.b16 %v495, %v493
  %v720 = vpack.c.b16 %v496, %v494
  %v721 = vpack.c.b16 %v499, %v497
  %v722 = vpack.c.b16 %v500, %v498
  %v723 = vpack.c.b16 %v503, %v501
  %v724 = vpack.c.b16 %v504, %v502
  %v725 = vpack.c.b16 %v507, %v505
  %v726 = vpack.c.b16 %v508, %v506
  %v727 = vpack.c.b16 %v511, %v509
  %v728 = vpack.c.b16 %v512, %v510
  %v729 = vpack.c.b16 %v515, %v513
  %v730 = vpack.c.b16 %v516, %v514
  %v731 = vpack.c.b16 %v519, %v517
  %v732 = vpack.c.b16 %v520, %v518
  %v733 = vpack.c.b16 %v523, %v521
  %v734 = vpack.c.b16 %v524, %v522
  %v735 = vpack.c.b16 %v527, %v525
  %v736 = vpack.c.b16 %v528, %v526
  %v737 = vpack.c.b16 %v531, %v529
  %v738 = vpack.c.b16 %v532, %v530
  %v739 = vpack.c.b16 %v535, %v533
  %v740 = vpack.c.b16 %v536, %v534
  %v741 = vpack.c.b16 %v539, %v537
  %v742 = vpack.c.b16 %v540, %v538
  %v743 = vpack.c.b16 %v543, %v541
  %v744 = vpack.c.b16 %v544, %v542
  %v745 = vpack.c.b16 %v547, %v545
  %v746 = vpack.c.b16 %v548, %v546
  %v747 = vpack.c.b16 %v551, %v549
  %v748 = vpack.c.b16 %v552, %v550
  %v749 = vpack.c.b16 %v555, %v553
  %v750 = vpack.c.b16 %v556, %v554
  %v751 = vpack.c.b16 %v559, %v557
  %v752 = vpack.c.b16 %v560, %v558
  %v753 = vpack.c.b16 %v563, %v561
  %v754 = vpack.c.b16 %v564, %v562
  %v755 = vpack.c.b16 %v567, %v565
  %v756 = vpack.c.b16 %v568, %v566
  %v757 = vpack.c.b16 %v571, %v569
  %v758 = vpack.c.b16 %v572, %v570
  %v759 = vpack.c.b16 %v575, %v573
  %v760 = vpack.c.b16 %v576, %v574
  %v761 = vpack.c.b16 %v579, %v577
  %v762 = vpack.c.b16 %v580, %v578
  %v763 = vpack.c.b16 %v583, %v581
  %v764 = vpack.c.b16 %v584, %v582
  %v765 = vpack.c.b16 %v587, %v585
  %v766 = vpack.c.b16 %v588, %v586
  %v767 = vpack.c.b16 %v591, %v589
  %v768 = vpack.c.b16 %v592, %v590
  %v769 = vpack.c.b16 %v595, %v593
  %v770 = vpack.c.b16 %v596, %v594
  %v771 = vpack.c.b16 %v599, %v597
  %v772 = vpack.c.b16 %v600, %v598
  %v773 = vpack.c.b16 %v603, %v601
  %v774 = vpack.c.b16 %v604, %v602
  %v775 = vpack.c.b16 %v607, %v605
  %v776 = vpack.c.b16 %v608, %v606
  %v777 = vpack.c.b16 %v611, %v609
  %v778 = vpack.c.b16 %v612, %v610
  %v779 = vpack.c.b16 %v615, %v613
  %v780 = vpack.c.b16 %v616, %v614
  %v781 = vpack.c.b16 %v619, %v617
  %v782 = vpack.c.b16 %v620, %v618
  %v783 = vpack.c.b16 %v623, %v621
  %v784 = vpack.c.b16 %v624, %v622
  %v785 = vpack.c.b16 %v627, %v625
  %v786 = vpack.c.b16 %v628, %v626
  %v787 = vpack.c.b16 %v631, %v629
  %v788 = vpack.c.b16 %v632, %v630
  %v789 = vpack.c.b16 %v635, %v633
  %v790 = vpack.c.b16 %v636, %v634
  %v791 = vpack.c.b16 %v639, %v637
  %v792 = vpack.c.b16 %v640, %v638
  %v793 = vpack.c.b16 %v643, %v641
  %v794 = vpack.c.b16 %v644, %v642
  %v795 = vpack.c.b16 %v647, %v645
  %v796 = vpack.c.b16 %v648, %v646
  %v797 = vpack.c.b16 %v651, %v649
  %v798 = vpack.c.b16 %v652, %v650
  %v799 = vpack.c.b16 %v655, %v653
  %v800 = vpack.c.b16 %v656, %v654
  %945 = vmatprep.subr.bf16.mxu0 %v658
  %946 = vmatpush1.bf16.msra.mxu0 %v657
  %947 = vmatprep.subr.bf16.mxu0 %v660
  %948 = vmatpush1.bf16.msra.mxu0 %v659
  %949 = vmatprep.subr.bf16.mxu0 %v662
  %950 = vmatpush1.bf16.msra.mxu0 %v661
  %951 = vmatprep.subr.bf16.mxu0 %v664
  %952 = vmatpush1.bf16.msra.mxu0 %v663
  %953 = vmatprep.subr.bf16.mxu0 %v666
  %954 = vmatpush1.bf16.msra.mxu0 %v665
  %955 = vmatprep.subr.bf16.mxu0 %v668
  %956 = vmatpush1.bf16.msra.mxu0 %v667
  %957 = vmatprep.subr.bf16.mxu0 %v670
  %958 = vmatpush1.bf16.msra.mxu0 %v669
  %959 = vmatprep.subr.bf16.mxu0 %v672
  %960 = vmatpush1.bf16.msra.mxu0 %v671
  %961 = vmatprep.subr.bf16.mxu0 %v674
  %962 = vmatpush1.bf16.msra.mxu0 %v673
  %963 = vmatprep.subr.bf16.mxu0 %v676
  %964 = vmatpush1.bf16.msra.mxu0 %v675
  %965 = vmatprep.subr.bf16.mxu0 %v678
  %966 = vmatpush1.bf16.msra.mxu0 %v677
  %967 = vmatprep.subr.bf16.mxu0 %v680
  %968 = vmatpush1.bf16.msra.mxu0 %v679
  %969 = vmatprep.subr.bf16.mxu0 %v682
  %970 = vmatpush1.bf16.msra.mxu0 %v681
  %971 = vmatprep.subr.bf16.mxu0 %v684
  %972 = vmatpush1.bf16.msra.mxu0 %v683
  %973 = vmatprep.subr.bf16.mxu0 %v686
  %974 = vmatpush1.bf16.msra.mxu0 %v685
  %975 = vmatprep.subr.bf16.mxu0 %v688
  %976 = vmatpush1.bf16.msra.mxu0 %v687
  %977 = vmatprep.mubr.bf16.mxu0 %v208
  %978 = vmatmul.mubr.bf16.gmra.mrb[0].mxu0 %v207
  %v979 = vpop.f32.mrb[0].mxu0
  %v980 = vadd.f32 %v186, %v979
  %v981 = vpop.f32.mrb[0].mxu0
  %v982 = vadd.f32 %v190, %v981
  %v983 = vpop.f32.mrb[0].mxu0
  %v984 = vpop.f32.mrb[0].mxu0
  %985 = vdwg.mxu0
  %986 = vmatprep.subr.bf16.mxu0 %v690
  %987 = vmatpush1.bf16.msra.mxu0 %v689
  %988 = vmatprep.subr.bf16.mxu0 %v692
  %989 = vmatpush1.bf16.msra.mxu0 %v691
  %990 = vmatprep.subr.bf16.mxu0 %v694
  %991 = vmatpush1.bf16.msra.mxu0 %v693
  %992 = vmatprep.subr.bf16.mxu0 %v696
  %993 = vmatpush1.bf16.msra.mxu0 %v695
  %994 = vmatprep.subr.bf16.mxu0 %v698
  %995 = vmatpush1.bf16.msra.mxu0 %v697
  %996 = vmatprep.subr.bf16.mxu0 %v700
  %997 = vmatpush1.bf16.msra.mxu0 %v699
  %998 = vmatprep.subr.bf16.mxu0 %v702
  %999 = vmatpush1.bf16.msra.mxu0 %v701
  %1000 = vmatprep.subr.bf16.mxu0 %v704
  %1001 = vmatpush1.bf16.msra.mxu0 %v703
  %1002 = vmatprep.subr.bf16.mxu0 %v706
  %1003 = vmatpush1.bf16.msra.mxu0 %v705
  %1004 = vmatprep.subr.bf16.mxu0 %v708
  %1005 = vmatpush1.bf16.msra.mxu0 %v707
  %1006 = vmatprep.subr.bf16.mxu0 %v710
  %1007 = vmatpush1.bf16.msra.mxu0 %v709
  %1008 = vmatprep.subr.bf16.mxu0 %v712
  %1009 = vmatpush1.bf16.msra.mxu0 %v711
  %1010 = vmatprep.subr.bf16.mxu0 %v714
  %1011 = vmatpush1.bf16.msra.mxu0 %v713
  %1012 = vmatprep.subr.bf16.mxu0 %v716
  %1013 = vmatpush1.bf16.msra.mxu0 %v715
  %1014 = vmatprep.subr.bf16.mxu0 %v718
  %1015 = vmatpush1.bf16.msra.mxu0 %v717
  %1016 = vmatprep.subr.bf16.mxu0 %v720
  %1017 = vmatpush1.bf16.msra.mxu0 %v719
  %1018 = vmatprep.mubr.bf16.mxu0 %v210
  %1019 = vmatmul.mubr.bf16.gmra.mrb[0].mxu0 %v209
  %v1020 = vpop.f32.mrb[0].mxu0
  %v1021 = vadd.f32 %v980, %v1020
  %v1022 = vpop.f32.mrb[0].mxu0
  %v1023 = vadd.f32 %v982, %v1022
  %v1024 = vpop.f32.mrb[0].mxu0
  %v1025 = vpop.f32.mrb[0].mxu0
  %1026 = vdwg.mxu0
  %1027 = vmatprep.subr.bf16.mxu0 %v722
  %1028 = vmatpush1.bf16.msra.mxu0 %v721
  %1029 = vmatprep.subr.bf16.mxu0 %v724
  %1030 = vmatpush1.bf16.msra.mxu0 %v723
  %1031 = vmatprep.subr.bf16.mxu0 %v726
  %1032 = vmatpush1.bf16.msra.mxu0 %v725
  %1033 = vmatprep.subr.bf16.mxu0 %v728
  %1034 = vmatpush1.bf16.msra.mxu0 %v727
  %1035 = vmatprep.subr.bf16.mxu0 %v730
  %1036 = vmatpush1.bf16.msra.mxu0 %v729
  %1037 = vmatprep.subr.bf16.mxu0 %v732
  %1038 = vmatpush1.bf16.msra.mxu0 %v731
  %1039 = vmatprep.subr.bf16.mxu0 %v734
  %1040 = vmatpush1.bf16.msra.mxu0 %v733
  %1041 = vmatprep.subr.bf16.mxu0 %v736
  %1042 = vmatpush1.bf16.msra.mxu0 %v735
  %1043 = vmatprep.subr.bf16.mxu0 %v738
  %1044 = vmatpush1.bf16.msra.mxu0 %v737
  %1045 = vmatprep.subr.bf16.mxu0 %v740
  %1046 = vmatpush1.bf16.msra.mxu0 %v739
  %1047 = vmatprep.subr.bf16.mxu0 %v742
  %1048 = vmatpush1.bf16.msra.mxu0 %v741
  %1049 = vmatprep.subr.bf16.mxu0 %v744
  %1050 = vmatpush1.bf16.msra.mxu0 %v743
  %1051 = vmatprep.subr.bf16.mxu0 %v746
  %1052 = vmatpush1.bf16.msra.mxu0 %v745
  %1053 = vmatprep.subr.bf16.mxu0 %v748
  %1054 = vmatpush1.bf16.msra.mxu0 %v747
  %1055 = vmatprep.subr.bf16.mxu0 %v750
  %1056 = vmatpush1.bf16.msra.mxu0 %v749
  %1057 = vmatprep.subr.bf16.mxu0 %v752
  %1058 = vmatpush1.bf16.msra.mxu0 %v751
  %1059 = vmatprep.mubr.bf16.mxu0 %v212
  %1060 = vmatmul.mubr.bf16.gmra.mrb[0].mxu0 %v211
  %v1061 = vpop.f32.mrb[0].mxu0
  %v1062 = vadd.f32 %v1021, %v1061
  %v1063 = vpop.f32.mrb[0].mxu0
  %v1064 = vadd.f32 %v1023, %v1063
  %v1065 = vpop.f32.mrb[0].mxu0
  %v1066 = vpop.f32.mrb[0].mxu0
  %1067 = vdwg.mxu0
  %1068 = vmatprep.subr.bf16.mxu0 %v754
  %1069 = vmatpush1.bf16.msra.mxu0 %v753
  %1070 = vmatprep.subr.bf16.mxu0 %v756
  %1071 = vmatpush1.bf16.msra.mxu0 %v755
  %1072 = vmatprep.subr.bf16.mxu0 %v758
  %1073 = vmatpush1.bf16.msra.mxu0 %v757
  %1074 = vmatprep.subr.bf16.mxu0 %v760
  %1075 = vmatpush1.bf16.msra.mxu0 %v759
  %1076 = vmatprep.subr.bf16.mxu0 %v762
  %1077 = vmatpush1.bf16.msra.mxu0 %v761
  %1078 = vmatprep.subr.bf16.mxu0 %v764
  %1079 = vmatpush1.bf16.msra.mxu0 %v763
  %1080 = vmatprep.subr.bf16.mxu0 %v766
  %1081 = vmatpush1.bf16.msra.mxu0 %v765
  %1082 = vmatprep.subr.bf16.mxu0 %v768
  %1083 = vmatpush1.bf16.msra.mxu0 %v767
  %1084 = vmatprep.subr.bf16.mxu0 %v770
  %1085 = vmatpush1.bf16.msra.mxu0 %v769
  %1086 = vmatprep.subr.bf16.mxu0 %v772
  %1087 = vmatpush1.bf16.msra.mxu0 %v771
  %1088 = vmatprep.subr.bf16.mxu0 %v774
  %1089 = vmatpush1.bf16.msra.mxu0 %v773
  %1090 = vmatprep.subr.bf16.mxu0 %v776
  %1091 = vmatpush1.bf16.msra.mxu0 %v775
  %1092 = vmatprep.subr.bf16.mxu0 %v778
  %1093 = vmatpush1.bf16.msra.mxu0 %v777
  %1094 = vmatprep.subr.bf16.mxu0 %v780
  %1095 = vmatpush1.bf16.msra.mxu0 %v779
  %1096 = vmatprep.subr.bf16.mxu0 %v782
  %1097 = vmatpush1.bf16.msra.mxu0 %v781
  %1098 = vmatprep.subr.bf16.mxu0 %v784
  %1099 = vmatpush1.bf16.msra.mxu0 %v783
  %1100 = vmatprep.mubr.bf16.mxu0 %v214
  %1101 = vmatmul.mubr.bf16.gmra.mrb[0].mxu0 %v213
  %v1102 = vpop.f32.mrb[0].mxu0
  %v1103 = vadd.f32 %v1062, %v1102
  %v1104 = vpop.f32.mrb[0].mxu0
  %v1105 = vadd.f32 %v1064, %v1104
  %v1106 = vpop.f32.mrb[0].mxu0
  %v1107 = vpop.f32.mrb[0].mxu0
  %1108 = vdwg.mxu0
  %1109 = vmatprep.subr.bf16.mxu0 %v786
  %1110 = vmatpush1.bf16.msra.mxu0 %v785
  %1111 = vmatprep.subr.bf16.mxu0 %v788
  %1112 = vmatpush1.bf16.msra.mxu0 %v787
  %1113 = vmatprep.subr.bf16.mxu0 %v790
  %1114 = vmatpush1.bf16.msra.mxu0 %v789
  %1115 = vmatprep.subr.bf16.mxu0 %v792
  %1116 = vmatpush1.bf16.msra.mxu0 %v791
  %1117 = vmatprep.subr.bf16.mxu0 %v794
  %1118 = vmatpush1.bf16.msra.mxu0 %v793
  %1119 = vmatprep.subr.bf16.mxu0 %v796
  %1120 = vmatpush1.bf16.msra.mxu0 %v795
  %1121 = vmatprep.subr.bf16.mxu0 %v798
  %1122 = vmatpush1.bf16.msra.mxu0 %v797
  %1123 = vmatprep.subr.bf16.mxu0 %v800
  %1124 = vmatpush1.bf16.msra.mxu0 %v799
  %1125 = vmatprep.subr.bf16.mxu0 0
  %1126 = vmatpush1.bf16.msra.mxu0 0
  %1127 = vmatprep.subr.bf16.mxu0 0
  %1128 = vmatpush1.bf16.msra.mxu0 0
  %1129 = vmatprep.subr.bf16.mxu0 0
  %1130 = vmatpush1.bf16.msra.mxu0 0
  %1131 = vmatprep.subr.bf16.mxu0 0
  %1132 = vmatpush1.bf16.msra.mxu0 0
  %1133 = vmatprep.subr.bf16.mxu0 0
  %1134 = vmatpush1.bf16.msra.mxu0 0
  %1135 = vmatprep.subr.bf16.mxu0 0
  %1136 = vmatpush1.bf16.msra.mxu0 0
  %1137 = vmatprep.subr.bf16.mxu0 0
  %1138 = vmatpush1.bf16.msra.mxu0 0
  %1139 = vmatprep.subr.bf16.mxu0 0
  %1140 = vmatpush1.bf16.msra.mxu0 0
  %1141 = vmatprep.mubr.bf16.mxu0 0
  %1142 = vmatmul.mubr.bf16.gmra.mrb[0].mxu0 %v215
  %v1143 = vpop.f32.mrb[0].mxu0
  %v1144 = vadd.f32 %v1103, %v1143
  %v1145 = vpop.f32.mrb[0].mxu0
  %v1146 = vadd.f32 %v1105, %v1145
  %v1147 = vpop.f32.mrb[0].mxu0
  %v1148 = vpop.f32.mrb[0].mxu0
  %1149 = vdwg.mxu0
  %v1150 = vrot.slane %v1144, 4
  %v1151 = vadd.f32 %v1144, %v1150
  %v1152 = vrot.slane %v1151, 2
  %v1153 = vadd.f32 %v1151, %v1152
  %v1154 = vrot.slane %v1153, 1
  %v1155 = vadd.f32 %v1153, %v1154
  %v1156 = vrot.slane %v1146, 4
  %v1157 = vadd.f32 %v1146, %v1156
  %v1158 = vrot.slane %v1157, 2
  %v1159 = vadd.f32 %v1157, %v1158
  %v1160 = vrot.slane %v1159, 1
  %v1161 = vadd.f32 %v1159, %v1160
  %v1162 = vrcp.pop 8.0
  %v1163 = vmul.f32 %v1155, %v1162
  %v1164 = vmul.f32 %v1161, %v1162
  %v1165 = vmul.f32 %v1144, %v1144
  %v1166 = vmul.f32 %v1146, %v1146
  %v1167 = vrot.slane %v1165, 4
  %v1168 = vadd.f32 %v1165, %v1167
  %v1169 = vrot.slane %v1168, 2
  %v1170 = vadd.f32 %v1168, %v1169
  %v1171 = vrot.slane %v1170, 1
  %v1172 = vadd.f32 %v1170, %v1171
  %v1173 = vrot.slane %v1166, 4
  %v1174 = vadd.f32 %v1166, %v1173
  %v1175 = vrot.slane %v1174, 2
  %v1176 = vadd.f32 %v1174, %v1175
  %v1177 = vrot.slane %v1176, 1
  %v1178 = vadd.f32 %v1176, %v1177
  %v1179 = vmul.f32 %v1172, %v1162
  %v1180 = vmul.f32 %v1178, %v1162
  %v1181 = vmul.f32 %v1163, %v1163
  %v1182 = vmul.f32 %v1164, %v1164
  %v1183 = vsub.f32 %v1179, %v1181
  %v1184 = vsub.f32 %v1180, %v1182
  %v1185 = vmax.f32 %v1183, 0.0
  %v1186 = vmax.f32 %v1184, 0.0
  %v1187 = vadd.f32 %v1185, 1e-05
  %v1188 = vadd.f32 %v1186, 1e-05
  %v1189 = vrsqrt.pop %v1187
  %v1190 = vrsqrt.pop %v1188
  %v1191 = vld [vmem:[%s3] sm:$0x3]
  %v1193 = vlaneseq
  %v1194 = vshrl.u32 %v1193, 7
  %v1195 = vsub.s32 0, %v1194
  %v1196 = vrot.slane %v1191, %v1195
  %v1197 = vlaneseq
  %v1198 = vshrl.u32 %v1197, 7
  %v1199 = vsub.s32 1, %v1198
  %v1200 = vrot.slane %v1191, %v1199
  %v1203 = vmul.f32 %v1189, %v1196
  %v1204 = vmul.f32 %v1190, %v1200
  %v1205 = vld [vmem:[%s4] sm:$0x3]
  %v1206 = vmul.f32 %v1163, %v1203
  %v1207 = vmul.f32 %v1164, %v1204
  %v1210 = vcombine.low %v1206, %v1207
  %v1212 = vunpack.c.l.s4 1966171168
  %v1213 = vunpack.c.0.s8 %v1212
  %v1214 = vlaneseq
  %v1215 = vshrl.u32 %v1214, 7
  %v1216 = vsub.s32 %v1213, %v1215
  %v1217 = vrot.slane %v1210, %v1216
  %v1219 = vunpack.c.l.s4 1966171168
  %v1220 = vunpack.c.0.s8 %v1219
  %v1221 = vlaneseq
  %v1222 = vshrl.u32 %v1221, 7
  %v1223 = vsub.s32 %v1220, %v1222
  %v1224 = vrot.slane %v1217, %v1223
  %v1226 = vsub.f32 %v1205, %v1224
  %v1227 = vlaneseq
  %v1228 = vshrl.u32 %v1227, 7
  %v1229 = vsub.s32 0, %v1228
  %v1230 = vrot.slane %v1203, %v1229
  %v1231 = vlaneseq
  %v1232 = vshrl.u32 %v1231, 7
  %v1233 = vsub.s32 0, %v1232
  %v1234 = vrot.slane %v1204, %v1233
  %v1235 = vmul.f32 %v1144, %v1230
  %v1236 = vmul.f32 %v1146, %v1234
  %v1238 = vlaneseq
  %v1239 = vshrl.u32 %v1238, 7
  %v1240 = vsub.s32 0, %v1239
  %v1241 = vrot.slane %v1226, %v1240
  %v1242 = vlaneseq
  %v1243 = vshrl.u32 %v1242, 7
  %v1244 = vsub.s32 1, %v1243
  %v1245 = vrot.slane %v1226, %v1244
  %v1248 = vadd.f32 %v1235, %v1241
  %v1249 = vadd.f32 %v1236, %v1245
  %vm1250 = vcmp.gt.f32.partialorder %v1248, 0.0
  %vm1251 = vcmp.gt.f32.partialorder %v1249, 0.0
  %v1252 = vmul.f32 %v1248, 0.02
  %v1253 = vmul.f32 %v1249, 0.02
  %v1254 = vsel %vm1250, %v1248, %v1252
  %v1255 = vsel %vm1251, %v1249, %v1253
  %v1256 = vld [vmem:[%s5] sm:$0xff]
  %v1257 = vld [vmem:[%s5 + $0x8] sm:$0xff]
  %v1258 = vmul.f32 %v1254, %v1256
  %v1259 = vmul.f32 %v1255, %v1257
  %v1260 = vld [vmem:[%s6] sm:$0x3]
  %vm1261 = vcmask 64512
  %v1263 = vsel %vm1261, %v1260, 0
  %1265 = vmatprep.subr.mxu0 %v1259
  %1266 = vmatpush1.msra.mxu0 %v1258
  %1267 = vmatprep.subr.mxu0 0.0
  %1268 = vmatpush1.msra.mxu0 0.0
  %1269 = vmatprep.subr.mxu0 0.0
  %1270 = vmatpush1.msra.mxu0 0.0
  %1271 = vmatprep.subr.mxu0 0.0
  %1272 = vmatpush1.msra.mxu0 0.0
  %1273 = vmatprep.subr.mxu0 0.0
  %1274 = vmatpush1.msra.mxu0 0.0
  %1275 = vmatprep.subr.mxu0 0.0
  %1276 = vmatpush1.msra.mxu0 0.0
  %1277 = vmatprep.subr.mxu0 0.0
  %1278 = vmatpush1.msra.mxu0 0.0
  %1279 = vmatprep.subr.mxu0 0.0
  %1280 = vmatpush1.msra.mxu0 0.0
  %1281 = vmatprep.subr.mxu0 0.0
  %1282 = vmatpush1.msra.mxu0 0.0
  %1283 = vmatprep.subr.mxu0 0.0
  %1284 = vmatpush1.msra.mxu0 0.0
  %1285 = vmatprep.subr.mxu0 0.0
  %1286 = vmatpush1.msra.mxu0 0.0
  %1287 = vmatprep.subr.mxu0 0.0
  %1288 = vmatpush1.msra.mxu0 0.0
  %1289 = vmatprep.subr.mxu0 0.0
  %1290 = vmatpush1.msra.mxu0 0.0
  %1291 = vmatprep.subr.mxu0 0.0
  %1292 = vmatpush1.msra.mxu0 0.0
  %1293 = vmatprep.subr.mxu0 0.0
  %1294 = vmatpush1.msra.mxu0 0.0
  %1295 = vmatprep.subr.mxu0 0.0
  %1296 = vmatpush1.msra.mxu0 0.0
  %1297 = vmatprep.subr.mxu0 0.0
  %1298 = vmatpush1.msra.mxu0 0.0
  %1299 = vmatprep.subr.mxu0 0.0
  %1300 = vmatpush1.msra.mxu0 0.0
  %1301 = vmatprep.subr.mxu0 0.0
  %1302 = vmatpush1.msra.mxu0 0.0
  %1303 = vmatprep.subr.mxu0 0.0
  %1304 = vmatpush1.msra.mxu0 0.0
  %1305 = vmatprep.subr.mxu0 0.0
  %1306 = vmatpush1.msra.mxu0 0.0
  %1307 = vmatprep.subr.mxu0 0.0
  %1308 = vmatpush1.msra.mxu0 0.0
  %1309 = vmatprep.subr.mxu0 0.0
  %1310 = vmatpush1.msra.mxu0 0.0
  %1311 = vmatprep.subr.mxu0 0.0
  %1312 = vmatpush1.msra.mxu0 0.0
  %1313 = vmatprep.subr.mxu0 0.0
  %1314 = vmatpush1.msra.mxu0 0.0
  %1315 = vmatprep.subr.mxu0 0.0
  %1316 = vmatpush1.msra.mxu0 0.0
  %1317 = vmatprep.subr.mxu0 0.0
  %1318 = vmatpush1.msra.mxu0 0.0
  %1319 = vmatprep.subr.mxu0 0.0
  %1320 = vmatpush1.msra.mxu0 0.0
  %1321 = vmatprep.subr.mxu0 0.0
  %1322 = vmatpush1.msra.mxu0 0.0
  %1323 = vmatprep.subr.mxu0 0.0
  %1324 = vmatpush1.msra.mxu0 0.0
  %1325 = vmatprep.subr.mxu0 0.0
  %1326 = vmatpush1.msra.mxu0 0.0
  %1327 = vmatprep.subr.mxu0 0.0
  %1328 = vmatpush1.msra.mxu0 0.0
  %1329 = vmatprep.mubr.f32.mxu0 0.0
  %1330 = vmatmul.mubr.f32.gmra.mrb[0].mxu0 %v1263
  %v1331 = vpop.f32.mrb[0].mxu0
  %v1332 = vadd.f32 0.0, %v1331
  %v1333 = vpop.f32.mrb[0].mxu0
  %v1334 = vadd.f32 0.0, %v1333
  %1335 = vdwg.mxu0
  %vm1336 = vcmask 1041408
  %v1337 = vsel %vm1336, %v1332, 0.0
  %v1338 = vsel %vm1336, %v1334, 0.0
  %v1339 = vadd.f32 %v1337, %v1338
  %1340 = vadd.xlane.f32.xlu0 %v1339
  %v1341 = vpop.xlane.xlu0 %1340
  %v1342 = vld [vmem:[#allocation2] sm:$0x1]
  %v1344 = vlaneseq
  %v1345 = vshrl.u32 %v1344, 7
  %v1346 = vsub.s32 0, %v1345
  %v1347 = vrot.slane %v1342, %v1346
  %v1349 = vadd.f32 %v1341, %v1347
  %vm1350 = vcmask 1024
  %1351 = vst.msk [vmem:[%s8] sm:$0x3] %vm1350, %v1349
  // Predicated region
  $region34: #{discriminator_forward.7} parent=0 // pred_check
    _
  $region35: #{discriminator_forward.7} parent=0 // pred_check_branch
    %1353 = sbr.rel (0) target = $region37
  $region36: #{discriminator_forward.7} parent=0 // pred_region
    _
  $region37: #{discriminator_forward.7} parent=0 // pred_fallthru
    _
  // Predicated region
  $region38: #{discriminator_forward.7} parent=0 // pred_check
    _
  $region39: #{discriminator_forward.7} parent=0 // pred_check_branch
    %1355 = sbr.rel (0) target = $region41
  $region40: #{discriminator_forward.7} parent=0 // pred_region
    _
  $region41: #{discriminator_forward.7} parent=0 // pred_fallthru
    _

</llo_original>
